<compile_context>
chip_gen: v6e
topology: v6e:2x2x1
jax: 0.10.0
libtpu: 0.0.40
codegen_flags: <defaults>
</compile_context>

<pallas_src>
import functools

import jax
import jax.numpy as jnp
from jax.experimental import pallas as pl
from jax.experimental.pallas import tpu as pltpu


# ----------------------------------------------------------------------------
# Pallas kernel: tiled  out = A @ B + bias  (optionally ReLU), f32 accumulation
# ----------------------------------------------------------------------------
def _matmul_bias_kernel(a_ref, b_ref, bias_ref, o_ref, acc_ref, *, relu):
    @pl.when(pl.program_id(2) == 0)
    def _init():
        acc_ref[...] = jnp.zeros_like(acc_ref)

    acc_ref[...] += jnp.dot(a_ref[...], b_ref[...],
                            preferred_element_type=jnp.float32)

    @pl.when(pl.program_id(2) == pl.num_programs(2) - 1)
    def _finalize():
        out = acc_ref[...] + bias_ref[...]          # f32 bias add
        if relu:
            out = jnp.maximum(out, 0.0)             # ReLU in f32, then cast
        o_ref[...] = out.astype(o_ref.dtype)


def _round_up(x, m):
    return ((x + m - 1) // m) * m


def _pick_tile(dim, align, cap):
    r = _round_up(dim, align)
    return r if r <= cap else cap


def matmul_bias(a, b, bias, *, relu=False, out_dtype=jnp.float32):
    """a: [M, K], b: [K, N], bias: [N] -> [M, N] (out_dtype).

    bf16 operands on the MXU, f32 accumulation.  N is padded to a multiple of
    128 so the Pallas output stores are lane-dense (unmasked vst)."""
    M, K = a.shape
    K2, N = b.shape
    assert K == K2, (a.shape, b.shape)

    tm = _pick_tile(M, 16, 128)      # sublane-friendly (bf16 packs 16 rows)
    tn = _pick_tile(N, 128, 1024)    # lane-dense output tiles
    tk = _pick_tile(K, 128, 1024)
    Mp, Kp, Np = _round_up(M, tm), _round_up(K, tk), _round_up(N, tn)

    a = a.astype(jnp.bfloat16)
    b = b.astype(jnp.bfloat16)
    bias2 = bias.astype(jnp.float32).reshape(1, N)
    if (Mp, Kp) != (M, K):
        a = jnp.pad(a, ((0, Mp - M), (0, Kp - K)))
    if (Kp, Np) != (K, N):
        b = jnp.pad(b, ((0, Kp - K), (0, Np - N)))
    if Np != N:
        bias2 = jnp.pad(bias2, ((0, 0), (0, Np - N)))

    grid = (Mp // tm, Np // tn, Kp // tk)
    kern = functools.partial(_matmul_bias_kernel, relu=relu)

    out = pl.pallas_call(
        kern,
        out_shape=jax.ShapeDtypeStruct((Mp, Np), out_dtype),
        grid_spec=pltpu.PrefetchScalarGridSpec(
            num_scalar_prefetch=0,
            grid=grid,
            in_specs=[
                pl.BlockSpec((tm, tk), lambda i, j, k: (i, k)),
                pl.BlockSpec((tk, tn), lambda i, j, k: (k, j)),
                pl.BlockSpec((1, tn), lambda i, j, k: (0, j)),
            ],
            out_specs=pl.BlockSpec((tm, tn), lambda i, j, k: (i, j)),
            scratch_shapes=[pltpu.VMEM((tm, tn), jnp.float32)],
        ),
        compiler_params=pltpu.CompilerParams(
            dimension_semantics=("parallel", "parallel", "arbitrary"),
        ),
    )(a, b, bias2)

    if (Mp, Np) != (M, N):
        out = out[:M, :N]
    return out


# ----------------------------------------------------------------------------
# NHWC conv / conv-transpose glue (all matmuls go through the Pallas kernel)
# ----------------------------------------------------------------------------
# TODO(synk): im2col / col2im below are XLA glue; folding the patch gather and
# the overlap-add into the kernel's DMA (manual make_async_copy) would remove
# the remaining HBM inflation for much larger images.
def conv2d_nhwc(x, wmat, bias, *, ksize, stride, pad, relu,
                out_dtype=jnp.bfloat16):
    """x: [N, H, W, C], wmat: [kh*kw*C, Cout] (matmul-ready)."""
    kh, kw = ksize
    N, H, W, C = x.shape
    if pad:
        x = jnp.pad(x, ((0, 0), (pad, pad), (pad, pad), (0, 0)))
    Hp, Wp = H + 2 * pad, W + 2 * pad
    Ho = (Hp - kh) // stride + 1
    Wo = (Wp - kw) // stride + 1
    cols = [x[:, i:i + stride * (Ho - 1) + 1:stride,
              j:j + stride * (Wo - 1) + 1:stride, :]
            for i in range(kh) for j in range(kw)]
    patches = jnp.concatenate(cols, axis=-1)            # [N, Ho, Wo, kh*kw*C]
    patches = patches.reshape(N * Ho * Wo, kh * kw * C)
    out = matmul_bias(patches, wmat, bias, relu=relu, out_dtype=out_dtype)
    return out.reshape(N, Ho, Wo, -1)


def conv_transpose2d_nhwc(x, wmat, bias, *, cout, ksize, stride, pad, out_pad,
                          relu):
    """x: [N, H, W, Cin], wmat: [Cin, kh*kw*Cout] (matmul-ready).

    Exact PyTorch ConvTranspose2d semantics (incl. output_padding), computed as
    a single dense matmul (no zero-dilated input, so no wasted FLOPs) followed
    by a col2im overlap-add."""
    kh, kw = ksize
    N, H, W, Cin = x.shape
    zeros_bias = jnp.zeros((kh * kw * cout,), jnp.float32)
    out = matmul_bias(x.reshape(N * H * W, Cin), wmat, zeros_bias,
                      relu=False, out_dtype=jnp.float32)
    cols = out.reshape(N, H, W, kh, kw, cout)

    Hout = (H - 1) * stride - 2 * pad + kh + out_pad
    Wout = (W - 1) * stride - 2 * pad + kw + out_pad
    Hc = (H - 1) * stride + kh + out_pad
    Wc = (W - 1) * stride + kw + out_pad
    canvas = jnp.zeros((N, Hc, Wc, cout), jnp.float32)
    for ky in range(kh):
        for kx in range(kw):
            canvas = canvas.at[:, ky:ky + (H - 1) * stride + 1:stride,
                               kx:kx + (W - 1) * stride + 1:stride, :].add(
                                   cols[:, :, :, ky, kx, :])
    y = canvas[:, pad:pad + Hout, pad:pad + Wout, :] + bias.astype(jnp.float32)
    if relu:
        y = jnp.maximum(y, 0.0)
    return y


# ----------------------------------------------------------------------------
# DEKM_AE parameters (PyTorch layout) + one-time matmul-ready preparation
# ----------------------------------------------------------------------------
LAYERS = (32, 64, 128)


def init_params(key, input_shape, embedding_size, layers=LAYERS):
    H, W, C = input_shape
    flatten_height = (H // 2 // 2 - 1) // 2
    lin_features_len = flatten_height * flatten_height * layers[2]
    shapes = {
        "enc_conv1_w": (layers[0], C, 5, 5),         "enc_conv1_b": (layers[0],),
        "enc_conv2_w": (layers[1], layers[0], 5, 5), "enc_conv2_b": (layers[1],),
        "enc_conv3_w": (layers[2], layers[1], 3, 3), "enc_conv3_b": (layers[2],),
        "enc_lin_w": (embedding_size, lin_features_len), "enc_lin_b": (embedding_size,),
        "dec_lin_w": (lin_features_len, embedding_size), "dec_lin_b": (lin_features_len,),
        "dec_deconv1_w": (layers[2], layers[1], 3, 3), "dec_deconv1_b": (layers[1],),
        "dec_deconv2_w": (layers[1], layers[0], 5, 5), "dec_deconv2_b": (layers[0],),
        "dec_deconv3_w": (layers[0], C, 5, 5),         "dec_deconv3_b": (C,),
    }
    names = sorted(shapes)
    keys = jax.random.split(key, len(names))
    return {n: 0.05 * jax.random.normal(k, shapes[n], jnp.float32)
            for n, k in zip(names, keys)}


def prepare_params(params, input_shape, embedding_size, layers=LAYERS):
    """One-time conversion of PyTorch-layout weights to matmul-ready bf16
    matrices (permutations match the NHWC flatten order used in the forward)."""
    H, _, _ = input_shape
    fh = (H // 2 // 2 - 1) // 2
    L0, L1, L2 = layers
    lin_len = fh * fh * L2

    def conv_w(w):     # [Cout, Cin, kh, kw] -> [kh*kw*Cin, Cout]
        Cout, Cin, kh, kw = w.shape
        return w.transpose(2, 3, 1, 0).reshape(kh * kw * Cin, Cout).astype(jnp.bfloat16)

    def deconv_w(w):   # [Cin, Cout, kh, kw] -> [Cin, kh*kw*Cout]
        Cin, Cout, kh, kw = w.shape
        return w.transpose(0, 2, 3, 1).reshape(Cin, kh * kw * Cout).astype(jnp.bfloat16)

    # PyTorch Flatten/Unflatten use (C, H, W) order; our activations are NHWC,
    # so permute the Linear weights (and dec bias) to the (H, W, C) order once.
    enc_lin_w = params["enc_lin_w"].reshape(embedding_size, L2, fh, fh)
    enc_lin_w = enc_lin_w.transpose(2, 3, 1, 0).reshape(lin_len, embedding_size)
    dec_lin_w = params["dec_lin_w"].reshape(L2, fh, fh, embedding_size)
    dec_lin_w = dec_lin_w.transpose(3, 1, 2, 0).reshape(embedding_size, lin_len)
    dec_lin_b = params["dec_lin_b"].reshape(L2, fh, fh).transpose(1, 2, 0).reshape(lin_len)

    return {
        "conv1_w": conv_w(params["enc_conv1_w"]), "conv1_b": params["enc_conv1_b"],
        "conv2_w": conv_w(params["enc_conv2_w"]), "conv2_b": params["enc_conv2_b"],
        "conv3_w": conv_w(params["enc_conv3_w"]), "conv3_b": params["enc_conv3_b"],
        "enc_lin_w": enc_lin_w.astype(jnp.bfloat16), "enc_lin_b": params["enc_lin_b"],
        "dec_lin_w": dec_lin_w.astype(jnp.bfloat16), "dec_lin_b": dec_lin_b,
        "deconv1_w": deconv_w(params["dec_deconv1_w"]), "deconv1_b": params["dec_deconv1_b"],
        "deconv2_w": deconv_w(params["dec_deconv2_w"]), "deconv2_b": params["dec_deconv2_b"],
        "deconv3_w": deconv_w(params["dec_deconv3_w"]), "deconv3_b": params["dec_deconv3_b"],
    }


# ----------------------------------------------------------------------------
# Forward pass (input/output in NCHW to match the PyTorch module interface)
# ----------------------------------------------------------------------------
def dekm_ae_forward(p, x, *, input_shape, embedding_size, layers=LAYERS):
    Himg = input_shape[0]
    fh = (Himg // 2 // 2 - 1) // 2
    out_pad_1 = 1 if Himg // 2 // 2 % 2 == 0 else 0
    out_pad_2 = 1 if Himg // 2 % 2 == 0 else 0
    out_pad_3 = 1 if Himg % 2 == 0 else 0
    L0, L1, L2 = layers

    x = x.transpose(0, 2, 3, 1)     # NCHW -> NHWC (single boundary relayout)

    # ---- encoder ----
    h = conv2d_nhwc(x, p["conv1_w"], p["conv1_b"], ksize=(5, 5), stride=2, pad=2, relu=True)
    h = conv2d_nhwc(h, p["conv2_w"], p["conv2_b"], ksize=(5, 5), stride=2, pad=2, relu=True)
    h = conv2d_nhwc(h, p["conv3_w"], p["conv3_b"], ksize=(3, 3), stride=2, pad=0, relu=True)
    N = h.shape[0]
    h_flat = h.reshape(N, -1)       # NHWC flatten; enc_lin_w rows pre-permuted to match
    x_encoded = matmul_bias(h_flat, p["enc_lin_w"], p["enc_lin_b"],
                            relu=False, out_dtype=jnp.float32)

    # ---- decoder ----
    d = matmul_bias(x_encoded, p["dec_lin_w"], p["dec_lin_b"],
                    relu=True, out_dtype=jnp.bfloat16)
    d = d.reshape(N, fh, fh, L2)    # NHWC unflatten; dec_lin_w cols pre-permuted
    d = conv_transpose2d_nhwc(d, p["deconv1_w"], p["deconv1_b"], cout=L1,
                              ksize=(3, 3), stride=2, pad=0, out_pad=out_pad_1, relu=True)
    d = conv_transpose2d_nhwc(d, p["deconv2_w"], p["deconv2_b"], cout=L0,
                              ksize=(5, 5), stride=2, pad=2, out_pad=out_pad_2, relu=True)
    gen = conv_transpose2d_nhwc(d, p["deconv3_w"], p["deconv3_b"], cout=input_shape[2],
                                ksize=(5, 5), stride=2, pad=2, out_pad=out_pad_3, relu=False)
    gen = gen.transpose(0, 3, 1, 2)  # back to NCHW (PyTorch output convention)
    return x_encoded, gen


# ----------------------------------------------------------------------------
if __name__ == "__main__":
    key = jax.random.PRNGKey(0)
    input_shape = (16, 16, 4)       # (H, W, C), as in the PyTorch module
    embedding_size = 32
    batch = 2

    pkey, xkey = jax.random.split(key)
    params_pt = init_params(pkey, input_shape, embedding_size)
    params = prepare_params(params_pt, input_shape, embedding_size)
    x = jax.random.normal(
        xkey, (batch, input_shape[2], input_shape[0], input_shape[1]), jnp.float32)

    fwd = jax.jit(functools.partial(
        dekm_ae_forward, input_shape=input_shape, embedding_size=embedding_size))
    x_encoded, gen = fwd(params, x)
    jax.block_until_ready((x_encoded, gen))

    assert x_encoded.shape == (batch, embedding_size), x_encoded.shape
    assert gen.shape == (batch, input_shape[2], input_shape[0], input_shape[1]), gen.shape
    assert bool(jnp.all(jnp.isfinite(x_encoded))) and bool(jnp.all(jnp.isfinite(gen)))
    print("KERNEL_OK")
</pallas_src>

<mosaic_0001>
module attributes {stable_mosaic.version = 11 : i64} {
  func.func @_matmul_bias_kernel(%arg0: i32, %arg1: i32, %arg2: i32, %arg3: memref<128x128xbf16, #tpu.memory_space<vmem>>, %arg4: memref<128x128xbf16, #tpu.memory_space<vmem>>, %arg5: memref<1x128xf32, #tpu.memory_space<vmem>>, %arg6: memref<128x128xbf16, #tpu.memory_space<vmem>>, %arg7: memref<128x128xf32, #tpu.memory_space<vmem>>) attributes {dimension_semantics = [#tpu.dimension_semantics<parallel>, #tpu.dimension_semantics<parallel>, #tpu.dimension_semantics<arbitrary>], iteration_bounds = array<i64: 1, 1, 1>, scalar_prefetch = 0 : i64, scratch_operands = 1 : i64, tpu.core_type = #tpu.core_type<tc>, window_params = [{transform_indices = @transform_0, window_bounds = array<i64: 128, 128>}, {transform_indices = @transform_1, window_bounds = array<i64: 128, 128>}, {transform_indices = @transform_2, window_bounds = array<i64: 1, 128>}, {transform_indices = @transform_3, window_bounds = array<i64: 128, 128>}]} {
    %c0_i32 = arith.constant 0 : i32
    %0 = arith.cmpi eq, %arg2, %c0_i32 : i32
    %1 = arith.extui %0 : i1 to i32
    %c0_i32_0 = arith.constant 0 : i32
    %2 = arith.cmpi ne, %1, %c0_i32_0 : i32
    scf.if %2 {
      %cst_10 = arith.constant 0.000000e+00 : f32
      %12 = vector.broadcast %cst_10 : f32 to vector<128x128xf32>
      %c0_11 = arith.constant 0 : index
      %c0_12 = arith.constant 0 : index
      %13 = vector.load %arg7[%c0_11, %c0_12] : memref<128x128xf32, #tpu.memory_space<vmem>>, vector<128x128xf32>
      tpu.vector_store %arg7[%c0_11, %c0_12], %12 {strides = array<i32>} : memref<128x128xf32, #tpu.memory_space<vmem>>, vector<128x128xf32>,
    } else {
    }
    %c0 = arith.constant 0 : index
    %c0_1 = arith.constant 0 : index
    %3 = vector.load %arg7[%c0, %c0_1] : memref<128x128xf32, #tpu.memory_space<vmem>>, vector<128x128xf32>
    %c0_2 = arith.constant 0 : index
    %c0_3 = arith.constant 0 : index
    %4 = vector.load %arg3[%c0_2, %c0_3] : memref<128x128xbf16, #tpu.memory_space<vmem>>, vector<128x128xbf16>
    %c0_4 = arith.constant 0 : index
    %c0_5 = arith.constant 0 : index
    %5 = vector.load %arg4[%c0_4, %c0_5] : memref<128x128xbf16, #tpu.memory_space<vmem>>, vector<128x128xbf16>
    %cst = arith.constant dense<0.000000e+00> : vector<128x128xf32>
    %6 = tpu.matmul %4, %5, %cst {dimension_numbers = #tpu.dot_dimension_numbers<[1], [0], [0], [1], [0, 0, 1, 1], [], []>} : vector<128x128xbf16>, vector<128x128xbf16>, vector<128x128xf32> -> vector<128x128xf32>
    %7 = arith.addf %3, %6 : vector<128x128xf32>
    %c0_6 = arith.constant 0 : index
    %c0_7 = arith.constant 0 : index
    %8 = vector.load %arg7[%c0_6, %c0_7] : memref<128x128xf32, #tpu.memory_space<vmem>>, vector<128x128xf32>
    tpu.vector_store %arg7[%c0_6, %c0_7], %7 {strides = array<i32>} : memref<128x128xf32, #tpu.memory_space<vmem>>, vector<128x128xf32>,
    %c0_i32_8 = arith.constant 0 : i32
    %9 = arith.cmpi eq, %arg2, %c0_i32_8 : i32
    %10 = arith.extui %9 : i1 to i32
    %c0_i32_9 = arith.constant 0 : i32
    %11 = arith.cmpi ne, %10, %c0_i32_9 : i32
    scf.if %11 {
      %c0_10 = arith.constant 0 : index
      %c0_11 = arith.constant 0 : index
      %12 = vector.load %arg7[%c0_10, %c0_11] : memref<128x128xf32, #tpu.memory_space<vmem>>, vector<128x128xf32>
      %c0_12 = arith.constant 0 : index
      %c0_13 = arith.constant 0 : index
      %13 = vector.load %arg5[%c0_12, %c0_13] : memref<1x128xf32, #tpu.memory_space<vmem>>, vector<1x128xf32>
      %14 = vector.broadcast %13 : vector<1x128xf32> to vector<128x128xf32>
      %15 = arith.addf %12, %14 : vector<128x128xf32>
      %cst_14 = arith.constant 0.000000e+00 : f32
      %16 = vector.broadcast %cst_14 : f32 to vector<128x128xf32>
      %17 = arith.maximumf %15, %16 : vector<128x128xf32>
      %18 = arith.truncf %17 : vector<128x128xf32> to vector<128x128xbf16>
      %c0_15 = arith.constant 0 : index
      %c0_16 = arith.constant 0 : index
      %19 = vector.load %arg6[%c0_15, %c0_16] : memref<128x128xbf16, #tpu.memory_space<vmem>>, vector<128x128xbf16>
      tpu.vector_store %arg6[%c0_15, %c0_16], %18 {strides = array<i32>} : memref<128x128xbf16, #tpu.memory_space<vmem>>, vector<128x128xbf16>,
    } else {
    }
    return
  }
  func.func @transform_0(%arg0: i32, %arg1: i32, %arg2: i32) -> (i32, i32) {
    %c0_i32 = arith.constant 0 : i32
    return %arg0, %arg2 : i32, i32
  }
  func.func @transform_1(%arg0: i32, %arg1: i32, %arg2: i32) -> (i32, i32) {
    %c0_i32 = arith.constant 0 : i32
    return %arg2, %arg1 : i32, i32
  }
  func.func @transform_2(%arg0: i32, %arg1: i32, %arg2: i32) -> (i32, i32) {
    %c0_i32 = arith.constant 0 : i32
    %c0_i32_0 = arith.constant 0 : i32
    return %c0_i32, %arg1 : i32, i32
  }
  func.func @transform_3(%arg0: i32, %arg1: i32, %arg2: i32) -> (i32, i32) {
    %c0_i32 = arith.constant 0 : i32
    return %arg0, %arg1 : i32, i32
  }
}

module attributes {stable_mosaic.version = 11 : i64} {
  func.func @_matmul_bias_kernel(%arg0: i32, %arg1: i32, %arg2: i32, %arg3: memref<32x896xbf16, #tpu.memory_space<vmem>>, %arg4: memref<896x128xbf16, #tpu.memory_space<vmem>>, %arg5: memref<1x128xf32, #tpu.memory_space<vmem>>, %arg6: memref<32x128xbf16, #tpu.memory_space<vmem>>, %arg7: memref<32x128xf32, #tpu.memory_space<vmem>>) attributes {dimension_semantics = [#tpu.dimension_semantics<parallel>, #tpu.dimension_semantics<parallel>, #tpu.dimension_semantics<arbitrary>], iteration_bounds = array<i64: 1, 1, 1>, scalar_prefetch = 0 : i64, scratch_operands = 1 : i64, tpu.core_type = #tpu.core_type<tc>, window_params = [{transform_indices = @transform_0, window_bounds = array<i64: 32, 896>}, {transform_indices = @transform_1, window_bounds = array<i64: 896, 128>}, {transform_indices = @transform_2, window_bounds = array<i64: 1, 128>}, {transform_indices = @transform_3, window_bounds = array<i64: 32, 128>}]} {
    %c0_i32 = arith.constant 0 : i32
    %0 = arith.cmpi eq, %arg2, %c0_i32 : i32
    %1 = arith.extui %0 : i1 to i32
    %c0_i32_0 = arith.constant 0 : i32
    %2 = arith.cmpi ne, %1, %c0_i32_0 : i32
    scf.if %2 {
      %cst_10 = arith.constant 0.000000e+00 : f32
      %12 = vector.broadcast %cst_10 : f32 to vector<32x128xf32>
      %c0_11 = arith.constant 0 : index
      %c0_12 = arith.constant 0 : index
      %13 = vector.load %arg7[%c0_11, %c0_12] : memref<32x128xf32, #tpu.memory_space<vmem>>, vector<32x128xf32>
      tpu.vector_store %arg7[%c0_11, %c0_12], %12 {strides = array<i32>} : memref<32x128xf32, #tpu.memory_space<vmem>>, vector<32x128xf32>,
    } else {
    }
    %c0 = arith.constant 0 : index
    %c0_1 = arith.constant 0 : index
    %3 = vector.load %arg7[%c0, %c0_1] : memref<32x128xf32, #tpu.memory_space<vmem>>, vector<32x128xf32>
    %c0_2 = arith.constant 0 : index
    %c0_3 = arith.constant 0 : index
    %4 = vector.load %arg3[%c0_2, %c0_3] : memref<32x896xbf16, #tpu.memory_space<vmem>>, vector<32x896xbf16>
    %c0_4 = arith.constant 0 : index
    %c0_5 = arith.constant 0 : index
    %5 = vector.load %arg4[%c0_4, %c0_5] : memref<896x128xbf16, #tpu.memory_space<vmem>>, vector<896x128xbf16>
    %cst = arith.constant dense<0.000000e+00> : vector<32x128xf32>
    %6 = tpu.matmul %4, %5, %cst {dimension_numbers = #tpu.dot_dimension_numbers<[1], [0], [0], [1], [0, 0, 1, 1], [], []>} : vector<32x896xbf16>, vector<896x128xbf16>, vector<32x128xf32> -> vector<32x128xf32>
    %7 = arith.addf %3, %6 : vector<32x128xf32>
    %c0_6 = arith.constant 0 : index
    %c0_7 = arith.constant 0 : index
    %8 = vector.load %arg7[%c0_6, %c0_7] : memref<32x128xf32, #tpu.memory_space<vmem>>, vector<32x128xf32>
    tpu.vector_store %arg7[%c0_6, %c0_7], %7 {strides = array<i32>} : memref<32x128xf32, #tpu.memory_space<vmem>>, vector<32x128xf32>,
    %c0_i32_8 = arith.constant 0 : i32
    %9 = arith.cmpi eq, %arg2, %c0_i32_8 : i32
    %10 = arith.extui %9 : i1 to i32
    %c0_i32_9 = arith.constant 0 : i32
    %11 = arith.cmpi ne, %10, %c0_i32_9 : i32
    scf.if %11 {
      %c0_10 = arith.constant 0 : index
      %c0_11 = arith.constant 0 : index
      %12 = vector.load %arg7[%c0_10, %c0_11] : memref<32x128xf32, #tpu.memory_space<vmem>>, vector<32x128xf32>
      %c0_12 = arith.constant 0 : index
      %c0_13 = arith.constant 0 : index
      %13 = vector.load %arg5[%c0_12, %c0_13] : memref<1x128xf32, #tpu.memory_space<vmem>>, vector<1x128xf32>
      %14 = vector.broadcast %13 : vector<1x128xf32> to vector<32x128xf32>
      %15 = arith.addf %12, %14 : vector<32x128xf32>
      %cst_14 = arith.constant 0.000000e+00 : f32
      %16 = vector.broadcast %cst_14 : f32 to vector<32x128xf32>
      %17 = arith.maximumf %15, %16 : vector<32x128xf32>
      %18 = arith.truncf %17 : vector<32x128xf32> to vector<32x128xbf16>
      %c0_15 = arith.constant 0 : index
      %c0_16 = arith.constant 0 : index
      %19 = vector.load %arg6[%c0_15, %c0_16] : memref<32x128xbf16, #tpu.memory_space<vmem>>, vector<32x128xbf16>
      tpu.vector_store %arg6[%c0_15, %c0_16], %18 {strides = array<i32>} : memref<32x128xbf16, #tpu.memory_space<vmem>>, vector<32x128xbf16>,
    } else {
    }
    return
  }
  func.func @transform_0(%arg0: i32, %arg1: i32, %arg2: i32) -> (i32, i32) {
    %c0_i32 = arith.constant 0 : i32
    return %arg0, %arg2 : i32, i32
  }
  func.func @transform_1(%arg0: i32, %arg1: i32, %arg2: i32) -> (i32, i32) {
    %c0_i32 = arith.constant 0 : i32
    return %arg2, %arg1 : i32, i32
  }
  func.func @transform_2(%arg0: i32, %arg1: i32, %arg2: i32) -> (i32, i32) {
    %c0_i32 = arith.constant 0 : i32
    %c0_i32_0 = arith.constant 0 : i32
    return %c0_i32, %arg1 : i32, i32
  }
  func.func @transform_3(%arg0: i32, %arg1: i32, %arg2: i32) -> (i32, i32) {
    %c0_i32 = arith.constant 0 : i32
    return %arg0, %arg1 : i32, i32
  }
}

module attributes {stable_mosaic.version = 11 : i64} {
  func.func @_matmul_bias_kernel(%arg0: i32, %arg1: i32, %arg2: i32, %arg3: memref<16x640xbf16, #tpu.memory_space<vmem>>, %arg4: memref<640x128xbf16, #tpu.memory_space<vmem>>, %arg5: memref<1x128xf32, #tpu.memory_space<vmem>>, %arg6: memref<16x128xbf16, #tpu.memory_space<vmem>>, %arg7: memref<16x128xf32, #tpu.memory_space<vmem>>) attributes {dimension_semantics = [#tpu.dimension_semantics<parallel>, #tpu.dimension_semantics<parallel>, #tpu.dimension_semantics<arbitrary>], iteration_bounds = array<i64: 1, 1, 1>, scalar_prefetch = 0 : i64, scratch_operands = 1 : i64, tpu.core_type = #tpu.core_type<tc>, window_params = [{transform_indices = @transform_0, window_bounds = array<i64: 16, 640>}, {transform_indices = @transform_1, window_bounds = array<i64: 640, 128>}, {transform_indices = @transform_2, window_bounds = array<i64: 1, 128>}, {transform_indices = @transform_3, window_bounds = array<i64: 16, 128>}]} {
    %c0_i32 = arith.constant 0 : i32
    %0 = arith.cmpi eq, %arg2, %c0_i32 : i32
    %1 = arith.extui %0 : i1 to i32
    %c0_i32_0 = arith.constant 0 : i32
    %2 = arith.cmpi ne, %1, %c0_i32_0 : i32
    scf.if %2 {
      %cst_10 = arith.constant 0.000000e+00 : f32
      %12 = vector.broadcast %cst_10 : f32 to vector<16x128xf32>
      %c0_11 = arith.constant 0 : index
      %c0_12 = arith.constant 0 : index
      %13 = vector.load %arg7[%c0_11, %c0_12] : memref<16x128xf32, #tpu.memory_space<vmem>>, vector<16x128xf32>
      tpu.vector_store %arg7[%c0_11, %c0_12], %12 {strides = array<i32>} : memref<16x128xf32, #tpu.memory_space<vmem>>, vector<16x128xf32>,
    } else {
    }
    %c0 = arith.constant 0 : index
    %c0_1 = arith.constant 0 : index
    %3 = vector.load %arg7[%c0, %c0_1] : memref<16x128xf32, #tpu.memory_space<vmem>>, vector<16x128xf32>
    %c0_2 = arith.constant 0 : index
    %c0_3 = arith.constant 0 : index
    %4 = vector.load %arg3[%c0_2, %c0_3] : memref<16x640xbf16, #tpu.memory_space<vmem>>, vector<16x640xbf16>
    %c0_4 = arith.constant 0 : index
    %c0_5 = arith.constant 0 : index
    %5 = vector.load %arg4[%c0_4, %c0_5] : memref<640x128xbf16, #tpu.memory_space<vmem>>, vector<640x128xbf16>
    %cst = arith.constant dense<0.000000e+00> : vector<16x128xf32>
    %6 = tpu.matmul %4, %5, %cst {dimension_numbers = #tpu.dot_dimension_numbers<[1], [0], [0], [1], [0, 0, 1, 1], [], []>} : vector<16x640xbf16>, vector<640x128xbf16>, vector<16x128xf32> -> vector<16x128xf32>
    %7 = arith.addf %3, %6 : vector<16x128xf32>
    %c0_6 = arith.constant 0 : index
    %c0_7 = arith.constant 0 : index
    %8 = vector.load %arg7[%c0_6, %c0_7] : memref<16x128xf32, #tpu.memory_space<vmem>>, vector<16x128xf32>
    tpu.vector_store %arg7[%c0_6, %c0_7], %7 {strides = array<i32>} : memref<16x128xf32, #tpu.memory_space<vmem>>, vector<16x128xf32>,
    %c0_i32_8 = arith.constant 0 : i32
    %9 = arith.cmpi eq, %arg2, %c0_i32_8 : i32
    %10 = arith.extui %9 : i1 to i32
    %c0_i32_9 = arith.constant 0 : i32
    %11 = arith.cmpi ne, %10, %c0_i32_9 : i32
    scf.if %11 {
      %c0_10 = arith.constant 0 : index
      %c0_11 = arith.constant 0 : index
      %12 = vector.load %arg7[%c0_10, %c0_11] : memref<16x128xf32, #tpu.memory_space<vmem>>, vector<16x128xf32>
      %c0_12 = arith.constant 0 : index
      %c0_13 = arith.constant 0 : index
      %13 = vector.load %arg5[%c0_12, %c0_13] : memref<1x128xf32, #tpu.memory_space<vmem>>, vector<1x128xf32>
      %14 = vector.broadcast %13 : vector<1x128xf32> to vector<16x128xf32>
      %15 = arith.addf %12, %14 : vector<16x128xf32>
      %cst_14 = arith.constant 0.000000e+00 : f32
      %16 = vector.broadcast %cst_14 : f32 to vector<16x128xf32>
      %17 = arith.maximumf %15, %16 : vector<16x128xf32>
      %18 = arith.truncf %17 : vector<16x128xf32> to vector<16x128xbf16>
      %c0_15 = arith.constant 0 : index
      %c0_16 = arith.constant 0 : index
      %19 = vector.load %arg6[%c0_15, %c0_16] : memref<16x128xbf16, #tpu.memory_space<vmem>>, vector<16x128xbf16>
      tpu.vector_store %arg6[%c0_15, %c0_16], %18 {strides = array<i32>} : memref<16x128xbf16, #tpu.memory_space<vmem>>, vector<16x128xbf16>,
    } else {
    }
    return
  }
  func.func @transform_0(%arg0: i32, %arg1: i32, %arg2: i32) -> (i32, i32) {
    %c0_i32 = arith.constant 0 : i32
    return %arg0, %arg2 : i32, i32
  }
  func.func @transform_1(%arg0: i32, %arg1: i32, %arg2: i32) -> (i32, i32) {
    %c0_i32 = arith.constant 0 : i32
    return %arg2, %arg1 : i32, i32
  }
  func.func @transform_2(%arg0: i32, %arg1: i32, %arg2: i32) -> (i32, i32) {
    %c0_i32 = arith.constant 0 : i32
    %c0_i32_0 = arith.constant 0 : i32
    return %c0_i32, %arg1 : i32, i32
  }
  func.func @transform_3(%arg0: i32, %arg1: i32, %arg2: i32) -> (i32, i32) {
    %c0_i32 = arith.constant 0 : i32
    return %arg0, %arg1 : i32, i32
  }
}

module attributes {stable_mosaic.version = 11 : i64} {
  func.func @_matmul_bias_kernel(%arg0: i32, %arg1: i32, %arg2: i32, %arg3: memref<16x128xbf16, #tpu.memory_space<vmem>>, %arg4: memref<128x128xbf16, #tpu.memory_space<vmem>>, %arg5: memref<1x128xf32, #tpu.memory_space<vmem>>, %arg6: memref<16x128xf32, #tpu.memory_space<vmem>>, %arg7: memref<16x128xf32, #tpu.memory_space<vmem>>) attributes {dimension_semantics = [#tpu.dimension_semantics<parallel>, #tpu.dimension_semantics<parallel>, #tpu.dimension_semantics<arbitrary>], iteration_bounds = array<i64: 1, 1, 1>, scalar_prefetch = 0 : i64, scratch_operands = 1 : i64, tpu.core_type = #tpu.core_type<tc>, window_params = [{transform_indices = @transform_0, window_bounds = array<i64: 16, 128>}, {transform_indices = @transform_1, window_bounds = array<i64: 128, 128>}, {transform_indices = @transform_2, window_bounds = array<i64: 1, 128>}, {transform_indices = @transform_3, window_bounds = array<i64: 16, 128>}]} {
    %c0_i32 = arith.constant 0 : i32
    %0 = arith.cmpi eq, %arg2, %c0_i32 : i32
    %1 = arith.extui %0 : i1 to i32
    %c0_i32_0 = arith.constant 0 : i32
    %2 = arith.cmpi ne, %1, %c0_i32_0 : i32
    scf.if %2 {
      %cst_10 = arith.constant 0.000000e+00 : f32
      %12 = vector.broadcast %cst_10 : f32 to vector<16x128xf32>
      %c0_11 = arith.constant 0 : index
      %c0_12 = arith.constant 0 : index
      %13 = vector.load %arg7[%c0_11, %c0_12] : memref<16x128xf32, #tpu.memory_space<vmem>>, vector<16x128xf32>
      tpu.vector_store %arg7[%c0_11, %c0_12], %12 {strides = array<i32>} : memref<16x128xf32, #tpu.memory_space<vmem>>, vector<16x128xf32>,
    } else {
    }
    %c0 = arith.constant 0 : index
    %c0_1 = arith.constant 0 : index
    %3 = vector.load %arg7[%c0, %c0_1] : memref<16x128xf32, #tpu.memory_space<vmem>>, vector<16x128xf32>
    %c0_2 = arith.constant 0 : index
    %c0_3 = arith.constant 0 : index
    %4 = vector.load %arg3[%c0_2, %c0_3] : memref<16x128xbf16, #tpu.memory_space<vmem>>, vector<16x128xbf16>
    %c0_4 = arith.constant 0 : index
    %c0_5 = arith.constant 0 : index
    %5 = vector.load %arg4[%c0_4, %c0_5] : memref<128x128xbf16, #tpu.memory_space<vmem>>, vector<128x128xbf16>
    %cst = arith.constant dense<0.000000e+00> : vector<16x128xf32>
    %6 = tpu.matmul %4, %5, %cst {dimension_numbers = #tpu.dot_dimension_numbers<[1], [0], [0], [1], [0, 0, 1, 1], [], []>} : vector<16x128xbf16>, vector<128x128xbf16>, vector<16x128xf32> -> vector<16x128xf32>
    %7 = arith.addf %3, %6 : vector<16x128xf32>
    %c0_6 = arith.constant 0 : index
    %c0_7 = arith.constant 0 : index
    %8 = vector.load %arg7[%c0_6, %c0_7] : memref<16x128xf32, #tpu.memory_space<vmem>>, vector<16x128xf32>
    tpu.vector_store %arg7[%c0_6, %c0_7], %7 {strides = array<i32>} : memref<16x128xf32, #tpu.memory_space<vmem>>, vector<16x128xf32>,
    %c0_i32_8 = arith.constant 0 : i32
    %9 = arith.cmpi eq, %arg2, %c0_i32_8 : i32
    %10 = arith.extui %9 : i1 to i32
    %c0_i32_9 = arith.constant 0 : i32
    %11 = arith.cmpi ne, %10, %c0_i32_9 : i32
    scf.if %11 {
      %c0_10 = arith.constant 0 : index
      %c0_11 = arith.constant 0 : index
      %12 = vector.load %arg7[%c0_10, %c0_11] : memref<16x128xf32, #tpu.memory_space<vmem>>, vector<16x128xf32>
      %c0_12 = arith.constant 0 : index
      %c0_13 = arith.constant 0 : index
      %13 = vector.load %arg5[%c0_12, %c0_13] : memref<1x128xf32, #tpu.memory_space<vmem>>, vector<1x128xf32>
      %14 = vector.broadcast %13 : vector<1x128xf32> to vector<16x128xf32>
      %15 = arith.addf %12, %14 : vector<16x128xf32>
      %c0_14 = arith.constant 0 : index
      %c0_15 = arith.constant 0 : index
      %16 = vector.load %arg6[%c0_14, %c0_15] : memref<16x128xf32, #tpu.memory_space<vmem>>, vector<16x128xf32>
      tpu.vector_store %arg6[%c0_14, %c0_15], %15 {strides = array<i32>} : memref<16x128xf32, #tpu.memory_space<vmem>>, vector<16x128xf32>,
    } else {
    }
    return
  }
  func.func @transform_0(%arg0: i32, %arg1: i32, %arg2: i32) -> (i32, i32) {
    %c0_i32 = arith.constant 0 : i32
    return %arg0, %arg2 : i32, i32
  }
  func.func @transform_1(%arg0: i32, %arg1: i32, %arg2: i32) -> (i32, i32) {
    %c0_i32 = arith.constant 0 : i32
    return %arg2, %arg1 : i32, i32
  }
  func.func @transform_2(%arg0: i32, %arg1: i32, %arg2: i32) -> (i32, i32) {
    %c0_i32 = arith.constant 0 : i32
    %c0_i32_0 = arith.constant 0 : i32
    return %c0_i32, %arg1 : i32, i32
  }
  func.func @transform_3(%arg0: i32, %arg1: i32, %arg2: i32) -> (i32, i32) {
    %c0_i32 = arith.constant 0 : i32
    return %arg0, %arg1 : i32, i32
  }
}

module attributes {stable_mosaic.version = 11 : i64} {
  func.func @_matmul_bias_kernel(%arg0: i32, %arg1: i32, %arg2: i32, %arg3: memref<16x128xbf16, #tpu.memory_space<vmem>>, %arg4: memref<128x128xbf16, #tpu.memory_space<vmem>>, %arg5: memref<1x128xf32, #tpu.memory_space<vmem>>, %arg6: memref<16x128xbf16, #tpu.memory_space<vmem>>, %arg7: memref<16x128xf32, #tpu.memory_space<vmem>>) attributes {dimension_semantics = [#tpu.dimension_semantics<parallel>, #tpu.dimension_semantics<parallel>, #tpu.dimension_semantics<arbitrary>], iteration_bounds = array<i64: 1, 1, 1>, scalar_prefetch = 0 : i64, scratch_operands = 1 : i64, tpu.core_type = #tpu.core_type<tc>, window_params = [{transform_indices = @transform_0, window_bounds = array<i64: 16, 128>}, {transform_indices = @transform_1, window_bounds = array<i64: 128, 128>}, {transform_indices = @transform_2, window_bounds = array<i64: 1, 128>}, {transform_indices = @transform_3, window_bounds = array<i64: 16, 128>}]} {
    %c0_i32 = arith.constant 0 : i32
    %0 = arith.cmpi eq, %arg2, %c0_i32 : i32
    %1 = arith.extui %0 : i1 to i32
    %c0_i32_0 = arith.constant 0 : i32
    %2 = arith.cmpi ne, %1, %c0_i32_0 : i32
    scf.if %2 {
      %cst_10 = arith.constant 0.000000e+00 : f32
      %12 = vector.broadcast %cst_10 : f32 to vector<16x128xf32>
      %c0_11 = arith.constant 0 : index
      %c0_12 = arith.constant 0 : index
      %13 = vector.load %arg7[%c0_11, %c0_12] : memref<16x128xf32, #tpu.memory_space<vmem>>, vector<16x128xf32>
      tpu.vector_store %arg7[%c0_11, %c0_12], %12 {strides = array<i32>} : memref<16x128xf32, #tpu.memory_space<vmem>>, vector<16x128xf32>,
    } else {
    }
    %c0 = arith.constant 0 : index
    %c0_1 = arith.constant 0 : index
    %3 = vector.load %arg7[%c0, %c0_1] : memref<16x128xf32, #tpu.memory_space<vmem>>, vector<16x128xf32>
    %c0_2 = arith.constant 0 : index
    %c0_3 = arith.constant 0 : index
    %4 = vector.load %arg3[%c0_2, %c0_3] : memref<16x128xbf16, #tpu.memory_space<vmem>>, vector<16x128xbf16>
    %c0_4 = arith.constant 0 : index
    %c0_5 = arith.constant 0 : index
    %5 = vector.load %arg4[%c0_4, %c0_5] : memref<128x128xbf16, #tpu.memory_space<vmem>>, vector<128x128xbf16>
    %cst = arith.constant dense<0.000000e+00> : vector<16x128xf32>
    %6 = tpu.matmul %4, %5, %cst {dimension_numbers = #tpu.dot_dimension_numbers<[1], [0], [0], [1], [0, 0, 1, 1], [], []>} : vector<16x128xbf16>, vector<128x128xbf16>, vector<16x128xf32> -> vector<16x128xf32>
    %7 = arith.addf %3, %6 : vector<16x128xf32>
    %c0_6 = arith.constant 0 : index
    %c0_7 = arith.constant 0 : index
    %8 = vector.load %arg7[%c0_6, %c0_7] : memref<16x128xf32, #tpu.memory_space<vmem>>, vector<16x128xf32>
    tpu.vector_store %arg7[%c0_6, %c0_7], %7 {strides = array<i32>} : memref<16x128xf32, #tpu.memory_space<vmem>>, vector<16x128xf32>,
    %c0_i32_8 = arith.constant 0 : i32
    %9 = arith.cmpi eq, %arg2, %c0_i32_8 : i32
    %10 = arith.extui %9 : i1 to i32
    %c0_i32_9 = arith.constant 0 : i32
    %11 = arith.cmpi ne, %10, %c0_i32_9 : i32
    scf.if %11 {
      %c0_10 = arith.constant 0 : index
      %c0_11 = arith.constant 0 : index
      %12 = vector.load %arg7[%c0_10, %c0_11] : memref<16x128xf32, #tpu.memory_space<vmem>>, vector<16x128xf32>
      %c0_12 = arith.constant 0 : index
      %c0_13 = arith.constant 0 : index
      %13 = vector.load %arg5[%c0_12, %c0_13] : memref<1x128xf32, #tpu.memory_space<vmem>>, vector<1x128xf32>
      %14 = vector.broadcast %13 : vector<1x128xf32> to vector<16x128xf32>
      %15 = arith.addf %12, %14 : vector<16x128xf32>
      %cst_14 = arith.constant 0.000000e+00 : f32
      %16 = vector.broadcast %cst_14 : f32 to vector<16x128xf32>
      %17 = arith.maximumf %15, %16 : vector<16x128xf32>
      %18 = arith.truncf %17 : vector<16x128xf32> to vector<16x128xbf16>
      %c0_15 = arith.constant 0 : index
      %c0_16 = arith.constant 0 : index
      %19 = vector.load %arg6[%c0_15, %c0_16] : memref<16x128xbf16, #tpu.memory_space<vmem>>, vector<16x128xbf16>
      tpu.vector_store %arg6[%c0_15, %c0_16], %18 {strides = array<i32>} : memref<16x128xbf16, #tpu.memory_space<vmem>>, vector<16x128xbf16>,
    } else {
    }
    return
  }
  func.func @transform_0(%arg0: i32, %arg1: i32, %arg2: i32) -> (i32, i32) {
    %c0_i32 = arith.constant 0 : i32
    return %arg0, %arg2 : i32, i32
  }
  func.func @transform_1(%arg0: i32, %arg1: i32, %arg2: i32) -> (i32, i32) {
    %c0_i32 = arith.constant 0 : i32
    return %arg2, %arg1 : i32, i32
  }
  func.func @transform_2(%arg0: i32, %arg1: i32, %arg2: i32) -> (i32, i32) {
    %c0_i32 = arith.constant 0 : i32
    %c0_i32_0 = arith.constant 0 : i32
    return %c0_i32, %arg1 : i32, i32
  }
  func.func @transform_3(%arg0: i32, %arg1: i32, %arg2: i32) -> (i32, i32) {
    %c0_i32 = arith.constant 0 : i32
    return %arg0, %arg1 : i32, i32
  }
}

module attributes {stable_mosaic.version = 11 : i64} {
  func.func @_matmul_bias_kernel(%arg0: i32, %arg1: i32, %arg2: i32, %arg3: memref<16x128xbf16, #tpu.memory_space<vmem>>, %arg4: memref<128x640xbf16, #tpu.memory_space<vmem>>, %arg5: memref<1x640xf32, #tpu.memory_space<vmem>>, %arg6: memref<16x640xf32, #tpu.memory_space<vmem>>, %arg7: memref<16x640xf32, #tpu.memory_space<vmem>>) attributes {dimension_semantics = [#tpu.dimension_semantics<parallel>, #tpu.dimension_semantics<parallel>, #tpu.dimension_semantics<arbitrary>], iteration_bounds = array<i64: 1, 1, 1>, scalar_prefetch = 0 : i64, scratch_operands = 1 : i64, tpu.core_type = #tpu.core_type<tc>, window_params = [{transform_indices = @transform_0, window_bounds = array<i64: 16, 128>}, {transform_indices = @transform_1, window_bounds = array<i64: 128, 640>}, {transform_indices = @transform_2, window_bounds = array<i64: 1, 640>}, {transform_indices = @transform_3, window_bounds = array<i64: 16, 640>}]} {
    %c0_i32 = arith.constant 0 : i32
    %0 = arith.cmpi eq, %arg2, %c0_i32 : i32
    %1 = arith.extui %0 : i1 to i32
    %c0_i32_0 = arith.constant 0 : i32
    %2 = arith.cmpi ne, %1, %c0_i32_0 : i32
    scf.if %2 {
      %cst_10 = arith.constant 0.000000e+00 : f32
      %12 = vector.broadcast %cst_10 : f32 to vector<16x640xf32>
      %c0_11 = arith.constant 0 : index
      %c0_12 = arith.constant 0 : index
      %13 = vector.load %arg7[%c0_11, %c0_12] : memref<16x640xf32, #tpu.memory_space<vmem>>, vector<16x640xf32>
      tpu.vector_store %arg7[%c0_11, %c0_12], %12 {strides = array<i32>} : memref<16x640xf32, #tpu.memory_space<vmem>>, vector<16x640xf32>,
    } else {
    }
    %c0 = arith.constant 0 : index
    %c0_1 = arith.constant 0 : index
    %3 = vector.load %arg7[%c0, %c0_1] : memref<16x640xf32, #tpu.memory_space<vmem>>, vector<16x640xf32>
    %c0_2 = arith.constant 0 : index
    %c0_3 = arith.constant 0 : index
    %4 = vector.load %arg3[%c0_2, %c0_3] : memref<16x128xbf16, #tpu.memory_space<vmem>>, vector<16x128xbf16>
    %c0_4 = arith.constant 0 : index
    %c0_5 = arith.constant 0 : index
    %5 = vector.load %arg4[%c0_4, %c0_5] : memref<128x640xbf16, #tpu.memory_space<vmem>>, vector<128x640xbf16>
    %cst = arith.constant dense<0.000000e+00> : vector<16x640xf32>
    %6 = tpu.matmul %4, %5, %cst {dimension_numbers = #tpu.dot_dimension_numbers<[1], [0], [0], [1], [0, 0, 1, 1], [], []>} : vector<16x128xbf16>, vector<128x640xbf16>, vector<16x640xf32> -> vector<16x640xf32>
    %7 = arith.addf %3, %6 : vector<16x640xf32>
    %c0_6 = arith.constant 0 : index
    %c0_7 = arith.constant 0 : index
    %8 = vector.load %arg7[%c0_6, %c0_7] : memref<16x640xf32, #tpu.memory_space<vmem>>, vector<16x640xf32>
    tpu.vector_store %arg7[%c0_6, %c0_7], %7 {strides = array<i32>} : memref<16x640xf32, #tpu.memory_space<vmem>>, vector<16x640xf32>,
    %c0_i32_8 = arith.constant 0 : i32
    %9 = arith.cmpi eq, %arg2, %c0_i32_8 : i32
    %10 = arith.extui %9 : i1 to i32
    %c0_i32_9 = arith.constant 0 : i32
    %11 = arith.cmpi ne, %10, %c0_i32_9 : i32
    scf.if %11 {
      %c0_10 = arith.constant 0 : index
      %c0_11 = arith.constant 0 : index
      %12 = vector.load %arg7[%c0_10, %c0_11] : memref<16x640xf32, #tpu.memory_space<vmem>>, vector<16x640xf32>
      %c0_12 = arith.constant 0 : index
      %c0_13 = arith.constant 0 : index
      %13 = vector.load %arg5[%c0_12, %c0_13] : memref<1x640xf32, #tpu.memory_space<vmem>>, vector<1x640xf32>
      %14 = vector.broadcast %13 : vector<1x640xf32> to vector<16x640xf32>
      %15 = arith.addf %12, %14 : vector<16x640xf32>
      %c0_14 = arith.constant 0 : index
      %c0_15 = arith.constant 0 : index
      %16 = vector.load %arg6[%c0_14, %c0_15] : memref<16x640xf32, #tpu.memory_space<vmem>>, vector<16x640xf32>
      tpu.vector_store %arg6[%c0_14, %c0_15], %15 {strides = array<i32>} : memref<16x640xf32, #tpu.memory_space<vmem>>, vector<16x640xf32>,
    } else {
    }
    return
  }
  func.func @transform_0(%arg0: i32, %arg1: i32, %arg2: i32) -> (i32, i32) {
    %c0_i32 = arith.constant 0 : i32
    return %arg0, %arg2 : i32, i32
  }
  func.func @transform_1(%arg0: i32, %arg1: i32, %arg2: i32) -> (i32, i32) {
    %c0_i32 = arith.constant 0 : i32
    return %arg2, %arg1 : i32, i32
  }
  func.func @transform_2(%arg0: i32, %arg1: i32, %arg2: i32) -> (i32, i32) {
    %c0_i32 = arith.constant 0 : i32
    %c0_i32_0 = arith.constant 0 : i32
    return %c0_i32, %arg1 : i32, i32
  }
  func.func @transform_3(%arg0: i32, %arg1: i32, %arg2: i32) -> (i32, i32) {
    %c0_i32 = arith.constant 0 : i32
    return %arg0, %arg1 : i32, i32
  }
}

module attributes {stable_mosaic.version = 11 : i64} {
  func.func @_matmul_bias_kernel(%arg0: i32, %arg1: i32, %arg2: i32, %arg3: memref<32x128xbf16, #tpu.memory_space<vmem>>, %arg4: memref<128x896xbf16, #tpu.memory_space<vmem>>, %arg5: memref<1x896xf32, #tpu.memory_space<vmem>>, %arg6: memref<32x896xf32, #tpu.memory_space<vmem>>, %arg7: memref<32x896xf32, #tpu.memory_space<vmem>>) attributes {dimension_semantics = [#tpu.dimension_semantics<parallel>, #tpu.dimension_semantics<parallel>, #tpu.dimension_semantics<arbitrary>], iteration_bounds = array<i64: 1, 1, 1>, scalar_prefetch = 0 : i64, scratch_operands = 1 : i64, tpu.core_type = #tpu.core_type<tc>, window_params = [{transform_indices = @transform_0, window_bounds = array<i64: 32, 128>}, {transform_indices = @transform_1, window_bounds = array<i64: 128, 896>}, {transform_indices = @transform_2, window_bounds = array<i64: 1, 896>}, {transform_indices = @transform_3, window_bounds = array<i64: 32, 896>}]} {
    %c0_i32 = arith.constant 0 : i32
    %0 = arith.cmpi eq, %arg2, %c0_i32 : i32
    %1 = arith.extui %0 : i1 to i32
    %c0_i32_0 = arith.constant 0 : i32
    %2 = arith.cmpi ne, %1, %c0_i32_0 : i32
    scf.if %2 {
      %cst_10 = arith.constant 0.000000e+00 : f32
      %12 = vector.broadcast %cst_10 : f32 to vector<32x896xf32>
      %c0_11 = arith.constant 0 : index
      %c0_12 = arith.constant 0 : index
      %13 = vector.load %arg7[%c0_11, %c0_12] : memref<32x896xf32, #tpu.memory_space<vmem>>, vector<32x896xf32>
      tpu.vector_store %arg7[%c0_11, %c0_12], %12 {strides = array<i32>} : memref<32x896xf32, #tpu.memory_space<vmem>>, vector<32x896xf32>,
    } else {
    }
    %c0 = arith.constant 0 : index
    %c0_1 = arith.constant 0 : index
    %3 = vector.load %arg7[%c0, %c0_1] : memref<32x896xf32, #tpu.memory_space<vmem>>, vector<32x896xf32>
    %c0_2 = arith.constant 0 : index
    %c0_3 = arith.constant 0 : index
    %4 = vector.load %arg3[%c0_2, %c0_3] : memref<32x128xbf16, #tpu.memory_space<vmem>>, vector<32x128xbf16>
    %c0_4 = arith.constant 0 : index
    %c0_5 = arith.constant 0 : index
    %5 = vector.load %arg4[%c0_4, %c0_5] : memref<128x896xbf16, #tpu.memory_space<vmem>>, vector<128x896xbf16>
    %cst = arith.constant dense<0.000000e+00> : vector<32x896xf32>
    %6 = tpu.matmul %4, %5, %cst {dimension_numbers = #tpu.dot_dimension_numbers<[1], [0], [0], [1], [0, 0, 1, 1], [], []>} : vector<32x128xbf16>, vector<128x896xbf16>, vector<32x896xf32> -> vector<32x896xf32>
    %7 = arith.addf %3, %6 : vector<32x896xf32>
    %c0_6 = arith.constant 0 : index
    %c0_7 = arith.constant 0 : index
    %8 = vector.load %arg7[%c0_6, %c0_7] : memref<32x896xf32, #tpu.memory_space<vmem>>, vector<32x896xf32>
    tpu.vector_store %arg7[%c0_6, %c0_7], %7 {strides = array<i32>} : memref<32x896xf32, #tpu.memory_space<vmem>>, vector<32x896xf32>,
    %c0_i32_8 = arith.constant 0 : i32
    %9 = arith.cmpi eq, %arg2, %c0_i32_8 : i32
    %10 = arith.extui %9 : i1 to i32
    %c0_i32_9 = arith.constant 0 : i32
    %11 = arith.cmpi ne, %10, %c0_i32_9 : i32
    scf.if %11 {
      %c0_10 = arith.constant 0 : index
      %c0_11 = arith.constant 0 : index
      %12 = vector.load %arg7[%c0_10, %c0_11] : memref<32x896xf32, #tpu.memory_space<vmem>>, vector<32x896xf32>
      %c0_12 = arith.constant 0 : index
      %c0_13 = arith.constant 0 : index
      %13 = vector.load %arg5[%c0_12, %c0_13] : memref<1x896xf32, #tpu.memory_space<vmem>>, vector<1x896xf32>
      %14 = vector.broadcast %13 : vector<1x896xf32> to vector<32x896xf32>
      %15 = arith.addf %12, %14 : vector<32x896xf32>
      %c0_14 = arith.constant 0 : index
      %c0_15 = arith.constant 0 : index
      %16 = vector.load %arg6[%c0_14, %c0_15] : memref<32x896xf32, #tpu.memory_space<vmem>>, vector<32x896xf32>
      tpu.vector_store %arg6[%c0_14, %c0_15], %15 {strides = array<i32>} : memref<32x896xf32, #tpu.memory_space<vmem>>, vector<32x896xf32>,
    } else {
    }
    return
  }
  func.func @transform_0(%arg0: i32, %arg1: i32, %arg2: i32) -> (i32, i32) {
    %c0_i32 = arith.constant 0 : i32
    return %arg0, %arg2 : i32, i32
  }
  func.func @transform_1(%arg0: i32, %arg1: i32, %arg2: i32) -> (i32, i32) {
    %c0_i32 = arith.constant 0 : i32
    return %arg2, %arg1 : i32, i32
  }
  func.func @transform_2(%arg0: i32, %arg1: i32, %arg2: i32) -> (i32, i32) {
    %c0_i32 = arith.constant 0 : i32
    %c0_i32_0 = arith.constant 0 : i32
    return %c0_i32, %arg1 : i32, i32
  }
  func.func @transform_3(%arg0: i32, %arg1: i32, %arg2: i32) -> (i32, i32) {
    %c0_i32 = arith.constant 0 : i32
    return %arg0, %arg1 : i32, i32
  }
}

module attributes {stable_mosaic.version = 11 : i64} {
  func.func @_matmul_bias_kernel(%arg0: i32, %arg1: i32, %arg2: i32, %arg3: memref<128x128xbf16, #tpu.memory_space<vmem>>, %arg4: memref<128x128xbf16, #tpu.memory_space<vmem>>, %arg5: memref<1x128xf32, #tpu.memory_space<vmem>>, %arg6: memref<128x128xf32, #tpu.memory_space<vmem>>, %arg7: memref<128x128xf32, #tpu.memory_space<vmem>>) attributes {dimension_semantics = [#tpu.dimension_semantics<parallel>, #tpu.dimension_semantics<parallel>, #tpu.dimension_semantics<arbitrary>], iteration_bounds = array<i64: 1, 1, 1>, scalar_prefetch = 0 : i64, scratch_operands = 1 : i64, tpu.core_type = #tpu.core_type<tc>, window_params = [{transform_indices = @transform_0, window_bounds = array<i64: 128, 128>}, {transform_indices = @transform_1, window_bounds = array<i64: 128, 128>}, {transform_indices = @transform_2, window_bounds = array<i64: 1, 128>}, {transform_indices = @transform_3, window_bounds = array<i64: 128, 128>}]} {
    %c0_i32 = arith.constant 0 : i32
    %0 = arith.cmpi eq, %arg2, %c0_i32 : i32
    %1 = arith.extui %0 : i1 to i32
    %c0_i32_0 = arith.constant 0 : i32
    %2 = arith.cmpi ne, %1, %c0_i32_0 : i32
    scf.if %2 {
      %cst_10 = arith.constant 0.000000e+00 : f32
      %12 = vector.broadcast %cst_10 : f32 to vector<128x128xf32>
      %c0_11 = arith.constant 0 : index
      %c0_12 = arith.constant 0 : index
      %13 = vector.load %arg7[%c0_11, %c0_12] : memref<128x128xf32, #tpu.memory_space<vmem>>, vector<128x128xf32>
      tpu.vector_store %arg7[%c0_11, %c0_12], %12 {strides = array<i32>} : memref<128x128xf32, #tpu.memory_space<vmem>>, vector<128x128xf32>,
    } else {
    }
    %c0 = arith.constant 0 : index
    %c0_1 = arith.constant 0 : index
    %3 = vector.load %arg7[%c0, %c0_1] : memref<128x128xf32, #tpu.memory_space<vmem>>, vector<128x128xf32>
    %c0_2 = arith.constant 0 : index
    %c0_3 = arith.constant 0 : index
    %4 = vector.load %arg3[%c0_2, %c0_3] : memref<128x128xbf16, #tpu.memory_space<vmem>>, vector<128x128xbf16>
    %c0_4 = arith.constant 0 : index
    %c0_5 = arith.constant 0 : index
    %5 = vector.load %arg4[%c0_4, %c0_5] : memref<128x128xbf16, #tpu.memory_space<vmem>>, vector<128x128xbf16>
    %cst = arith.constant dense<0.000000e+00> : vector<128x128xf32>
    %6 = tpu.matmul %4, %5, %cst {dimension_numbers = #tpu.dot_dimension_numbers<[1], [0], [0], [1], [0, 0, 1, 1], [], []>} : vector<128x128xbf16>, vector<128x128xbf16>, vector<128x128xf32> -> vector<128x128xf32>
    %7 = arith.addf %3, %6 : vector<128x128xf32>
    %c0_6 = arith.constant 0 : index
    %c0_7 = arith.constant 0 : index
    %8 = vector.load %arg7[%c0_6, %c0_7] : memref<128x128xf32, #tpu.memory_space<vmem>>, vector<128x128xf32>
    tpu.vector_store %arg7[%c0_6, %c0_7], %7 {strides = array<i32>} : memref<128x128xf32, #tpu.memory_space<vmem>>, vector<128x128xf32>,
    %c0_i32_8 = arith.constant 0 : i32
    %9 = arith.cmpi eq, %arg2, %c0_i32_8 : i32
    %10 = arith.extui %9 : i1 to i32
    %c0_i32_9 = arith.constant 0 : i32
    %11 = arith.cmpi ne, %10, %c0_i32_9 : i32
    scf.if %11 {
      %c0_10 = arith.constant 0 : index
      %c0_11 = arith.constant 0 : index
      %12 = vector.load %arg7[%c0_10, %c0_11] : memref<128x128xf32, #tpu.memory_space<vmem>>, vector<128x128xf32>
      %c0_12 = arith.constant 0 : index
      %c0_13 = arith.constant 0 : index
      %13 = vector.load %arg5[%c0_12, %c0_13] : memref<1x128xf32, #tpu.memory_space<vmem>>, vector<1x128xf32>
      %14 = vector.broadcast %13 : vector<1x128xf32> to vector<128x128xf32>
      %15 = arith.addf %12, %14 : vector<128x128xf32>
      %c0_14 = arith.constant 0 : index
      %c0_15 = arith.constant 0 : index
      %16 = vector.load %arg6[%c0_14, %c0_15] : memref<128x128xf32, #tpu.memory_space<vmem>>, vector<128x128xf32>
      tpu.vector_store %arg6[%c0_14, %c0_15], %15 {strides = array<i32>} : memref<128x128xf32, #tpu.memory_space<vmem>>, vector<128x128xf32>,
    } else {
    }
    return
  }
  func.func @transform_0(%arg0: i32, %arg1: i32, %arg2: i32) -> (i32, i32) {
    %c0_i32 = arith.constant 0 : i32
    return %arg0, %arg2 : i32, i32
  }
  func.func @transform_1(%arg0: i32, %arg1: i32, %arg2: i32) -> (i32, i32) {
    %c0_i32 = arith.constant 0 : i32
    return %arg2, %arg1 : i32, i32
  }
  func.func @transform_2(%arg0: i32, %arg1: i32, %arg2: i32) -> (i32, i32) {
    %c0_i32 = arith.constant 0 : i32
    %c0_i32_0 = arith.constant 0 : i32
    return %c0_i32, %arg1 : i32, i32
  }
  func.func @transform_3(%arg0: i32, %arg1: i32, %arg2: i32) -> (i32, i32) {
    %c0_i32 = arith.constant 0 : i32
    return %arg0, %arg1 : i32, i32
  }
}

</mosaic_0001>

<llo_original>
// kernel: dekm_ae_forward.8
$region0: #{dekm_ae_forward.8}
  #allocation0 [shape = 'u32[]', space=smem, size = 0x4, offset = 0x4, fixed_abs, tag = 'smem constant byte address 0x4 - core index']
  #allocation1 [shape = 'u32[144,128]{1,0:T(1,128)}', space=vmem, size = 0x12000, scoped, tag = 'internal scratch']
  #allocation2 [shape = 'f32[128,128]{1,0:T(8,128)}', space=vmem, size = 0x10000, scoped, tag = 'scratch operand']
  %s0 = inlined_call_operand.vmem [shape: bf16[128,128], index: 0, kind: input, shape index: {}]
  %s1 = inlined_call_operand.vmem [shape: bf16[128,128], index: 1, kind: input, shape index: {}]
  %s2 = inlined_call_operand.vmem [shape: f32[1,128], index: 2, kind: input, shape index: {}]
  %s3 = inlined_call_operand.vmem [shape: bf16[128,128], index: 3, kind: output, shape index: {}]
  %s4 = sld [smem:[#allocation0]]
  $region30: #{dekm_ae_forward.8} parent=0
    _
  %s6 = ssub.s32 1, %s4
  %s7 = scalar_select 0, %s6, %s4
  // Predicated region
  $region2: #{dekm_ae_forward.8} parent=0 // pred_check
    _
  $region3: #{dekm_ae_forward.8} parent=0 // pred_check_branch
    %9 = sbr.rel (0) target = $region5
  $region4: #{dekm_ae_forward.8} parent=0 // pred_region
    _
  $region5: #{dekm_ae_forward.8} parent=0 // pred_fallthru
    _
  // Predicated region
  $region6: #{dekm_ae_forward.8} parent=0 // pred_check
    _
  $region7: #{dekm_ae_forward.8} parent=0 // pred_check_branch
    %11 = sbr.rel (0) target = $region9
  $region8: #{dekm_ae_forward.8} parent=0 // pred_region
    _
  $region9: #{dekm_ae_forward.8} parent=0 // pred_fallthru
    _
  // Predicated region
  $region10: #{dekm_ae_forward.8} parent=0 // pred_check
    _
  $region11: #{dekm_ae_forward.8} parent=0 // pred_check_branch
    %13 = sbr.rel (0) target = $region13
  $region12: #{dekm_ae_forward.8} parent=0 // pred_region
    _
  $region13: #{dekm_ae_forward.8} parent=0 // pred_fallthru
    _
  %p15 = scmp.eq.s32.totalorder 0, 0
  // Predicated region
  $region14: #{dekm_ae_forward.8} parent=0 // pred_check
    %p16 = pneg %p15
  $region15: #{dekm_ae_forward.8} parent=0 // pred_check_branch
    %18 = sbr.rel (%p16) target = $region17
  $region16: #{dekm_ae_forward.8} parent=0 // pred_region
    %19 = vst [vmem:[#allocation2] sm:$0xff] 0.0
    %20 = vst [vmem:[#allocation2 + $0x8] sm:$0xff] 0.0
    %21 = vst [vmem:[#allocation2 + $0x10] sm:$0xff] 0.0
    %22 = vst [vmem:[#allocation2 + $0x18] sm:$0xff] 0.0
    %23 = vst [vmem:[#allocation2 + $0x20] sm:$0xff] 0.0
    %24 = vst [vmem:[#allocation2 + $0x28] sm:$0xff] 0.0
    %25 = vst [vmem:[#allocation2 + $0x30] sm:$0xff] 0.0
    %26 = vst [vmem:[#allocation2 + $0x38] sm:$0xff] 0.0
    %27 = vst [vmem:[#allocation2 + $0x40] sm:$0xff] 0.0
    %28 = vst [vmem:[#allocation2 + $0x48] sm:$0xff] 0.0
    %29 = vst [vmem:[#allocation2 + $0x50] sm:$0xff] 0.0
    %30 = vst [vmem:[#allocation2 + $0x58] sm:$0xff] 0.0
    %31 = vst [vmem:[#allocation2 + $0x60] sm:$0xff] 0.0
    %32 = vst [vmem:[#allocation2 + $0x68] sm:$0xff] 0.0
    %33 = vst [vmem:[#allocation2 + $0x70] sm:$0xff] 0.0
    %34 = vst [vmem:[#allocation2 + $0x78] sm:$0xff] 0.0
  $region17: #{dekm_ae_forward.8} parent=0 // pred_fallthru
    _
  %v35 = vld [vmem:[#allocation2] sm:$0xff]
  %v36 = vld [vmem:[#allocation2 + $0x8] sm:$0xff]
  %v37 = vld [vmem:[#allocation2 + $0x10] sm:$0xff]
  %v38 = vld [vmem:[#allocation2 + $0x18] sm:$0xff]
  %v39 = vld [vmem:[#allocation2 + $0x20] sm:$0xff]
  %v40 = vld [vmem:[#allocation2 + $0x28] sm:$0xff]
  %v41 = vld [vmem:[#allocation2 + $0x30] sm:$0xff]
  %v42 = vld [vmem:[#allocation2 + $0x38] sm:$0xff]
  %v43 = vld [vmem:[#allocation2 + $0x40] sm:$0xff]
  %v44 = vld [vmem:[#allocation2 + $0x48] sm:$0xff]
  %v45 = vld [vmem:[#allocation2 + $0x50] sm:$0xff]
  %v46 = vld [vmem:[#allocation2 + $0x58] sm:$0xff]
  %v47 = vld [vmem:[#allocation2 + $0x60] sm:$0xff]
  %v48 = vld [vmem:[#allocation2 + $0x68] sm:$0xff]
  %v49 = vld [vmem:[#allocation2 + $0x70] sm:$0xff]
  %v50 = vld [vmem:[#allocation2 + $0x78] sm:$0xff]
  %v51 = vld [vmem:[%s0] sm:$0xf]
  %v52 = vld [vmem:[%s0 + $0x4] sm:$0xf]
  %v53 = vld [vmem:[%s0 + $0x8] sm:$0xf]
  %v54 = vld [vmem:[%s0 + $0xc] sm:$0xf]
  %v55 = vld [vmem:[%s0 + $0x10] sm:$0xf]
  %v56 = vld [vmem:[%s0 + $0x14] sm:$0xf]
  %v57 = vld [vmem:[%s0 + $0x18] sm:$0xf]
  %v58 = vld [vmem:[%s0 + $0x1c] sm:$0xf]
  %v59 = vld [vmem:[%s0 + $0x20] sm:$0xf]
  %v60 = vld [vmem:[%s0 + $0x24] sm:$0xf]
  %v61 = vld [vmem:[%s0 + $0x28] sm:$0xf]
  %v62 = vld [vmem:[%s0 + $0x2c] sm:$0xf]
  %v63 = vld [vmem:[%s0 + $0x30] sm:$0xf]
  %v64 = vld [vmem:[%s0 + $0x34] sm:$0xf]
  %v65 = vld [vmem:[%s0 + $0x38] sm:$0xf]
  %v66 = vld [vmem:[%s0 + $0x3c] sm:$0xf]
  %v67 = vld [vmem:[%s1] sm:$0xf]
  %v68 = vld [vmem:[%s1 + $0x4] sm:$0xf]
  %v69 = vld [vmem:[%s1 + $0x8] sm:$0xf]
  %v70 = vld [vmem:[%s1 + $0xc] sm:$0xf]
  %v71 = vld [vmem:[%s1 + $0x10] sm:$0xf]
  %v72 = vld [vmem:[%s1 + $0x14] sm:$0xf]
  %v73 = vld [vmem:[%s1 + $0x18] sm:$0xf]
  %v74 = vld [vmem:[%s1 + $0x1c] sm:$0xf]
  %v75 = vld [vmem:[%s1 + $0x20] sm:$0xf]
  %v76 = vld [vmem:[%s1 + $0x24] sm:$0xf]
  %v77 = vld [vmem:[%s1 + $0x28] sm:$0xf]
  %v78 = vld [vmem:[%s1 + $0x2c] sm:$0xf]
  %v79 = vld [vmem:[%s1 + $0x30] sm:$0xf]
  %v80 = vld [vmem:[%s1 + $0x34] sm:$0xf]
  %v81 = vld [vmem:[%s1 + $0x38] sm:$0xf]
  %v82 = vld [vmem:[%s1 + $0x3c] sm:$0xf]
  %v99 = vunpack.c.l.b16 %v51
  %v100 = vunpack.c.l.b16 %v52
  %v101 = vunpack.c.l.b16 %v53
  %v102 = vunpack.c.l.b16 %v54
  %v103 = vunpack.c.l.b16 %v55
  %v104 = vunpack.c.l.b16 %v56
  %v105 = vunpack.c.l.b16 %v57
  %v106 = vunpack.c.l.b16 %v58
  %v107 = vunpack.c.l.b16 %v59
  %v108 = vunpack.c.l.b16 %v60
  %v109 = vunpack.c.l.b16 %v61
  %v110 = vunpack.c.l.b16 %v62
  %v111 = vunpack.c.l.b16 %v63
  %v112 = vunpack.c.l.b16 %v64
  %v113 = vunpack.c.l.b16 %v65
  %v114 = vunpack.c.l.b16 %v66
  %v115 = vpack.c.b16 %v100, %v99
  %v116 = vpack.c.b16 %v102, %v101
  %v117 = vpack.c.b16 %v104, %v103
  %v118 = vpack.c.b16 %v106, %v105
  %v119 = vpack.c.b16 %v108, %v107
  %v120 = vpack.c.b16 %v110, %v109
  %v121 = vpack.c.b16 %v112, %v111
  %v122 = vpack.c.b16 %v114, %v113
  %v147 = vunpack.c.l.b16 %v67
  %v148 = vunpack.c.l.b16 %v68
  %v149 = vunpack.c.l.b16 %v69
  %v150 = vunpack.c.l.b16 %v70
  %v151 = vunpack.c.l.b16 %v71
  %v152 = vunpack.c.l.b16 %v72
  %v153 = vunpack.c.l.b16 %v73
  %v154 = vunpack.c.l.b16 %v74
  %v155 = vunpack.c.l.b16 %v75
  %v156 = vunpack.c.l.b16 %v76
  %v157 = vunpack.c.l.b16 %v77
  %v158 = vunpack.c.l.b16 %v78
  %v159 = vunpack.c.l.b16 %v79
  %v160 = vunpack.c.l.b16 %v80
  %v161 = vunpack.c.l.b16 %v81
  %v162 = vunpack.c.l.b16 %v82
  %v163 = vpack.c.b16 %v148, %v147
  %v164 = vpack.c.b16 %v150, %v149
  %v165 = vpack.c.b16 %v152, %v151
  %v166 = vpack.c.b16 %v154, %v153
  %v167 = vpack.c.b16 %v156, %v155
  %v168 = vpack.c.b16 %v158, %v157
  %v169 = vpack.c.b16 %v160, %v159
  %v170 = vpack.c.b16 %v162, %v161
  %179 = vmatprep.subr.bf16.mxu0 0
  %180 = vmatpush1.bf16.msra.mxu0 %v170
  %181 = vmatprep.subr.bf16.mxu0 0
  %182 = vmatpush1.bf16.msra.mxu0 %v169
  %183 = vmatprep.subr.bf16.mxu0 0
  %184 = vmatpush1.bf16.msra.mxu0 %v168
  %185 = vmatprep.subr.bf16.mxu0 0
  %186 = vmatpush1.bf16.msra.mxu0 %v167
  %187 = vmatprep.subr.bf16.mxu0 0
  %188 = vmatpush1.bf16.msra.mxu0 %v166
  %189 = vmatprep.subr.bf16.mxu0 0
  %190 = vmatpush1.bf16.msra.mxu0 %v165
  %191 = vmatprep.subr.bf16.mxu0 0
  %192 = vmatpush1.bf16.msra.mxu0 %v164
  %193 = vmatprep.subr.bf16.mxu0 0
  %194 = vmatpush1.bf16.msra.mxu0 %v163
  %195 = vmatprep.subr.bf16.mxu0 0
  %196 = vmatpush2.bf16.msra.mxu0 0
  %197 = vmatprep.subr.bf16.mxu0 0
  %198 = vmatpush2.bf16.msra.mxu0 0
  %199 = vmatprep.subr.bf16.mxu0 0
  %200 = vmatpush2.bf16.msra.mxu0 0
  %201 = vmatprep.subr.bf16.mxu0 0
  %202 = vmatpush2.bf16.msra.mxu0 0
  %203 = vmatprep.subr.bf16.mxu0 0
  %204 = vmatpush2.bf16.msra.mxu0 0
  %205 = vmatprep.subr.bf16.mxu0 0
  %206 = vmatpush2.bf16.msra.mxu0 0
  %207 = vmatprep.subr.bf16.mxu0 0
  %208 = vmatpush2.bf16.msra.mxu0 0
  %209 = vmatprep.subr.bf16.mxu0 0
  %210 = vmatpush2.bf16.msra.mxu0 0
  %211 = vmatprep.mubr.bf16.mxu0 0
  %212 = vmatmul.mubr.bf16.gmra.mxu0 %v115
  %v213 = vpop.f32.mrf.mxu0
  %v214 = vadd.f32 0.0, %v213
  %v215 = vpop.f32.mrf.mxu0
  %v216 = vpop.f32.mrf.mxu0
  %v217 = vadd.f32 0.0, %v216
  %v218 = vpop.f32.mrf.mxu0
  %219 = vmatprep.mubr.bf16.mxu0 0
  %220 = vmatmul.mubr.bf16.gmra.mxu0 %v116
  %v221 = vpop.f32.mrf.mxu0
  %v222 = vadd.f32 0.0, %v221
  %v223 = vpop.f32.mrf.mxu0
  %v224 = vpop.f32.mrf.mxu0
  %v225 = vadd.f32 0.0, %v224
  %v226 = vpop.f32.mrf.mxu0
  %227 = vmatprep.mubr.bf16.mxu0 0
  %228 = vmatmul.mubr.bf16.gmra.mxu0 %v117
  %v229 = vpop.f32.mrf.mxu0
  %v230 = vadd.f32 0.0, %v229
  %v231 = vpop.f32.mrf.mxu0
  %v232 = vpop.f32.mrf.mxu0
  %v233 = vadd.f32 0.0, %v232
  %v234 = vpop.f32.mrf.mxu0
  %235 = vmatprep.mubr.bf16.mxu0 0
  %236 = vmatmul.mubr.bf16.gmra.mxu0 %v118
  %v237 = vpop.f32.mrf.mxu0
  %v238 = vadd.f32 0.0, %v237
  %v239 = vpop.f32.mrf.mxu0
  %v240 = vpop.f32.mrf.mxu0
  %v241 = vadd.f32 0.0, %v240
  %v242 = vpop.f32.mrf.mxu0
  %243 = vmatprep.mubr.bf16.mxu0 0
  %244 = vmatmul.mubr.bf16.gmra.mxu0 %v119
  %v245 = vpop.f32.mrf.mxu0
  %v246 = vadd.f32 0.0, %v245
  %v247 = vpop.f32.mrf.mxu0
  %v248 = vpop.f32.mrf.mxu0
  %v249 = vadd.f32 0.0, %v248
  %v250 = vpop.f32.mrf.mxu0
  %251 = vmatprep.mubr.bf16.mxu0 0
  %252 = vmatmul.mubr.bf16.gmra.mxu0 %v120
  %v253 = vpop.f32.mrf.mxu0
  %v254 = vadd.f32 0.0, %v253
  %v255 = vpop.f32.mrf.mxu0
  %v256 = vpop.f32.mrf.mxu0
  %v257 = vadd.f32 0.0, %v256
  %v258 = vpop.f32.mrf.mxu0
  %259 = vmatprep.mubr.bf16.mxu0 0
  %260 = vmatmul.mubr.bf16.gmra.mxu0 %v121
  %v261 = vpop.f32.mrf.mxu0
  %v262 = vadd.f32 0.0, %v261
  %v263 = vpop.f32.mrf.mxu0
  %v264 = vpop.f32.mrf.mxu0
  %v265 = vadd.f32 0.0, %v264
  %v266 = vpop.f32.mrf.mxu0
  %267 = vmatprep.mubr.bf16.mxu0 0
  %268 = vmatmul.mubr.bf16.gmra.mxu0 %v122
  %v269 = vpop.f32.mrf.mxu0
  %v270 = vadd.f32 0.0, %v269
  %v271 = vpop.f32.mrf.mxu0
  %v272 = vpop.f32.mrf.mxu0
  %v273 = vadd.f32 0.0, %v272
  %v274 = vpop.f32.mrf.mxu0
  %275 = vdwg.mxu0
  %v276 = vadd.f32 %v35, %v214
  %v277 = vadd.f32 %v36, %v217
  %v278 = vadd.f32 %v37, %v222
  %v279 = vadd.f32 %v38, %v225
  %v280 = vadd.f32 %v39, %v230
  %v281 = vadd.f32 %v40, %v233
  %v282 = vadd.f32 %v41, %v238
  %v283 = vadd.f32 %v42, %v241
  %v284 = vadd.f32 %v43, %v246
  %v285 = vadd.f32 %v44, %v249
  %v286 = vadd.f32 %v45, %v254
  %v287 = vadd.f32 %v46, %v257
  %v288 = vadd.f32 %v47, %v262
  %v289 = vadd.f32 %v48, %v265
  %v290 = vadd.f32 %v49, %v270
  %v291 = vadd.f32 %v50, %v273
  %292 = vst [vmem:[#allocation2] sm:$0xff] %v276
  %293 = vst [vmem:[#allocation2 + $0x8] sm:$0xff] %v277
  %294 = vst [vmem:[#allocation2 + $0x10] sm:$0xff] %v278
  %295 = vst [vmem:[#allocation2 + $0x18] sm:$0xff] %v279
  %296 = vst [vmem:[#allocation2 + $0x20] sm:$0xff] %v280
  %297 = vst [vmem:[#allocation2 + $0x28] sm:$0xff] %v281
  %298 = vst [vmem:[#allocation2 + $0x30] sm:$0xff] %v282
  %299 = vst [vmem:[#allocation2 + $0x38] sm:$0xff] %v283
  %300 = vst [vmem:[#allocation2 + $0x40] sm:$0xff] %v284
  %301 = vst [vmem:[#allocation2 + $0x48] sm:$0xff] %v285
  %302 = vst [vmem:[#allocation2 + $0x50] sm:$0xff] %v286
  %303 = vst [vmem:[#allocation2 + $0x58] sm:$0xff] %v287
  %304 = vst [vmem:[#allocation2 + $0x60] sm:$0xff] %v288
  %305 = vst [vmem:[#allocation2 + $0x68] sm:$0xff] %v289
  %306 = vst [vmem:[#allocation2 + $0x70] sm:$0xff] %v290
  %307 = vst [vmem:[#allocation2 + $0x78] sm:$0xff] %v291
  // Predicated region
  $region18: #{dekm_ae_forward.8} parent=0 // pred_check
    %p308 = pneg %p15
  $region19: #{dekm_ae_forward.8} parent=0 // pred_check_branch
    %310 = sbr.rel (%p308) target = $region21
  $region20: #{dekm_ae_forward.8} parent=0 // pred_region
    %v311 = vld [vmem:[#allocation2] sm:$0xff]
    %v312 = vld [vmem:[#allocation2 + $0x8] sm:$0xff]
    %v313 = vld [vmem:[#allocation2 + $0x10] sm:$0xff]
    %v314 = vld [vmem:[#allocation2 + $0x18] sm:$0xff]
    %v315 = vld [vmem:[#allocation2 + $0x20] sm:$0xff]
    %v316 = vld [vmem:[#allocation2 + $0x28] sm:$0xff]
    %v317 = vld [vmem:[#allocation2 + $0x30] sm:$0xff]
    %v318 = vld [vmem:[#allocation2 + $0x38] sm:$0xff]
    %v319 = vld [vmem:[#allocation2 + $0x40] sm:$0xff]
    %v320 = vld [vmem:[#allocation2 + $0x48] sm:$0xff]
    %v321 = vld [vmem:[#allocation2 + $0x50] sm:$0xff]
    %v322 = vld [vmem:[#allocation2 + $0x58] sm:$0xff]
    %v323 = vld [vmem:[#allocation2 + $0x60] sm:$0xff]
    %v324 = vld [vmem:[#allocation2 + $0x68] sm:$0xff]
    %v325 = vld [vmem:[#allocation2 + $0x70] sm:$0xff]
    %v326 = vld [vmem:[#allocation2 + $0x78] sm:$0xff]
    %v327 = vld [vmem:[%s2] sm:$0x1]
    %v329 = vlaneseq
    %v330 = vshrl.u32 %v329, 7
    %v331 = vsub.s32 0, %v330
    %v332 = vrot.slane %v327, %v331
    %v334 = vadd.f32 %v311, %v332
    %v335 = vadd.f32 %v312, %v332
    %v336 = vadd.f32 %v313, %v332
    %v337 = vadd.f32 %v314, %v332
    %v338 = vadd.f32 %v315, %v332
    %v339 = vadd.f32 %v316, %v332
    %v340 = vadd.f32 %v317, %v332
    %v341 = vadd.f32 %v318, %v332
    %v342 = vadd.f32 %v319, %v332
    %v343 = vadd.f32 %v320, %v332
    %v344 = vadd.f32 %v321, %v332
    %v345 = vadd.f32 %v322, %v332
    %v346 = vadd.f32 %v323, %v332
    %v347 = vadd.f32 %v324, %v332
    %v348 = vadd.f32 %v325, %v332
    %v349 = vadd.f32 %v326, %v332
    %v350 = vmax.f32 %v334, 0.0
    %v351 = vmax.f32 %v335, 0.0
    %v352 = vmax.f32 %v336, 0.0
    %v353 = vmax.f32 %v337, 0.0
    %v354 = vmax.f32 %v338, 0.0
    %v355 = vmax.f32 %v339, 0.0
    %v356 = vmax.f32 %v340, 0.0
    %v357 = vmax.f32 %v341, 0.0
    %v358 = vmax.f32 %v342, 0.0
    %v359 = vmax.f32 %v343, 0.0
    %v360 = vmax.f32 %v344, 0.0
    %v361 = vmax.f32 %v345, 0.0
    %v362 = vmax.f32 %v346, 0.0
    %v363 = vmax.f32 %v347, 0.0
    %v364 = vmax.f32 %v348, 0.0
    %v365 = vmax.f32 %v349, 0.0
    %v366 = vpack.c.bf16 %v351, %v350
    %v367 = vpack.c.bf16 %v353, %v352
    %v368 = vpack.c.bf16 %v355, %v354
    %v369 = vpack.c.bf16 %v357, %v356
    %v370 = vpack.c.bf16 %v359, %v358
    %v371 = vpack.c.bf16 %v361, %v360
    %v372 = vpack.c.bf16 %v363, %v362
    %v373 = vpack.c.bf16 %v365, %v364
    %v382 = vunpack.c.l.b16 %v366
    %v383 = vunpack.c.h.b16 %v366
    %v384 = vunpack.c.l.b16 %v367
    %v385 = vunpack.c.h.b16 %v367
    %v386 = vunpack.c.l.b16 %v368
    %v387 = vunpack.c.h.b16 %v368
    %v388 = vunpack.c.l.b16 %v369
    %v389 = vunpack.c.h.b16 %v369
    %v390 = vunpack.c.l.b16 %v370
    %v391 = vunpack.c.h.b16 %v370
    %v392 = vunpack.c.l.b16 %v371
    %v393 = vunpack.c.h.b16 %v371
    %v394 = vunpack.c.l.b16 %v372
    %v395 = vunpack.c.h.b16 %v372
    %v396 = vunpack.c.l.b16 %v373
    %v397 = vunpack.c.h.b16 %v373
    %v398 = vpack.c.b16 %v382, %v382
    %v399 = vpack.c.b16 %v383, %v383
    %v400 = vpack.c.b16 %v384, %v384
    %v401 = vpack.c.b16 %v385, %v385
    %v402 = vpack.c.b16 %v386, %v386
    %v403 = vpack.c.b16 %v387, %v387
    %v404 = vpack.c.b16 %v388, %v388
    %v405 = vpack.c.b16 %v389, %v389
    %v406 = vpack.c.b16 %v390, %v390
    %v407 = vpack.c.b16 %v391, %v391
    %v408 = vpack.c.b16 %v392, %v392
    %v409 = vpack.c.b16 %v393, %v393
    %v410 = vpack.c.b16 %v394, %v394
    %v411 = vpack.c.b16 %v395, %v395
    %v412 = vpack.c.b16 %v396, %v396
    %v413 = vpack.c.b16 %v397, %v397
    %430 = vst [vmem:[%s3] sm:$0xf] %v398
    %431 = vst [vmem:[%s3 + $0x4] sm:$0xf] %v399
    %432 = vst [vmem:[%s3 + $0x8] sm:$0xf] %v400
    %433 = vst [vmem:[%s3 + $0xc] sm:$0xf] %v401
    %434 = vst [vmem:[%s3 + $0x10] sm:$0xf] %v402
    %435 = vst [vmem:[%s3 + $0x14] sm:$0xf] %v403
    %436 = vst [vmem:[%s3 + $0x18] sm:$0xf] %v404
    %437 = vst [vmem:[%s3 + $0x1c] sm:$0xf] %v405
    %438 = vst [vmem:[%s3 + $0x20] sm:$0xf] %v406
    %439 = vst [vmem:[%s3 + $0x24] sm:$0xf] %v407
    %440 = vst [vmem:[%s3 + $0x28] sm:$0xf] %v408
    %441 = vst [vmem:[%s3 + $0x2c] sm:$0xf] %v409
    %442 = vst [vmem:[%s3 + $0x30] sm:$0xf] %v410
    %443 = vst [vmem:[%s3 + $0x34] sm:$0xf] %v411
    %444 = vst [vmem:[%s3 + $0x38] sm:$0xf] %v412
    %445 = vst [vmem:[%s3 + $0x3c] sm:$0xf] %v413
  $region21: #{dekm_ae_forward.8} parent=0 // pred_fallthru
    _
  // Predicated region
  $region22: #{dekm_ae_forward.8} parent=0 // pred_check
    _
  $region23: #{dekm_ae_forward.8} parent=0 // pred_check_branch
    %447 = sbr.rel (0) target = $region25
  $region24: #{dekm_ae_forward.8} parent=0 // pred_region
    _
  $region25: #{dekm_ae_forward.8} parent=0 // pred_fallthru
    _
  // Predicated region
  $region26: #{dekm_ae_forward.8} parent=0 // pred_check
    _
  $region27: #{dekm_ae_forward.8} parent=0 // pred_check_branch
    %449 = sbr.rel (0) target = $region29
  $region28: #{dekm_ae_forward.8} parent=0 // pred_region
    _
  $region29: #{dekm_ae_forward.8} parent=0 // pred_fallthru
    _

// kernel: dekm_ae_forward.10
$region0: #{dekm_ae_forward.10}
  #allocation0 [shape = 'u32[]', space=smem, size = 0x4, offset = 0x4, fixed_abs, tag = 'smem constant byte address 0x4 - core index']
  #allocation1 [shape = 'u32[144,128]{1,0:T(1,128)}', space=vmem, size = 0x12000, scoped, tag = 'internal scratch']
  #allocation2 [shape = 'f32[16,128]{1,0:T(8,128)}', space=vmem, size = 0x2000, scoped, tag = 'scratch operand']
  %s0 = inlined_call_operand.vmem [shape: bf16[16,640], index: 0, kind: input, shape index: {}]
  %s1 = inlined_call_operand.vmem [shape: bf16[640,128], index: 1, kind: input, shape index: {}]
  %s2 = inlined_call_operand.vmem [shape: f32[1,128], index: 2, kind: input, shape index: {}]
  %s3 = inlined_call_operand.vmem [shape: bf16[16,128], index: 3, kind: output, shape index: {}]
  %s4 = sld [smem:[#allocation0]]
  $region30: #{dekm_ae_forward.10} parent=0
    _
  %s6 = ssub.s32 1, %s4
  %s7 = scalar_select 0, %s6, %s4
  // Predicated region
  $region2: #{dekm_ae_forward.10} parent=0 // pred_check
    _
  $region3: #{dekm_ae_forward.10} parent=0 // pred_check_branch
    %9 = sbr.rel (0) target = $region5
  $region4: #{dekm_ae_forward.10} parent=0 // pred_region
    _
  $region5: #{dekm_ae_forward.10} parent=0 // pred_fallthru
    _
  // Predicated region
  $region6: #{dekm_ae_forward.10} parent=0 // pred_check
    _
  $region7: #{dekm_ae_forward.10} parent=0 // pred_check_branch
    %11 = sbr.rel (0) target = $region9
  $region8: #{dekm_ae_forward.10} parent=0 // pred_region
    _
  $region9: #{dekm_ae_forward.10} parent=0 // pred_fallthru
    _
  // Predicated region
  $region10: #{dekm_ae_forward.10} parent=0 // pred_check
    _
  $region11: #{dekm_ae_forward.10} parent=0 // pred_check_branch
    %13 = sbr.rel (0) target = $region13
  $region12: #{dekm_ae_forward.10} parent=0 // pred_region
    _
  $region13: #{dekm_ae_forward.10} parent=0 // pred_fallthru
    _
  %p15 = scmp.eq.s32.totalorder 0, 0
  // Predicated region
  $region14: #{dekm_ae_forward.10} parent=0 // pred_check
    %p16 = pneg %p15
  $region15: #{dekm_ae_forward.10} parent=0 // pred_check_branch
    %18 = sbr.rel (%p16) target = $region17
  $region16: #{dekm_ae_forward.10} parent=0 // pred_region
    %19 = vst [vmem:[#allocation2] sm:$0xff] 0.0
    %20 = vst [vmem:[#allocation2 + $0x8] sm:$0xff] 0.0
  $region17: #{dekm_ae_forward.10} parent=0 // pred_fallthru
    _
  %v21 = vld [vmem:[#allocation2] sm:$0xff]
  %v22 = vld [vmem:[#allocation2 + $0x8] sm:$0xff]
  %v23 = vld [vmem:[%s0] sm:$0xff]
  %v24 = vld [vmem:[%s0 + $0x8] sm:$0xff]
  %v25 = vld [vmem:[%s0 + $0x10] sm:$0xf]
  %v26 = vld [vmem:[%s0 + $0x14] sm:$0xff]
  %v27 = vld [vmem:[%s0 + $0x1c] sm:$0xff]
  %v28 = vld [vmem:[%s0 + $0x24] sm:$0xf]
  %v29 = vld [vmem:[%s1] sm:$0xf]
  %v30 = vld [vmem:[%s1 + $0x4] sm:$0xf]
  %v31 = vld [vmem:[%s1 + $0x8] sm:$0xf]
  %v32 = vld [vmem:[%s1 + $0xc] sm:$0xf]
  %v33 = vld [vmem:[%s1 + $0x10] sm:$0xf]
  %v34 = vld [vmem:[%s1 + $0x14] sm:$0xf]
  %v35 = vld [vmem:[%s1 + $0x18] sm:$0xf]
  %v36 = vld [vmem:[%s1 + $0x1c] sm:$0xf]
  %v37 = vld [vmem:[%s1 + $0x20] sm:$0xf]
  %v38 = vld [vmem:[%s1 + $0x24] sm:$0xf]
  %v39 = vld [vmem:[%s1 + $0x28] sm:$0xf]
  %v40 = vld [vmem:[%s1 + $0x2c] sm:$0xf]
  %v41 = vld [vmem:[%s1 + $0x30] sm:$0xf]
  %v42 = vld [vmem:[%s1 + $0x34] sm:$0xf]
  %v43 = vld [vmem:[%s1 + $0x38] sm:$0xf]
  %v44 = vld [vmem:[%s1 + $0x3c] sm:$0xf]
  %v45 = vld [vmem:[%s1 + $0x40] sm:$0xf]
  %v46 = vld [vmem:[%s1 + $0x44] sm:$0xf]
  %v47 = vld [vmem:[%s1 + $0x48] sm:$0xf]
  %v48 = vld [vmem:[%s1 + $0x4c] sm:$0xf]
  %v49 = vld [vmem:[%s1 + $0x50] sm:$0xf]
  %v50 = vld [vmem:[%s1 + $0x54] sm:$0xf]
  %v51 = vld [vmem:[%s1 + $0x58] sm:$0xf]
  %v52 = vld [vmem:[%s1 + $0x5c] sm:$0xf]
  %v53 = vld [vmem:[%s1 + $0x60] sm:$0xf]
  %v54 = vld [vmem:[%s1 + $0x64] sm:$0xf]
  %v55 = vld [vmem:[%s1 + $0x68] sm:$0xf]
  %v56 = vld [vmem:[%s1 + $0x6c] sm:$0xf]
  %v57 = vld [vmem:[%s1 + $0x70] sm:$0xf]
  %v58 = vld [vmem:[%s1 + $0x74] sm:$0xf]
  %v59 = vld [vmem:[%s1 + $0x78] sm:$0xf]
  %v60 = vld [vmem:[%s1 + $0x7c] sm:$0xf]
  %v61 = vld [vmem:[%s1 + $0x80] sm:$0xf]
  %v62 = vld [vmem:[%s1 + $0x84] sm:$0xf]
  %v63 = vld [vmem:[%s1 + $0x88] sm:$0xf]
  %v64 = vld [vmem:[%s1 + $0x8c] sm:$0xf]
  %v65 = vld [vmem:[%s1 + $0x90] sm:$0xf]
  %v66 = vld [vmem:[%s1 + $0x94] sm:$0xf]
  %v67 = vld [vmem:[%s1 + $0x98] sm:$0xf]
  %v68 = vld [vmem:[%s1 + $0x9c] sm:$0xf]
  %v69 = vld [vmem:[%s1 + $0xa0] sm:$0xf]
  %v70 = vld [vmem:[%s1 + $0xa4] sm:$0xf]
  %v71 = vld [vmem:[%s1 + $0xa8] sm:$0xf]
  %v72 = vld [vmem:[%s1 + $0xac] sm:$0xf]
  %v73 = vld [vmem:[%s1 + $0xb0] sm:$0xf]
  %v74 = vld [vmem:[%s1 + $0xb4] sm:$0xf]
  %v75 = vld [vmem:[%s1 + $0xb8] sm:$0xf]
  %v76 = vld [vmem:[%s1 + $0xbc] sm:$0xf]
  %v77 = vld [vmem:[%s1 + $0xc0] sm:$0xf]
  %v78 = vld [vmem:[%s1 + $0xc4] sm:$0xf]
  %v79 = vld [vmem:[%s1 + $0xc8] sm:$0xf]
  %v80 = vld [vmem:[%s1 + $0xcc] sm:$0xf]
  %v81 = vld [vmem:[%s1 + $0xd0] sm:$0xf]
  %v82 = vld [vmem:[%s1 + $0xd4] sm:$0xf]
  %v83 = vld [vmem:[%s1 + $0xd8] sm:$0xf]
  %v84 = vld [vmem:[%s1 + $0xdc] sm:$0xf]
  %v85 = vld [vmem:[%s1 + $0xe0] sm:$0xf]
  %v86 = vld [vmem:[%s1 + $0xe4] sm:$0xf]
  %v87 = vld [vmem:[%s1 + $0xe8] sm:$0xf]
  %v88 = vld [vmem:[%s1 + $0xec] sm:$0xf]
  %v89 = vld [vmem:[%s1 + $0xf0] sm:$0xf]
  %v90 = vld [vmem:[%s1 + $0xf4] sm:$0xf]
  %v91 = vld [vmem:[%s1 + $0xf8] sm:$0xf]
  %v92 = vld [vmem:[%s1 + $0xfc] sm:$0xf]
  %v93 = vld [vmem:[%s1 + $0x100] sm:$0xf]
  %v94 = vld [vmem:[%s1 + $0x104] sm:$0xf]
  %v95 = vld [vmem:[%s1 + $0x108] sm:$0xf]
  %v96 = vld [vmem:[%s1 + $0x10c] sm:$0xf]
  %v97 = vld [vmem:[%s1 + $0x110] sm:$0xf]
  %v98 = vld [vmem:[%s1 + $0x114] sm:$0xf]
  %v99 = vld [vmem:[%s1 + $0x118] sm:$0xf]
  %v100 = vld [vmem:[%s1 + $0x11c] sm:$0xf]
  %v101 = vld [vmem:[%s1 + $0x120] sm:$0xf]
  %v102 = vld [vmem:[%s1 + $0x124] sm:$0xf]
  %v103 = vld [vmem:[%s1 + $0x128] sm:$0xf]
  %v104 = vld [vmem:[%s1 + $0x12c] sm:$0xf]
  %v105 = vld [vmem:[%s1 + $0x130] sm:$0xf]
  %v106 = vld [vmem:[%s1 + $0x134] sm:$0xf]
  %v107 = vld [vmem:[%s1 + $0x138] sm:$0xf]
  %v108 = vld [vmem:[%s1 + $0x13c] sm:$0xf]
  %v115 = vunpack.c.l.b16 %v23
  %v116 = vunpack.c.h.b16 %v23
  %v117 = vunpack.c.l.b16 %v24
  %v118 = vunpack.c.h.b16 %v24
  %v119 = vunpack.c.l.b16 %v25
  %v120 = vunpack.c.l.b16 %v26
  %v121 = vunpack.c.h.b16 %v26
  %v122 = vunpack.c.l.b16 %v27
  %v123 = vunpack.c.h.b16 %v27
  %v124 = vunpack.c.l.b16 %v28
  %v125 = vpack.c.b16 %v120, %v115
  %v126 = vpack.c.b16 %v121, %v116
  %v127 = vpack.c.b16 %v122, %v117
  %v128 = vpack.c.b16 %v123, %v118
  %v129 = vpack.c.b16 %v124, %v119
  %v215 = vunpack.c.l.b16 %v29
  %v216 = vunpack.c.l.b16 %v30
  %v217 = vunpack.c.l.b16 %v31
  %v218 = vunpack.c.l.b16 %v32
  %v219 = vunpack.c.l.b16 %v33
  %v220 = vunpack.c.l.b16 %v34
  %v221 = vunpack.c.l.b16 %v35
  %v222 = vunpack.c.l.b16 %v36
  %v223 = vunpack.c.l.b16 %v37
  %v224 = vunpack.c.l.b16 %v38
  %v225 = vunpack.c.l.b16 %v39
  %v226 = vunpack.c.l.b16 %v40
  %v227 = vunpack.c.l.b16 %v41
  %v228 = vunpack.c.l.b16 %v42
  %v229 = vunpack.c.l.b16 %v43
  %v230 = vunpack.c.l.b16 %v44
  %v231 = vunpack.c.l.b16 %v45
  %v232 = vunpack.c.l.b16 %v46
  %v233 = vunpack.c.l.b16 %v47
  %v234 = vunpack.c.l.b16 %v48
  %v235 = vunpack.c.l.b16 %v49
  %v236 = vunpack.c.l.b16 %v50
  %v237 = vunpack.c.l.b16 %v51
  %v238 = vunpack.c.l.b16 %v52
  %v239 = vunpack.c.l.b16 %v53
  %v240 = vunpack.c.l.b16 %v54
  %v241 = vunpack.c.l.b16 %v55
  %v242 = vunpack.c.l.b16 %v56
  %v243 = vunpack.c.l.b16 %v57
  %v244 = vunpack.c.l.b16 %v58
  %v245 = vunpack.c.l.b16 %v59
  %v246 = vunpack.c.l.b16 %v60
  %v247 = vunpack.c.l.b16 %v61
  %v248 = vunpack.c.l.b16 %v62
  %v249 = vunpack.c.l.b16 %v63
  %v250 = vunpack.c.l.b16 %v64
  %v251 = vunpack.c.l.b16 %v65
  %v252 = vunpack.c.l.b16 %v66
  %v253 = vunpack.c.l.b16 %v67
  %v254 = vunpack.c.l.b16 %v68
  %v255 = vunpack.c.l.b16 %v69
  %v256 = vunpack.c.l.b16 %v70
  %v257 = vunpack.c.l.b16 %v71
  %v258 = vunpack.c.l.b16 %v72
  %v259 = vunpack.c.l.b16 %v73
  %v260 = vunpack.c.l.b16 %v74
  %v261 = vunpack.c.l.b16 %v75
  %v262 = vunpack.c.l.b16 %v76
  %v263 = vunpack.c.l.b16 %v77
  %v264 = vunpack.c.l.b16 %v78
  %v265 = vunpack.c.l.b16 %v79
  %v266 = vunpack.c.l.b16 %v80
  %v267 = vunpack.c.l.b16 %v81
  %v268 = vunpack.c.l.b16 %v82
  %v269 = vunpack.c.l.b16 %v83
  %v270 = vunpack.c.l.b16 %v84
  %v271 = vunpack.c.l.b16 %v85
  %v272 = vunpack.c.l.b16 %v86
  %v273 = vunpack.c.l.b16 %v87
  %v274 = vunpack.c.l.b16 %v88
  %v275 = vunpack.c.l.b16 %v89
  %v276 = vunpack.c.l.b16 %v90
  %v277 = vunpack.c.l.b16 %v91
  %v278 = vunpack.c.l.b16 %v92
  %v279 = vunpack.c.l.b16 %v93
  %v280 = vunpack.c.l.b16 %v94
  %v281 = vunpack.c.l.b16 %v95
  %v282 = vunpack.c.l.b16 %v96
  %v283 = vunpack.c.l.b16 %v97
  %v284 = vunpack.c.l.b16 %v98
  %v285 = vunpack.c.l.b16 %v99
  %v286 = vunpack.c.l.b16 %v100
  %v287 = vunpack.c.l.b16 %v101
  %v288 = vunpack.c.l.b16 %v102
  %v289 = vunpack.c.l.b16 %v103
  %v290 = vunpack.c.l.b16 %v104
  %v291 = vunpack.c.l.b16 %v105
  %v292 = vunpack.c.l.b16 %v106
  %v293 = vunpack.c.l.b16 %v107
  %v294 = vunpack.c.l.b16 %v108
  %v295 = vpack.c.b16 %v216, %v215
  %v296 = vpack.c.b16 %v218, %v217
  %v297 = vpack.c.b16 %v220, %v219
  %v298 = vpack.c.b16 %v222, %v221
  %v299 = vpack.c.b16 %v224, %v223
  %v300 = vpack.c.b16 %v226, %v225
  %v301 = vpack.c.b16 %v228, %v227
  %v302 = vpack.c.b16 %v230, %v229
  %v303 = vpack.c.b16 %v232, %v231
  %v304 = vpack.c.b16 %v234, %v233
  %v305 = vpack.c.b16 %v236, %v235
  %v306 = vpack.c.b16 %v238, %v237
  %v307 = vpack.c.b16 %v240, %v239
  %v308 = vpack.c.b16 %v242, %v241
  %v309 = vpack.c.b16 %v244, %v243
  %v310 = vpack.c.b16 %v246, %v245
  %v311 = vpack.c.b16 %v248, %v247
  %v312 = vpack.c.b16 %v250, %v249
  %v313 = vpack.c.b16 %v252, %v251
  %v314 = vpack.c.b16 %v254, %v253
  %v315 = vpack.c.b16 %v256, %v255
  %v316 = vpack.c.b16 %v258, %v257
  %v317 = vpack.c.b16 %v260, %v259
  %v318 = vpack.c.b16 %v262, %v261
  %v319 = vpack.c.b16 %v264, %v263
  %v320 = vpack.c.b16 %v266, %v265
  %v321 = vpack.c.b16 %v268, %v267
  %v322 = vpack.c.b16 %v270, %v269
  %v323 = vpack.c.b16 %v272, %v271
  %v324 = vpack.c.b16 %v274, %v273
  %v325 = vpack.c.b16 %v276, %v275
  %v326 = vpack.c.b16 %v278, %v277
  %v327 = vpack.c.b16 %v280, %v279
  %v328 = vpack.c.b16 %v282, %v281
  %v329 = vpack.c.b16 %v284, %v283
  %v330 = vpack.c.b16 %v286, %v285
  %v331 = vpack.c.b16 %v288, %v287
  %v332 = vpack.c.b16 %v290, %v289
  %v333 = vpack.c.b16 %v292, %v291
  %v334 = vpack.c.b16 %v294, %v293
  %375 = vmatprep.subr.bf16.mxu0 0
  %376 = vmatpush1.bf16.msra.mxu0 %v302
  %377 = vmatprep.subr.bf16.mxu0 0
  %378 = vmatpush1.bf16.msra.mxu0 %v301
  %379 = vmatprep.subr.bf16.mxu0 0
  %380 = vmatpush1.bf16.msra.mxu0 %v300
  %381 = vmatprep.subr.bf16.mxu0 0
  %382 = vmatpush1.bf16.msra.mxu0 %v299
  %383 = vmatprep.subr.bf16.mxu0 0
  %384 = vmatpush1.bf16.msra.mxu0 %v298
  %385 = vmatprep.subr.bf16.mxu0 0
  %386 = vmatpush1.bf16.msra.mxu0 %v297
  %387 = vmatprep.subr.bf16.mxu0 0
  %388 = vmatpush1.bf16.msra.mxu0 %v296
  %389 = vmatprep.subr.bf16.mxu0 0
  %390 = vmatpush1.bf16.msra.mxu0 %v295
  %391 = vmatprep.subr.bf16.mxu0 0
  %392 = vmatpush2.bf16.msra.mxu0 %v310
  %393 = vmatprep.subr.bf16.mxu0 0
  %394 = vmatpush2.bf16.msra.mxu0 %v309
  %395 = vmatprep.subr.bf16.mxu0 0
  %396 = vmatpush2.bf16.msra.mxu0 %v308
  %397 = vmatprep.subr.bf16.mxu0 0
  %398 = vmatpush2.bf16.msra.mxu0 %v307
  %399 = vmatprep.subr.bf16.mxu0 0
  %400 = vmatpush2.bf16.msra.mxu0 %v306
  %401 = vmatprep.subr.bf16.mxu0 0
  %402 = vmatpush2.bf16.msra.mxu0 %v305
  %403 = vmatprep.subr.bf16.mxu0 0
  %404 = vmatpush2.bf16.msra.mxu0 %v304
  %405 = vmatprep.subr.bf16.mxu0 0
  %406 = vmatpush2.bf16.msra.mxu0 %v303
  %407 = vmatprep.mubr.bf16.mxu0 %v126
  %408 = vmatmul.mubr.bf16.gmra.mxu0 %v125
  %v409 = vpop.f32.mrf.mxu0
  %v410 = vadd.f32 0.0, %v409
  %v411 = vpop.f32.mrf.mxu0
  %v412 = vpop.f32.mrf.mxu0
  %v413 = vadd.f32 0.0, %v412
  %v414 = vpop.f32.mrf.mxu0
  %415 = vdwg.mxu0
  %416 = vmatprep.subr.bf16.mxu0 0
  %417 = vmatpush1.bf16.msra.mxu0 %v318
  %418 = vmatprep.subr.bf16.mxu0 0
  %419 = vmatpush1.bf16.msra.mxu0 %v317
  %420 = vmatprep.subr.bf16.mxu0 0
  %421 = vmatpush1.bf16.msra.mxu0 %v316
  %422 = vmatprep.subr.bf16.mxu0 0
  %423 = vmatpush1.bf16.msra.mxu0 %v315
  %424 = vmatprep.subr.bf16.mxu0 0
  %425 = vmatpush1.bf16.msra.mxu0 %v314
  %426 = vmatprep.subr.bf16.mxu0 0
  %427 = vmatpush1.bf16.msra.mxu0 %v313
  %428 = vmatprep.subr.bf16.mxu0 0
  %429 = vmatpush1.bf16.msra.mxu0 %v312
  %430 = vmatprep.subr.bf16.mxu0 0
  %431 = vmatpush1.bf16.msra.mxu0 %v311
  %432 = vmatprep.subr.bf16.mxu0 0
  %433 = vmatpush2.bf16.msra.mxu0 %v326
  %434 = vmatprep.subr.bf16.mxu0 0
  %435 = vmatpush2.bf16.msra.mxu0 %v325
  %436 = vmatprep.subr.bf16.mxu0 0
  %437 = vmatpush2.bf16.msra.mxu0 %v324
  %438 = vmatprep.subr.bf16.mxu0 0
  %439 = vmatpush2.bf16.msra.mxu0 %v323
  %440 = vmatprep.subr.bf16.mxu0 0
  %441 = vmatpush2.bf16.msra.mxu0 %v322
  %442 = vmatprep.subr.bf16.mxu0 0
  %443 = vmatpush2.bf16.msra.mxu0 %v321
  %444 = vmatprep.subr.bf16.mxu0 0
  %445 = vmatpush2.bf16.msra.mxu0 %v320
  %446 = vmatprep.subr.bf16.mxu0 0
  %447 = vmatpush2.bf16.msra.mxu0 %v319
  %448 = vmatprep.mubr.bf16.mxu0 %v128
  %449 = vmatmul.mubr.bf16.gmra.mxu0 %v127
  %v450 = vpop.f32.mrf.mxu0
  %v451 = vadd.f32 %v410, %v450
  %v452 = vpop.f32.mrf.mxu0
  %v453 = vpop.f32.mrf.mxu0
  %v454 = vadd.f32 %v413, %v453
  %v455 = vpop.f32.mrf.mxu0
  %456 = vdwg.mxu0
  %457 = vmatprep.subr.bf16.mxu0 0
  %458 = vmatpush1.bf16.msra.mxu0 %v334
  %459 = vmatprep.subr.bf16.mxu0 0
  %460 = vmatpush1.bf16.msra.mxu0 %v333
  %461 = vmatprep.subr.bf16.mxu0 0
  %462 = vmatpush1.bf16.msra.mxu0 %v332
  %463 = vmatprep.subr.bf16.mxu0 0
  %464 = vmatpush1.bf16.msra.mxu0 %v331
  %465 = vmatprep.subr.bf16.mxu0 0
  %466 = vmatpush1.bf16.msra.mxu0 %v330
  %467 = vmatprep.subr.bf16.mxu0 0
  %468 = vmatpush1.bf16.msra.mxu0 %v329
  %469 = vmatprep.subr.bf16.mxu0 0
  %470 = vmatpush1.bf16.msra.mxu0 %v328
  %471 = vmatprep.subr.bf16.mxu0 0
  %472 = vmatpush1.bf16.msra.mxu0 %v327
  %473 = vmatprep.subr.bf16.mxu0 0
  %474 = vmatpush2.bf16.msra.mxu0 0
  %475 = vmatprep.subr.bf16.mxu0 0
  %476 = vmatpush2.bf16.msra.mxu0 0
  %477 = vmatprep.subr.bf16.mxu0 0
  %478 = vmatpush2.bf16.msra.mxu0 0
  %479 = vmatprep.subr.bf16.mxu0 0
  %480 = vmatpush2.bf16.msra.mxu0 0
  %481 = vmatprep.subr.bf16.mxu0 0
  %482 = vmatpush2.bf16.msra.mxu0 0
  %483 = vmatprep.subr.bf16.mxu0 0
  %484 = vmatpush2.bf16.msra.mxu0 0
  %485 = vmatprep.subr.bf16.mxu0 0
  %486 = vmatpush2.bf16.msra.mxu0 0
  %487 = vmatprep.subr.bf16.mxu0 0
  %488 = vmatpush2.bf16.msra.mxu0 0
  %489 = vmatprep.mubr.bf16.mxu0 0
  %490 = vmatmul.mubr.bf16.gmra.mxu0 %v129
  %v491 = vpop.f32.mrf.mxu0
  %v492 = vadd.f32 %v451, %v491
  %v493 = vpop.f32.mrf.mxu0
  %v494 = vpop.f32.mrf.mxu0
  %v495 = vadd.f32 %v454, %v494
  %v496 = vpop.f32.mrf.mxu0
  %497 = vdwg.mxu0
  %v498 = vadd.f32 %v21, %v492
  %v499 = vadd.f32 %v22, %v495
  %500 = vst [vmem:[#allocation2] sm:$0xff] %v498
  %501 = vst [vmem:[#allocation2 + $0x8] sm:$0xff] %v499
  // Predicated region
  $region18: #{dekm_ae_forward.10} parent=0 // pred_check
    %p502 = pneg %p15
  $region19: #{dekm_ae_forward.10} parent=0 // pred_check_branch
    %504 = sbr.rel (%p502) target = $region21
  $region20: #{dekm_ae_forward.10} parent=0 // pred_region
    %v505 = vld [vmem:[#allocation2] sm:$0xff]
    %v506 = vld [vmem:[#allocation2 + $0x8] sm:$0xff]
    %v507 = vld [vmem:[%s2] sm:$0x1]
    %v509 = vlaneseq
    %v510 = vshrl.u32 %v509, 7
    %v511 = vsub.s32 0, %v510
    %v512 = vrot.slane %v507, %v511
    %v514 = vadd.f32 %v505, %v512
    %v515 = vadd.f32 %v506, %v512
    %v516 = vmax.f32 %v514, 0.0
    %v517 = vmax.f32 %v515, 0.0
    %v518 = vpack.c.bf16 %v517, %v516
    %v520 = vunpack.c.l.b16 %v518
    %v521 = vunpack.c.h.b16 %v518
    %v522 = vpack.c.b16 %v520, %v520
    %v523 = vpack.c.b16 %v521, %v521
    %526 = vst [vmem:[%s3] sm:$0xf] %v522
    %527 = vst [vmem:[%s3 + $0x4] sm:$0xf] %v523
  $region21: #{dekm_ae_forward.10} parent=0 // pred_fallthru
    _
  // Predicated region
  $region22: #{dekm_ae_forward.10} parent=0 // pred_check
    _
  $region23: #{dekm_ae_forward.10} parent=0 // pred_check_branch
    %529 = sbr.rel (0) target = $region25
  $region24: #{dekm_ae_forward.10} parent=0 // pred_region
    _
  $region25: #{dekm_ae_forward.10} parent=0 // pred_fallthru
    _
  // Predicated region
  $region26: #{dekm_ae_forward.10} parent=0 // pred_check
    _
  $region27: #{dekm_ae_forward.10} parent=0 // pred_check_branch
    %531 = sbr.rel (0) target = $region29
  $region28: #{dekm_ae_forward.10} parent=0 // pred_region
    _
  $region29: #{dekm_ae_forward.10} parent=0 // pred_fallthru
    _

// kernel: dekm_ae_forward.11
$region0: #{dekm_ae_forward.11}
  #allocation0 [shape = 'u32[]', space=smem, size = 0x4, offset = 0x4, fixed_abs, tag = 'smem constant byte address 0x4 - core index']
  #allocation1 [shape = 'u32[144,128]{1,0:T(1,128)}', space=vmem, size = 0x12000, scoped, tag = 'internal scratch']
  #allocation2 [shape = 'f32[16,128]{1,0:T(8,128)}', space=vmem, size = 0x2000, scoped, tag = 'scratch operand']
  %s0 = inlined_call_operand.vmem [shape: bf16[16,128], index: 0, kind: input, shape index: {}]
  %s1 = inlined_call_operand.vmem [shape: bf16[128,128], index: 1, kind: input, shape index: {}]
  %s2 = inlined_call_operand.vmem [shape: f32[1,128], index: 2, kind: input, shape index: {}]
  %s3 = inlined_call_operand.vmem [shape: f32[16,128], index: 3, kind: output, shape index: {}]
  %s4 = sld [smem:[#allocation0]]
  $region30: #{dekm_ae_forward.11} parent=0
    _
  %s6 = ssub.s32 1, %s4
  %s7 = scalar_select 0, %s6, %s4
  // Predicated region
  $region2: #{dekm_ae_forward.11} parent=0 // pred_check
    _
  $region3: #{dekm_ae_forward.11} parent=0 // pred_check_branch
    %9 = sbr.rel (0) target = $region5
  $region4: #{dekm_ae_forward.11} parent=0 // pred_region
    _
  $region5: #{dekm_ae_forward.11} parent=0 // pred_fallthru
    _
  // Predicated region
  $region6: #{dekm_ae_forward.11} parent=0 // pred_check
    _
  $region7: #{dekm_ae_forward.11} parent=0 // pred_check_branch
    %11 = sbr.rel (0) target = $region9
  $region8: #{dekm_ae_forward.11} parent=0 // pred_region
    _
  $region9: #{dekm_ae_forward.11} parent=0 // pred_fallthru
    _
  // Predicated region
  $region10: #{dekm_ae_forward.11} parent=0 // pred_check
    _
  $region11: #{dekm_ae_forward.11} parent=0 // pred_check_branch
    %13 = sbr.rel (0) target = $region13
  $region12: #{dekm_ae_forward.11} parent=0 // pred_region
    _
  $region13: #{dekm_ae_forward.11} parent=0 // pred_fallthru
    _
  %p15 = scmp.eq.s32.totalorder 0, 0
  // Predicated region
  $region14: #{dekm_ae_forward.11} parent=0 // pred_check
    %p16 = pneg %p15
  $region15: #{dekm_ae_forward.11} parent=0 // pred_check_branch
    %18 = sbr.rel (%p16) target = $region17
  $region16: #{dekm_ae_forward.11} parent=0 // pred_region
    %19 = vst [vmem:[#allocation2] sm:$0xff] 0.0
    %20 = vst [vmem:[#allocation2 + $0x8] sm:$0xff] 0.0
  $region17: #{dekm_ae_forward.11} parent=0 // pred_fallthru
    _
  %v21 = vld [vmem:[#allocation2] sm:$0xff]
  %v22 = vld [vmem:[#allocation2 + $0x8] sm:$0xff]
  %v23 = vld [vmem:[%s0] sm:$0xf]
  %v24 = vld [vmem:[%s0 + $0x4] sm:$0xf]
  %v25 = vld [vmem:[%s1] sm:$0xf]
  %v26 = vld [vmem:[%s1 + $0x4] sm:$0xf]
  %v27 = vld [vmem:[%s1 + $0x8] sm:$0xf]
  %v28 = vld [vmem:[%s1 + $0xc] sm:$0xf]
  %v29 = vld [vmem:[%s1 + $0x10] sm:$0xf]
  %v30 = vld [vmem:[%s1 + $0x14] sm:$0xf]
  %v31 = vld [vmem:[%s1 + $0x18] sm:$0xf]
  %v32 = vld [vmem:[%s1 + $0x1c] sm:$0xf]
  %v33 = vld [vmem:[%s1 + $0x20] sm:$0xf]
  %v34 = vld [vmem:[%s1 + $0x24] sm:$0xf]
  %v35 = vld [vmem:[%s1 + $0x28] sm:$0xf]
  %v36 = vld [vmem:[%s1 + $0x2c] sm:$0xf]
  %v37 = vld [vmem:[%s1 + $0x30] sm:$0xf]
  %v38 = vld [vmem:[%s1 + $0x34] sm:$0xf]
  %v39 = vld [vmem:[%s1 + $0x38] sm:$0xf]
  %v40 = vld [vmem:[%s1 + $0x3c] sm:$0xf]
  %v43 = vunpack.c.l.b16 %v23
  %v44 = vunpack.c.l.b16 %v24
  %v45 = vpack.c.b16 %v44, %v43
  %v63 = vunpack.c.l.b16 %v25
  %v64 = vunpack.c.l.b16 %v26
  %v65 = vunpack.c.l.b16 %v27
  %v66 = vunpack.c.l.b16 %v28
  %v67 = vunpack.c.l.b16 %v29
  %v68 = vunpack.c.l.b16 %v30
  %v69 = vunpack.c.l.b16 %v31
  %v70 = vunpack.c.l.b16 %v32
  %v71 = vunpack.c.l.b16 %v33
  %v72 = vunpack.c.l.b16 %v34
  %v73 = vunpack.c.l.b16 %v35
  %v74 = vunpack.c.l.b16 %v36
  %v75 = vunpack.c.l.b16 %v37
  %v76 = vunpack.c.l.b16 %v38
  %v77 = vunpack.c.l.b16 %v39
  %v78 = vunpack.c.l.b16 %v40
  %v79 = vpack.c.b16 %v64, %v63
  %v80 = vpack.c.b16 %v66, %v65
  %v81 = vpack.c.b16 %v68, %v67
  %v82 = vpack.c.b16 %v70, %v69
  %v83 = vpack.c.b16 %v72, %v71
  %v84 = vpack.c.b16 %v74, %v73
  %v85 = vpack.c.b16 %v76, %v75
  %v86 = vpack.c.b16 %v78, %v77
  %95 = vmatprep.subr.bf16.mxu0 0
  %96 = vmatpush1.bf16.msra.mxu0 %v86
  %97 = vmatprep.subr.bf16.mxu0 0
  %98 = vmatpush1.bf16.msra.mxu0 %v85
  %99 = vmatprep.subr.bf16.mxu0 0
  %100 = vmatpush1.bf16.msra.mxu0 %v84
  %101 = vmatprep.subr.bf16.mxu0 0
  %102 = vmatpush1.bf16.msra.mxu0 %v83
  %103 = vmatprep.subr.bf16.mxu0 0
  %104 = vmatpush1.bf16.msra.mxu0 %v82
  %105 = vmatprep.subr.bf16.mxu0 0
  %106 = vmatpush1.bf16.msra.mxu0 %v81
  %107 = vmatprep.subr.bf16.mxu0 0
  %108 = vmatpush1.bf16.msra.mxu0 %v80
  %109 = vmatprep.subr.bf16.mxu0 0
  %110 = vmatpush1.bf16.msra.mxu0 %v79
  %111 = vmatprep.subr.bf16.mxu0 0
  %112 = vmatpush2.bf16.msra.mxu0 0
  %113 = vmatprep.subr.bf16.mxu0 0
  %114 = vmatpush2.bf16.msra.mxu0 0
  %115 = vmatprep.subr.bf16.mxu0 0
  %116 = vmatpush2.bf16.msra.mxu0 0
  %117 = vmatprep.subr.bf16.mxu0 0
  %118 = vmatpush2.bf16.msra.mxu0 0
  %119 = vmatprep.subr.bf16.mxu0 0
  %120 = vmatpush2.bf16.msra.mxu0 0
  %121 = vmatprep.subr.bf16.mxu0 0
  %122 = vmatpush2.bf16.msra.mxu0 0
  %123 = vmatprep.subr.bf16.mxu0 0
  %124 = vmatpush2.bf16.msra.mxu0 0
  %125 = vmatprep.subr.bf16.mxu0 0
  %126 = vmatpush2.bf16.msra.mxu0 0
  %127 = vmatprep.mubr.bf16.mxu0 0
  %128 = vmatmul.mubr.bf16.gmra.mxu0 %v45
  %v129 = vpop.f32.mrf.mxu0
  %v130 = vadd.f32 0.0, %v129
  %v131 = vpop.f32.mrf.mxu0
  %v132 = vpop.f32.mrf.mxu0
  %v133 = vadd.f32 0.0, %v132
  %v134 = vpop.f32.mrf.mxu0
  %135 = vdwg.mxu0
  %v136 = vadd.f32 %v21, %v130
  %v137 = vadd.f32 %v22, %v133
  %138 = vst [vmem:[#allocation2] sm:$0xff] %v136
  %139 = vst [vmem:[#allocation2 + $0x8] sm:$0xff] %v137
  // Predicated region
  $region18: #{dekm_ae_forward.11} parent=0 // pred_check
    %p140 = pneg %p15
  $region19: #{dekm_ae_forward.11} parent=0 // pred_check_branch
    %142 = sbr.rel (%p140) target = $region21
  $region20: #{dekm_ae_forward.11} parent=0 // pred_region
    %v143 = vld [vmem:[#allocation2] sm:$0xff]
    %v144 = vld [vmem:[#allocation2 + $0x8] sm:$0xff]
    %v145 = vld [vmem:[%s2] sm:$0x1]
    %v147 = vlaneseq
    %v148 = vshrl.u32 %v147, 7
    %v149 = vsub.s32 0, %v148
    %v150 = vrot.slane %v145, %v149
    %v152 = vadd.f32 %v143, %v150
    %v153 = vadd.f32 %v144, %v150
    %154 = vst [vmem:[%s3] sm:$0xff] %v152
    %155 = vst [vmem:[%s3 + $0x8] sm:$0xff] %v153
  $region21: #{dekm_ae_forward.11} parent=0 // pred_fallthru
    _
  // Predicated region
  $region22: #{dekm_ae_forward.11} parent=0 // pred_check
    _
  $region23: #{dekm_ae_forward.11} parent=0 // pred_check_branch
    %157 = sbr.rel (0) target = $region25
  $region24: #{dekm_ae_forward.11} parent=0 // pred_region
    _
  $region25: #{dekm_ae_forward.11} parent=0 // pred_fallthru
    _
  // Predicated region
  $region26: #{dekm_ae_forward.11} parent=0 // pred_check
    _
  $region27: #{dekm_ae_forward.11} parent=0 // pred_check_branch
    %159 = sbr.rel (0) target = $region29
  $region28: #{dekm_ae_forward.11} parent=0 // pred_region
    _
  $region29: #{dekm_ae_forward.11} parent=0 // pred_fallthru
    _

// kernel: dekm_ae_forward.9
$region0: #{dekm_ae_forward.9}
  #allocation0 [shape = 'u32[]', space=smem, size = 0x4, offset = 0x4, fixed_abs, tag = 'smem constant byte address 0x4 - core index']
  #allocation1 [shape = 'u32[144,128]{1,0:T(1,128)}', space=vmem, size = 0x12000, scoped, tag = 'internal scratch']
  #allocation2 [shape = 'f32[32,128]{1,0:T(8,128)}', space=vmem, size = 0x4000, scoped, tag = 'scratch operand']
  %s0 = inlined_call_operand.vmem [shape: bf16[32,896], index: 0, kind: input, shape index: {}]
  %s1 = inlined_call_operand.vmem [shape: bf16[896,128], index: 1, kind: input, shape index: {}]
  %s2 = inlined_call_operand.vmem [shape: f32[1,128], index: 2, kind: input, shape index: {}]
  %s3 = inlined_call_operand.vmem [shape: bf16[32,128], index: 3, kind: output, shape index: {}]
  %s4 = sld [smem:[#allocation0]]
  $region30: #{dekm_ae_forward.9} parent=0
    _
  %s6 = ssub.s32 1, %s4
  %s7 = scalar_select 0, %s6, %s4
  // Predicated region
  $region2: #{dekm_ae_forward.9} parent=0 // pred_check
    _
  $region3: #{dekm_ae_forward.9} parent=0 // pred_check_branch
    %9 = sbr.rel (0) target = $region5
  $region4: #{dekm_ae_forward.9} parent=0 // pred_region
    _
  $region5: #{dekm_ae_forward.9} parent=0 // pred_fallthru
    _
  // Predicated region
  $region6: #{dekm_ae_forward.9} parent=0 // pred_check
    _
  $region7: #{dekm_ae_forward.9} parent=0 // pred_check_branch
    %11 = sbr.rel (0) target = $region9
  $region8: #{dekm_ae_forward.9} parent=0 // pred_region
    _
  $region9: #{dekm_ae_forward.9} parent=0 // pred_fallthru
    _
  // Predicated region
  $region10: #{dekm_ae_forward.9} parent=0 // pred_check
    _
  $region11: #{dekm_ae_forward.9} parent=0 // pred_check_branch
    %13 = sbr.rel (0) target = $region13
  $region12: #{dekm_ae_forward.9} parent=0 // pred_region
    _
  $region13: #{dekm_ae_forward.9} parent=0 // pred_fallthru
    _
  %p15 = scmp.eq.s32.totalorder 0, 0
  // Predicated region
  $region14: #{dekm_ae_forward.9} parent=0 // pred_check
    %p16 = pneg %p15
  $region15: #{dekm_ae_forward.9} parent=0 // pred_check_branch
    %18 = sbr.rel (%p16) target = $region17
  $region16: #{dekm_ae_forward.9} parent=0 // pred_region
    %19 = vst [vmem:[#allocation2] sm:$0xff] 0.0
    %20 = vst [vmem:[#allocation2 + $0x8] sm:$0xff] 0.0
    %21 = vst [vmem:[#allocation2 + $0x10] sm:$0xff] 0.0
    %22 = vst [vmem:[#allocation2 + $0x18] sm:$0xff] 0.0
  $region17: #{dekm_ae_forward.9} parent=0 // pred_fallthru
    _
  %v23 = vld [vmem:[#allocation2] sm:$0xff]
  %v24 = vld [vmem:[#allocation2 + $0x8] sm:$0xff]
  %v25 = vld [vmem:[#allocation2 + $0x10] sm:$0xff]
  %v26 = vld [vmem:[#allocation2 + $0x18] sm:$0xff]
  %v27 = vld [vmem:[%s0] sm:$0xff]
  %v28 = vld [vmem:[%s0 + $0x8] sm:$0xff]
  %v29 = vld [vmem:[%s0 + $0x10] sm:$0xff]
  %v30 = vld [vmem:[%s0 + $0x18] sm:$0xf]
  %v31 = vld [vmem:[%s0 + $0x1c] sm:$0xff]
  %v32 = vld [vmem:[%s0 + $0x24] sm:$0xff]
  %v33 = vld [vmem:[%s0 + $0x2c] sm:$0xff]
  %v34 = vld [vmem:[%s0 + $0x34] sm:$0xf]
  %v35 = vld [vmem:[%s0 + $0x38] sm:$0xff]
  %v36 = vld [vmem:[%s0 + $0x40] sm:$0xff]
  %v37 = vld [vmem:[%s0 + $0x48] sm:$0xff]
  %v38 = vld [vmem:[%s0 + $0x50] sm:$0xf]
  %v39 = vld [vmem:[%s0 + $0x54] sm:$0xff]
  %v40 = vld [vmem:[%s0 + $0x5c] sm:$0xff]
  %v41 = vld [vmem:[%s0 + $0x64] sm:$0xff]
  %v42 = vld [vmem:[%s0 + $0x6c] sm:$0xf]
  %v43 = vld [vmem:[%s1] sm:$0xf]
  %v44 = vld [vmem:[%s1 + $0x4] sm:$0xf]
  %v45 = vld [vmem:[%s1 + $0x8] sm:$0xf]
  %v46 = vld [vmem:[%s1 + $0xc] sm:$0xf]
  %v47 = vld [vmem:[%s1 + $0x10] sm:$0xf]
  %v48 = vld [vmem:[%s1 + $0x14] sm:$0xf]
  %v49 = vld [vmem:[%s1 + $0x18] sm:$0xf]
  %v50 = vld [vmem:[%s1 + $0x1c] sm:$0xf]
  %v51 = vld [vmem:[%s1 + $0x20] sm:$0xf]
  %v52 = vld [vmem:[%s1 + $0x24] sm:$0xf]
  %v53 = vld [vmem:[%s1 + $0x28] sm:$0xf]
  %v54 = vld [vmem:[%s1 + $0x2c] sm:$0xf]
  %v55 = vld [vmem:[%s1 + $0x30] sm:$0xf]
  %v56 = vld [vmem:[%s1 + $0x34] sm:$0xf]
  %v57 = vld [vmem:[%s1 + $0x38] sm:$0xf]
  %v58 = vld [vmem:[%s1 + $0x3c] sm:$0xf]
  %v59 = vld [vmem:[%s1 + $0x40] sm:$0xf]
  %v60 = vld [vmem:[%s1 + $0x44] sm:$0xf]
  %v61 = vld [vmem:[%s1 + $0x48] sm:$0xf]
  %v62 = vld [vmem:[%s1 + $0x4c] sm:$0xf]
  %v63 = vld [vmem:[%s1 + $0x50] sm:$0xf]
  %v64 = vld [vmem:[%s1 + $0x54] sm:$0xf]
  %v65 = vld [vmem:[%s1 + $0x58] sm:$0xf]
  %v66 = vld [vmem:[%s1 + $0x5c] sm:$0xf]
  %v67 = vld [vmem:[%s1 + $0x60] sm:$0xf]
  %v68 = vld [vmem:[%s1 + $0x64] sm:$0xf]
  %v69 = vld [vmem:[%s1 + $0x68] sm:$0xf]
  %v70 = vld [vmem:[%s1 + $0x6c] sm:$0xf]
  %v71 = vld [vmem:[%s1 + $0x70] sm:$0xf]
  %v72 = vld [vmem:[%s1 + $0x74] sm:$0xf]
  %v73 = vld [vmem:[%s1 + $0x78] sm:$0xf]
  %v74 = vld [vmem:[%s1 + $0x7c] sm:$0xf]
  %v75 = vld [vmem:[%s1 + $0x80] sm:$0xf]
  %v76 = vld [vmem:[%s1 + $0x84] sm:$0xf]
  %v77 = vld [vmem:[%s1 + $0x88] sm:$0xf]
  %v78 = vld [vmem:[%s1 + $0x8c] sm:$0xf]
  %v79 = vld [vmem:[%s1 + $0x90] sm:$0xf]
  %v80 = vld [vmem:[%s1 + $0x94] sm:$0xf]
  %v81 = vld [vmem:[%s1 + $0x98] sm:$0xf]
  %v82 = vld [vmem:[%s1 + $0x9c] sm:$0xf]
  %v83 = vld [vmem:[%s1 + $0xa0] sm:$0xf]
  %v84 = vld [vmem:[%s1 + $0xa4] sm:$0xf]
  %v85 = vld [vmem:[%s1 + $0xa8] sm:$0xf]
  %v86 = vld [vmem:[%s1 + $0xac] sm:$0xf]
  %v87 = vld [vmem:[%s1 + $0xb0] sm:$0xf]
  %v88 = vld [vmem:[%s1 + $0xb4] sm:$0xf]
  %v89 = vld [vmem:[%s1 + $0xb8] sm:$0xf]
  %v90 = vld [vmem:[%s1 + $0xbc] sm:$0xf]
  %v91 = vld [vmem:[%s1 + $0xc0] sm:$0xf]
  %v92 = vld [vmem:[%s1 + $0xc4] sm:$0xf]
  %v93 = vld [vmem:[%s1 + $0xc8] sm:$0xf]
  %v94 = vld [vmem:[%s1 + $0xcc] sm:$0xf]
  %v95 = vld [vmem:[%s1 + $0xd0] sm:$0xf]
  %v96 = vld [vmem:[%s1 + $0xd4] sm:$0xf]
  %v97 = vld [vmem:[%s1 + $0xd8] sm:$0xf]
  %v98 = vld [vmem:[%s1 + $0xdc] sm:$0xf]
  %v99 = vld [vmem:[%s1 + $0xe0] sm:$0xf]
  %v100 = vld [vmem:[%s1 + $0xe4] sm:$0xf]
  %v101 = vld [vmem:[%s1 + $0xe8] sm:$0xf]
  %v102 = vld [vmem:[%s1 + $0xec] sm:$0xf]
  %v103 = vld [vmem:[%s1 + $0xf0] sm:$0xf]
  %v104 = vld [vmem:[%s1 + $0xf4] sm:$0xf]
  %v105 = vld [vmem:[%s1 + $0xf8] sm:$0xf]
  %v106 = vld [vmem:[%s1 + $0xfc] sm:$0xf]
  %v107 = vld [vmem:[%s1 + $0x100] sm:$0xf]
  %v108 = vld [vmem:[%s1 + $0x104] sm:$0xf]
  %v109 = vld [vmem:[%s1 + $0x108] sm:$0xf]
  %v110 = vld [vmem:[%s1 + $0x10c] sm:$0xf]
  %v111 = vld [vmem:[%s1 + $0x110] sm:$0xf]
  %v112 = vld [vmem:[%s1 + $0x114] sm:$0xf]
  %v113 = vld [vmem:[%s1 + $0x118] sm:$0xf]
  %v114 = vld [vmem:[%s1 + $0x11c] sm:$0xf]
  %v115 = vld [vmem:[%s1 + $0x120] sm:$0xf]
  %v116 = vld [vmem:[%s1 + $0x124] sm:$0xf]
  %v117 = vld [vmem:[%s1 + $0x128] sm:$0xf]
  %v118 = vld [vmem:[%s1 + $0x12c] sm:$0xf]
  %v119 = vld [vmem:[%s1 + $0x130] sm:$0xf]
  %v120 = vld [vmem:[%s1 + $0x134] sm:$0xf]
  %v121 = vld [vmem:[%s1 + $0x138] sm:$0xf]
  %v122 = vld [vmem:[%s1 + $0x13c] sm:$0xf]
  %v123 = vld [vmem:[%s1 + $0x140] sm:$0xf]
  %v124 = vld [vmem:[%s1 + $0x144] sm:$0xf]
  %v125 = vld [vmem:[%s1 + $0x148] sm:$0xf]
  %v126 = vld [vmem:[%s1 + $0x14c] sm:$0xf]
  %v127 = vld [vmem:[%s1 + $0x150] sm:$0xf]
  %v128 = vld [vmem:[%s1 + $0x154] sm:$0xf]
  %v129 = vld [vmem:[%s1 + $0x158] sm:$0xf]
  %v130 = vld [vmem:[%s1 + $0x15c] sm:$0xf]
  %v131 = vld [vmem:[%s1 + $0x160] sm:$0xf]
  %v132 = vld [vmem:[%s1 + $0x164] sm:$0xf]
  %v133 = vld [vmem:[%s1 + $0x168] sm:$0xf]
  %v134 = vld [vmem:[%s1 + $0x16c] sm:$0xf]
  %v135 = vld [vmem:[%s1 + $0x170] sm:$0xf]
  %v136 = vld [vmem:[%s1 + $0x174] sm:$0xf]
  %v137 = vld [vmem:[%s1 + $0x178] sm:$0xf]
  %v138 = vld [vmem:[%s1 + $0x17c] sm:$0xf]
  %v139 = vld [vmem:[%s1 + $0x180] sm:$0xf]
  %v140 = vld [vmem:[%s1 + $0x184] sm:$0xf]
  %v141 = vld [vmem:[%s1 + $0x188] sm:$0xf]
  %v142 = vld [vmem:[%s1 + $0x18c] sm:$0xf]
  %v143 = vld [vmem:[%s1 + $0x190] sm:$0xf]
  %v144 = vld [vmem:[%s1 + $0x194] sm:$0xf]
  %v145 = vld [vmem:[%s1 + $0x198] sm:$0xf]
  %v146 = vld [vmem:[%s1 + $0x19c] sm:$0xf]
  %v147 = vld [vmem:[%s1 + $0x1a0] sm:$0xf]
  %v148 = vld [vmem:[%s1 + $0x1a4] sm:$0xf]
  %v149 = vld [vmem:[%s1 + $0x1a8] sm:$0xf]
  %v150 = vld [vmem:[%s1 + $0x1ac] sm:$0xf]
  %v151 = vld [vmem:[%s1 + $0x1b0] sm:$0xf]
  %v152 = vld [vmem:[%s1 + $0x1b4] sm:$0xf]
  %v153 = vld [vmem:[%s1 + $0x1b8] sm:$0xf]
  %v154 = vld [vmem:[%s1 + $0x1bc] sm:$0xf]
  %v171 = vunpack.c.l.b16 %v27
  %v172 = vunpack.c.h.b16 %v27
  %v173 = vunpack.c.l.b16 %v28
  %v174 = vunpack.c.h.b16 %v28
  %v175 = vunpack.c.l.b16 %v29
  %v176 = vunpack.c.h.b16 %v29
  %v177 = vunpack.c.l.b16 %v30
  %v178 = vunpack.c.l.b16 %v31
  %v179 = vunpack.c.h.b16 %v31
  %v180 = vunpack.c.l.b16 %v32
  %v181 = vunpack.c.h.b16 %v32
  %v182 = vunpack.c.l.b16 %v33
  %v183 = vunpack.c.h.b16 %v33
  %v184 = vunpack.c.l.b16 %v34
  %v185 = vunpack.c.l.b16 %v35
  %v186 = vunpack.c.h.b16 %v35
  %v187 = vunpack.c.l.b16 %v36
  %v188 = vunpack.c.h.b16 %v36
  %v189 = vunpack.c.l.b16 %v37
  %v190 = vunpack.c.h.b16 %v37
  %v191 = vunpack.c.l.b16 %v38
  %v192 = vunpack.c.l.b16 %v39
  %v193 = vunpack.c.h.b16 %v39
  %v194 = vunpack.c.l.b16 %v40
  %v195 = vunpack.c.h.b16 %v40
  %v196 = vunpack.c.l.b16 %v41
  %v197 = vunpack.c.h.b16 %v41
  %v198 = vunpack.c.l.b16 %v42
  %v199 = vpack.c.b16 %v178, %v171
  %v200 = vpack.c.b16 %v179, %v172
  %v201 = vpack.c.b16 %v180, %v173
  %v202 = vpack.c.b16 %v181, %v174
  %v203 = vpack.c.b16 %v182, %v175
  %v204 = vpack.c.b16 %v183, %v176
  %v205 = vpack.c.b16 %v184, %v177
  %v206 = vpack.c.b16 %v192, %v185
  %v207 = vpack.c.b16 %v193, %v186
  %v208 = vpack.c.b16 %v194, %v187
  %v209 = vpack.c.b16 %v195, %v188
  %v210 = vpack.c.b16 %v196, %v189
  %v211 = vpack.c.b16 %v197, %v190
  %v212 = vpack.c.b16 %v198, %v191
  %v339 = vunpack.c.l.b16 %v43
  %v340 = vunpack.c.l.b16 %v44
  %v341 = vunpack.c.l.b16 %v45
  %v342 = vunpack.c.l.b16 %v46
  %v343 = vunpack.c.l.b16 %v47
  %v344 = vunpack.c.l.b16 %v48
  %v345 = vunpack.c.l.b16 %v49
  %v346 = vunpack.c.l.b16 %v50
  %v347 = vunpack.c.l.b16 %v51
  %v348 = vunpack.c.l.b16 %v52
  %v349 = vunpack.c.l.b16 %v53
  %v350 = vunpack.c.l.b16 %v54
  %v351 = vunpack.c.l.b16 %v55
  %v352 = vunpack.c.l.b16 %v56
  %v353 = vunpack.c.l.b16 %v57
  %v354 = vunpack.c.l.b16 %v58
  %v355 = vunpack.c.l.b16 %v59
  %v356 = vunpack.c.l.b16 %v60
  %v357 = vunpack.c.l.b16 %v61
  %v358 = vunpack.c.l.b16 %v62
  %v359 = vunpack.c.l.b16 %v63
  %v360 = vunpack.c.l.b16 %v64
  %v361 = vunpack.c.l.b16 %v65
  %v362 = vunpack.c.l.b16 %v66
  %v363 = vunpack.c.l.b16 %v67
  %v364 = vunpack.c.l.b16 %v68
  %v365 = vunpack.c.l.b16 %v69
  %v366 = vunpack.c.l.b16 %v70
  %v367 = vunpack.c.l.b16 %v71
  %v368 = vunpack.c.l.b16 %v72
  %v369 = vunpack.c.l.b16 %v73
  %v370 = vunpack.c.l.b16 %v74
  %v371 = vunpack.c.l.b16 %v75
  %v372 = vunpack.c.l.b16 %v76
  %v373 = vunpack.c.l.b16 %v77
  %v374 = vunpack.c.l.b16 %v78
  %v375 = vunpack.c.l.b16 %v79
  %v376 = vunpack.c.l.b16 %v80
  %v377 = vunpack.c.l.b16 %v81
  %v378 = vunpack.c.l.b16 %v82
  %v379 = vunpack.c.l.b16 %v83
  %v380 = vunpack.c.l.b16 %v84
  %v381 = vunpack.c.l.b16 %v85
  %v382 = vunpack.c.l.b16 %v86
  %v383 = vunpack.c.l.b16 %v87
  %v384 = vunpack.c.l.b16 %v88
  %v385 = vunpack.c.l.b16 %v89
  %v386 = vunpack.c.l.b16 %v90
  %v387 = vunpack.c.l.b16 %v91
  %v388 = vunpack.c.l.b16 %v92
  %v389 = vunpack.c.l.b16 %v93
  %v390 = vunpack.c.l.b16 %v94
  %v391 = vunpack.c.l.b16 %v95
  %v392 = vunpack.c.l.b16 %v96
  %v393 = vunpack.c.l.b16 %v97
  %v394 = vunpack.c.l.b16 %v98
  %v395 = vunpack.c.l.b16 %v99
  %v396 = vunpack.c.l.b16 %v100
  %v397 = vunpack.c.l.b16 %v101
  %v398 = vunpack.c.l.b16 %v102
  %v399 = vunpack.c.l.b16 %v103
  %v400 = vunpack.c.l.b16 %v104
  %v401 = vunpack.c.l.b16 %v105
  %v402 = vunpack.c.l.b16 %v106
  %v403 = vunpack.c.l.b16 %v107
  %v404 = vunpack.c.l.b16 %v108
  %v405 = vunpack.c.l.b16 %v109
  %v406 = vunpack.c.l.b16 %v110
  %v407 = vunpack.c.l.b16 %v111
  %v408 = vunpack.c.l.b16 %v112
  %v409 = vunpack.c.l.b16 %v113
  %v410 = vunpack.c.l.b16 %v114
  %v411 = vunpack.c.l.b16 %v115
  %v412 = vunpack.c.l.b16 %v116
  %v413 = vunpack.c.l.b16 %v117
  %v414 = vunpack.c.l.b16 %v118
  %v415 = vunpack.c.l.b16 %v119
  %v416 = vunpack.c.l.b16 %v120
  %v417 = vunpack.c.l.b16 %v121
  %v418 = vunpack.c.l.b16 %v122
  %v419 = vunpack.c.l.b16 %v123
  %v420 = vunpack.c.l.b16 %v124
  %v421 = vunpack.c.l.b16 %v125
  %v422 = vunpack.c.l.b16 %v126
  %v423 = vunpack.c.l.b16 %v127
  %v424 = vunpack.c.l.b16 %v128
  %v425 = vunpack.c.l.b16 %v129
  %v426 = vunpack.c.l.b16 %v130
  %v427 = vunpack.c.l.b16 %v131
  %v428 = vunpack.c.l.b16 %v132
  %v429 = vunpack.c.l.b16 %v133
  %v430 = vunpack.c.l.b16 %v134
  %v431 = vunpack.c.l.b16 %v135
  %v432 = vunpack.c.l.b16 %v136
  %v433 = vunpack.c.l.b16 %v137
  %v434 = vunpack.c.l.b16 %v138
  %v435 = vunpack.c.l.b16 %v139
  %v436 = vunpack.c.l.b16 %v140
  %v437 = vunpack.c.l.b16 %v141
  %v438 = vunpack.c.l.b16 %v142
  %v439 = vunpack.c.l.b16 %v143
  %v440 = vunpack.c.l.b16 %v144
  %v441 = vunpack.c.l.b16 %v145
  %v442 = vunpack.c.l.b16 %v146
  %v443 = vunpack.c.l.b16 %v147
  %v444 = vunpack.c.l.b16 %v148
  %v445 = vunpack.c.l.b16 %v149
  %v446 = vunpack.c.l.b16 %v150
  %v447 = vunpack.c.l.b16 %v151
  %v448 = vunpack.c.l.b16 %v152
  %v449 = vunpack.c.l.b16 %v153
  %v450 = vunpack.c.l.b16 %v154
  %v451 = vpack.c.b16 %v340, %v339
  %v452 = vpack.c.b16 %v342, %v341
  %v453 = vpack.c.b16 %v344, %v343
  %v454 = vpack.c.b16 %v346, %v345
  %v455 = vpack.c.b16 %v348, %v347
  %v456 = vpack.c.b16 %v350, %v349
  %v457 = vpack.c.b16 %v352, %v351
  %v458 = vpack.c.b16 %v354, %v353
  %v459 = vpack.c.b16 %v356, %v355
  %v460 = vpack.c.b16 %v358, %v357
  %v461 = vpack.c.b16 %v360, %v359
  %v462 = vpack.c.b16 %v362, %v361
  %v463 = vpack.c.b16 %v364, %v363
  %v464 = vpack.c.b16 %v366, %v365
  %v465 = vpack.c.b16 %v368, %v367
  %v466 = vpack.c.b16 %v370, %v369
  %v467 = vpack.c.b16 %v372, %v371
  %v468 = vpack.c.b16 %v374, %v373
  %v469 = vpack.c.b16 %v376, %v375
  %v470 = vpack.c.b16 %v378, %v377
  %v471 = vpack.c.b16 %v380, %v379
  %v472 = vpack.c.b16 %v382, %v381
  %v473 = vpack.c.b16 %v384, %v383
  %v474 = vpack.c.b16 %v386, %v385
  %v475 = vpack.c.b16 %v388, %v387
  %v476 = vpack.c.b16 %v390, %v389
  %v477 = vpack.c.b16 %v392, %v391
  %v478 = vpack.c.b16 %v394, %v393
  %v479 = vpack.c.b16 %v396, %v395
  %v480 = vpack.c.b16 %v398, %v397
  %v481 = vpack.c.b16 %v400, %v399
  %v482 = vpack.c.b16 %v402, %v401
  %v483 = vpack.c.b16 %v404, %v403
  %v484 = vpack.c.b16 %v406, %v405
  %v485 = vpack.c.b16 %v408, %v407
  %v486 = vpack.c.b16 %v410, %v409
  %v487 = vpack.c.b16 %v412, %v411
  %v488 = vpack.c.b16 %v414, %v413
  %v489 = vpack.c.b16 %v416, %v415
  %v490 = vpack.c.b16 %v418, %v417
  %v491 = vpack.c.b16 %v420, %v419
  %v492 = vpack.c.b16 %v422, %v421
  %v493 = vpack.c.b16 %v424, %v423
  %v494 = vpack.c.b16 %v426, %v425
  %v495 = vpack.c.b16 %v428, %v427
  %v496 = vpack.c.b16 %v430, %v429
  %v497 = vpack.c.b16 %v432, %v431
  %v498 = vpack.c.b16 %v434, %v433
  %v499 = vpack.c.b16 %v436, %v435
  %v500 = vpack.c.b16 %v438, %v437
  %v501 = vpack.c.b16 %v440, %v439
  %v502 = vpack.c.b16 %v442, %v441
  %v503 = vpack.c.b16 %v444, %v443
  %v504 = vpack.c.b16 %v446, %v445
  %v505 = vpack.c.b16 %v448, %v447
  %v506 = vpack.c.b16 %v450, %v449
  %563 = vmatprep.subr.bf16.mxu0 0
  %564 = vmatpush1.bf16.msra.mxu0 %v458
  %565 = vmatprep.subr.bf16.mxu0 0
  %566 = vmatpush1.bf16.msra.mxu0 %v457
  %567 = vmatprep.subr.bf16.mxu0 0
  %568 = vmatpush1.bf16.msra.mxu0 %v456
  %569 = vmatprep.subr.bf16.mxu0 0
  %570 = vmatpush1.bf16.msra.mxu0 %v455
  %571 = vmatprep.subr.bf16.mxu0 0
  %572 = vmatpush1.bf16.msra.mxu0 %v454
  %573 = vmatprep.subr.bf16.mxu0 0
  %574 = vmatpush1.bf16.msra.mxu0 %v453
  %575 = vmatprep.subr.bf16.mxu0 0
  %576 = vmatpush1.bf16.msra.mxu0 %v452
  %577 = vmatprep.subr.bf16.mxu0 0
  %578 = vmatpush1.bf16.msra.mxu0 %v451
  %579 = vmatprep.subr.bf16.mxu0 0
  %580 = vmatpush2.bf16.msra.mxu0 %v466
  %581 = vmatprep.subr.bf16.mxu0 0
  %582 = vmatpush2.bf16.msra.mxu0 %v465
  %583 = vmatprep.subr.bf16.mxu0 0
  %584 = vmatpush2.bf16.msra.mxu0 %v464
  %585 = vmatprep.subr.bf16.mxu0 0
  %586 = vmatpush2.bf16.msra.mxu0 %v463
  %587 = vmatprep.subr.bf16.mxu0 0
  %588 = vmatpush2.bf16.msra.mxu0 %v462
  %589 = vmatprep.subr.bf16.mxu0 0
  %590 = vmatpush2.bf16.msra.mxu0 %v461
  %591 = vmatprep.subr.bf16.mxu0 0
  %592 = vmatpush2.bf16.msra.mxu0 %v460
  %593 = vmatprep.subr.bf16.mxu0 0
  %594 = vmatpush2.bf16.msra.mxu0 %v459
  %595 = vmatprep.mubr.bf16.mxu0 %v200
  %596 = vmatmul.mubr.bf16.gmra.mxu0 %v199
  %v597 = vpop.f32.mrf.mxu0
  %v598 = vadd.f32 0.0, %v597
  %v599 = vpop.f32.mrf.mxu0
  %v600 = vpop.f32.mrf.mxu0
  %v601 = vadd.f32 0.0, %v600
  %v602 = vpop.f32.mrf.mxu0
  %603 = vmatprep.mubr.bf16.mxu0 %v207
  %604 = vmatmul.mubr.bf16.gmra.mxu0 %v206
  %v605 = vpop.f32.mrf.mxu0
  %v606 = vadd.f32 0.0, %v605
  %v607 = vpop.f32.mrf.mxu0
  %v608 = vpop.f32.mrf.mxu0
  %v609 = vadd.f32 0.0, %v608
  %v610 = vpop.f32.mrf.mxu0
  %611 = vdwg.mxu0
  %612 = vmatprep.subr.bf16.mxu0 0
  %613 = vmatpush1.bf16.msra.mxu0 %v474
  %614 = vmatprep.subr.bf16.mxu0 0
  %615 = vmatpush1.bf16.msra.mxu0 %v473
  %616 = vmatprep.subr.bf16.mxu0 0
  %617 = vmatpush1.bf16.msra.mxu0 %v472
  %618 = vmatprep.subr.bf16.mxu0 0
  %619 = vmatpush1.bf16.msra.mxu0 %v471
  %620 = vmatprep.subr.bf16.mxu0 0
  %621 = vmatpush1.bf16.msra.mxu0 %v470
  %622 = vmatprep.subr.bf16.mxu0 0
  %623 = vmatpush1.bf16.msra.mxu0 %v469
  %624 = vmatprep.subr.bf16.mxu0 0
  %625 = vmatpush1.bf16.msra.mxu0 %v468
  %626 = vmatprep.subr.bf16.mxu0 0
  %627 = vmatpush1.bf16.msra.mxu0 %v467
  %628 = vmatprep.subr.bf16.mxu0 0
  %629 = vmatpush2.bf16.msra.mxu0 %v482
  %630 = vmatprep.subr.bf16.mxu0 0
  %631 = vmatpush2.bf16.msra.mxu0 %v481
  %632 = vmatprep.subr.bf16.mxu0 0
  %633 = vmatpush2.bf16.msra.mxu0 %v480
  %634 = vmatprep.subr.bf16.mxu0 0
  %635 = vmatpush2.bf16.msra.mxu0 %v479
  %636 = vmatprep.subr.bf16.mxu0 0
  %637 = vmatpush2.bf16.msra.mxu0 %v478
  %638 = vmatprep.subr.bf16.mxu0 0
  %639 = vmatpush2.bf16.msra.mxu0 %v477
  %640 = vmatprep.subr.bf16.mxu0 0
  %641 = vmatpush2.bf16.msra.mxu0 %v476
  %642 = vmatprep.subr.bf16.mxu0 0
  %643 = vmatpush2.bf16.msra.mxu0 %v475
  %644 = vmatprep.mubr.bf16.mxu0 %v202
  %645 = vmatmul.mubr.bf16.gmra.mxu0 %v201
  %v646 = vpop.f32.mrf.mxu0
  %v647 = vadd.f32 %v598, %v646
  %v648 = vpop.f32.mrf.mxu0
  %v649 = vpop.f32.mrf.mxu0
  %v650 = vadd.f32 %v601, %v649
  %v651 = vpop.f32.mrf.mxu0
  %652 = vmatprep.mubr.bf16.mxu0 %v209
  %653 = vmatmul.mubr.bf16.gmra.mxu0 %v208
  %v654 = vpop.f32.mrf.mxu0
  %v655 = vadd.f32 %v606, %v654
  %v656 = vpop.f32.mrf.mxu0
  %v657 = vpop.f32.mrf.mxu0
  %v658 = vadd.f32 %v609, %v657
  %v659 = vpop.f32.mrf.mxu0
  %660 = vdwg.mxu0
  %661 = vmatprep.subr.bf16.mxu0 0
  %662 = vmatpush1.bf16.msra.mxu0 %v490
  %663 = vmatprep.subr.bf16.mxu0 0
  %664 = vmatpush1.bf16.msra.mxu0 %v489
  %665 = vmatprep.subr.bf16.mxu0 0
  %666 = vmatpush1.bf16.msra.mxu0 %v488
  %667 = vmatprep.subr.bf16.mxu0 0
  %668 = vmatpush1.bf16.msra.mxu0 %v487
  %669 = vmatprep.subr.bf16.mxu0 0
  %670 = vmatpush1.bf16.msra.mxu0 %v486
  %671 = vmatprep.subr.bf16.mxu0 0
  %672 = vmatpush1.bf16.msra.mxu0 %v485
  %673 = vmatprep.subr.bf16.mxu0 0
  %674 = vmatpush1.bf16.msra.mxu0 %v484
  %675 = vmatprep.subr.bf16.mxu0 0
  %676 = vmatpush1.bf16.msra.mxu0 %v483
  %677 = vmatprep.subr.bf16.mxu0 0
  %678 = vmatpush2.bf16.msra.mxu0 %v498
  %679 = vmatprep.subr.bf16.mxu0 0
  %680 = vmatpush2.bf16.msra.mxu0 %v497
  %681 = vmatprep.subr.bf16.mxu0 0
  %682 = vmatpush2.bf16.msra.mxu0 %v496
  %683 = vmatprep.subr.bf16.mxu0 0
  %684 = vmatpush2.bf16.msra.mxu0 %v495
  %685 = vmatprep.subr.bf16.mxu0 0
  %686 = vmatpush2.bf16.msra.mxu0 %v494
  %687 = vmatprep.subr.bf16.mxu0 0
  %688 = vmatpush2.bf16.msra.mxu0 %v493
  %689 = vmatprep.subr.bf16.mxu0 0
  %690 = vmatpush2.bf16.msra.mxu0 %v492
  %691 = vmatprep.subr.bf16.mxu0 0
  %692 = vmatpush2.bf16.msra.mxu0 %v491
  %693 = vmatprep.mubr.bf16.mxu0 %v204
  %694 = vmatmul.mubr.bf16.gmra.mxu0 %v203
  %v695 = vpop.f32.mrf.mxu0
  %v696 = vadd.f32 %v647, %v695
  %v697 = vpop.f32.mrf.mxu0
  %v698 = vpop.f32.mrf.mxu0
  %v699 = vadd.f32 %v650, %v698
  %v700 = vpop.f32.mrf.mxu0
  %701 = vmatprep.mubr.bf16.mxu0 %v211
  %702 = vmatmul.mubr.bf16.gmra.mxu0 %v210
  %v703 = vpop.f32.mrf.mxu0
  %v704 = vadd.f32 %v655, %v703
  %v705 = vpop.f32.mrf.mxu0
  %v706 = vpop.f32.mrf.mxu0
  %v707 = vadd.f32 %v658, %v706
  %v708 = vpop.f32.mrf.mxu0
  %709 = vdwg.mxu0
  %710 = vmatprep.subr.bf16.mxu0 0
  %711 = vmatpush1.bf16.msra.mxu0 %v506
  %712 = vmatprep.subr.bf16.mxu0 0
  %713 = vmatpush1.bf16.msra.mxu0 %v505
  %714 = vmatprep.subr.bf16.mxu0 0
  %715 = vmatpush1.bf16.msra.mxu0 %v504
  %716 = vmatprep.subr.bf16.mxu0 0
  %717 = vmatpush1.bf16.msra.mxu0 %v503
  %718 = vmatprep.subr.bf16.mxu0 0
  %719 = vmatpush1.bf16.msra.mxu0 %v502
  %720 = vmatprep.subr.bf16.mxu0 0
  %721 = vmatpush1.bf16.msra.mxu0 %v501
  %722 = vmatprep.subr.bf16.mxu0 0
  %723 = vmatpush1.bf16.msra.mxu0 %v500
  %724 = vmatprep.subr.bf16.mxu0 0
  %725 = vmatpush1.bf16.msra.mxu0 %v499
  %726 = vmatprep.subr.bf16.mxu0 0
  %727 = vmatpush2.bf16.msra.mxu0 0
  %728 = vmatprep.subr.bf16.mxu0 0
  %729 = vmatpush2.bf16.msra.mxu0 0
  %730 = vmatprep.subr.bf16.mxu0 0
  %731 = vmatpush2.bf16.msra.mxu0 0
  %732 = vmatprep.subr.bf16.mxu0 0
  %733 = vmatpush2.bf16.msra.mxu0 0
  %734 = vmatprep.subr.bf16.mxu0 0
  %735 = vmatpush2.bf16.msra.mxu0 0
  %736 = vmatprep.subr.bf16.mxu0 0
  %737 = vmatpush2.bf16.msra.mxu0 0
  %738 = vmatprep.subr.bf16.mxu0 0
  %739 = vmatpush2.bf16.msra.mxu0 0
  %740 = vmatprep.subr.bf16.mxu0 0
  %741 = vmatpush2.bf16.msra.mxu0 0
  %742 = vmatprep.mubr.bf16.mxu0 0
  %743 = vmatmul.mubr.bf16.gmra.mxu0 %v205
  %v744 = vpop.f32.mrf.mxu0
  %v745 = vadd.f32 %v696, %v744
  %v746 = vpop.f32.mrf.mxu0
  %v747 = vpop.f32.mrf.mxu0
  %v748 = vadd.f32 %v699, %v747
  %v749 = vpop.f32.mrf.mxu0
  %750 = vmatprep.mubr.bf16.mxu0 0
  %751 = vmatmul.mubr.bf16.gmra.mxu0 %v212
  %v752 = vpop.f32.mrf.mxu0
  %v753 = vadd.f32 %v704, %v752
  %v754 = vpop.f32.mrf.mxu0
  %v755 = vpop.f32.mrf.mxu0
  %v756 = vadd.f32 %v707, %v755
  %v757 = vpop.f32.mrf.mxu0
  %758 = vdwg.mxu0
  %v759 = vadd.f32 %v23, %v745
  %v760 = vadd.f32 %v24, %v748
  %v761 = vadd.f32 %v25, %v753
  %v762 = vadd.f32 %v26, %v756
  %763 = vst [vmem:[#allocation2] sm:$0xff] %v759
  %764 = vst [vmem:[#allocation2 + $0x8] sm:$0xff] %v760
  %765 = vst [vmem:[#allocation2 + $0x10] sm:$0xff] %v761
  %766 = vst [vmem:[#allocation2 + $0x18] sm:$0xff] %v762
  // Predicated region
  $region18: #{dekm_ae_forward.9} parent=0 // pred_check
    %p767 = pneg %p15
  $region19: #{dekm_ae_forward.9} parent=0 // pred_check_branch
    %769 = sbr.rel (%p767) target = $region21
  $region20: #{dekm_ae_forward.9} parent=0 // pred_region
    %v770 = vld [vmem:[#allocation2] sm:$0xff]
    %v771 = vld [vmem:[#allocation2 + $0x8] sm:$0xff]
    %v772 = vld [vmem:[#allocation2 + $0x10] sm:$0xff]
    %v773 = vld [vmem:[#allocation2 + $0x18] sm:$0xff]
    %v774 = vld [vmem:[%s2] sm:$0x1]
    %v776 = vlaneseq
    %v777 = vshrl.u32 %v776, 7
    %v778 = vsub.s32 0, %v777
    %v779 = vrot.slane %v774, %v778
    %v781 = vadd.f32 %v770, %v779
    %v782 = vadd.f32 %v771, %v779
    %v783 = vadd.f32 %v772, %v779
    %v784 = vadd.f32 %v773, %v779
    %v785 = vmax.f32 %v781, 0.0
    %v786 = vmax.f32 %v782, 0.0
    %v787 = vmax.f32 %v783, 0.0
    %v788 = vmax.f32 %v784, 0.0
    %v789 = vpack.c.bf16 %v786, %v785
    %v790 = vpack.c.bf16 %v788, %v787
    %v793 = vunpack.c.l.b16 %v789
    %v794 = vunpack.c.h.b16 %v789
    %v795 = vunpack.c.l.b16 %v790
    %v796 = vunpack.c.h.b16 %v790
    %v797 = vpack.c.b16 %v793, %v793
    %v798 = vpack.c.b16 %v794, %v794
    %v799 = vpack.c.b16 %v795, %v795
    %v800 = vpack.c.b16 %v796, %v796
    %805 = vst [vmem:[%s3] sm:$0xf] %v797
    %806 = vst [vmem:[%s3 + $0x4] sm:$0xf] %v798
    %807 = vst [vmem:[%s3 + $0x8] sm:$0xf] %v799
    %808 = vst [vmem:[%s3 + $0xc] sm:$0xf] %v800
  $region21: #{dekm_ae_forward.9} parent=0 // pred_fallthru
    _
  // Predicated region
  $region22: #{dekm_ae_forward.9} parent=0 // pred_check
    _
  $region23: #{dekm_ae_forward.9} parent=0 // pred_check_branch
    %810 = sbr.rel (0) target = $region25
  $region24: #{dekm_ae_forward.9} parent=0 // pred_region
    _
  $region25: #{dekm_ae_forward.9} parent=0 // pred_fallthru
    _
  // Predicated region
  $region26: #{dekm_ae_forward.9} parent=0 // pred_check
    _
  $region27: #{dekm_ae_forward.9} parent=0 // pred_check_branch
    %812 = sbr.rel (0) target = $region29
  $region28: #{dekm_ae_forward.9} parent=0 // pred_region
    _
  $region29: #{dekm_ae_forward.9} parent=0 // pred_fallthru
    _

// kernel: dekm_ae_forward.12
$region0: #{dekm_ae_forward.12}
  #allocation0 [shape = 'u32[]', space=smem, size = 0x4, offset = 0x4, fixed_abs, tag = 'smem constant byte address 0x4 - core index']
  #allocation1 [shape = 'u32[144,128]{1,0:T(1,128)}', space=vmem, size = 0x12000, scoped, tag = 'internal scratch']
  #allocation2 [shape = 'f32[16,128]{1,0:T(8,128)}', space=vmem, size = 0x2000, scoped, tag = 'scratch operand']
  %s0 = inlined_call_operand.vmem [shape: bf16[16,128], index: 0, kind: input, shape index: {}]
  %s1 = inlined_call_operand.vmem [shape: bf16[128,128], index: 1, kind: input, shape index: {}]
  %s2 = inlined_call_operand.vmem [shape: f32[1,128], index: 2, kind: input, shape index: {}]
  %s3 = inlined_call_operand.vmem [shape: bf16[16,128], index: 3, kind: output, shape index: {}]
  %s4 = sld [smem:[#allocation0]]
  $region30: #{dekm_ae_forward.12} parent=0
    _
  %s6 = ssub.s32 1, %s4
  %s7 = scalar_select 0, %s6, %s4
  // Predicated region
  $region2: #{dekm_ae_forward.12} parent=0 // pred_check
    _
  $region3: #{dekm_ae_forward.12} parent=0 // pred_check_branch
    %9 = sbr.rel (0) target = $region5
  $region4: #{dekm_ae_forward.12} parent=0 // pred_region
    _
  $region5: #{dekm_ae_forward.12} parent=0 // pred_fallthru
    _
  // Predicated region
  $region6: #{dekm_ae_forward.12} parent=0 // pred_check
    _
  $region7: #{dekm_ae_forward.12} parent=0 // pred_check_branch
    %11 = sbr.rel (0) target = $region9
  $region8: #{dekm_ae_forward.12} parent=0 // pred_region
    _
  $region9: #{dekm_ae_forward.12} parent=0 // pred_fallthru
    _
  // Predicated region
  $region10: #{dekm_ae_forward.12} parent=0 // pred_check
    _
  $region11: #{dekm_ae_forward.12} parent=0 // pred_check_branch
    %13 = sbr.rel (0) target = $region13
  $region12: #{dekm_ae_forward.12} parent=0 // pred_region
    _
  $region13: #{dekm_ae_forward.12} parent=0 // pred_fallthru
    _
  %p15 = scmp.eq.s32.totalorder 0, 0
  // Predicated region
  $region14: #{dekm_ae_forward.12} parent=0 // pred_check
    %p16 = pneg %p15
  $region15: #{dekm_ae_forward.12} parent=0 // pred_check_branch
    %18 = sbr.rel (%p16) target = $region17
  $region16: #{dekm_ae_forward.12} parent=0 // pred_region
    %19 = vst [vmem:[#allocation2] sm:$0xff] 0.0
    %20 = vst [vmem:[#allocation2 + $0x8] sm:$0xff] 0.0
  $region17: #{dekm_ae_forward.12} parent=0 // pred_fallthru
    _
  %v21 = vld [vmem:[#allocation2] sm:$0xff]
  %v22 = vld [vmem:[#allocation2 + $0x8] sm:$0xff]
  %v23 = vld [vmem:[%s0] sm:$0xf]
  %v24 = vld [vmem:[%s0 + $0x4] sm:$0xf]
  %v25 = vld [vmem:[%s1] sm:$0xf]
  %v26 = vld [vmem:[%s1 + $0x4] sm:$0xf]
  %v27 = vld [vmem:[%s1 + $0x8] sm:$0xf]
  %v28 = vld [vmem:[%s1 + $0xc] sm:$0xf]
  %v29 = vld [vmem:[%s1 + $0x10] sm:$0xf]
  %v30 = vld [vmem:[%s1 + $0x14] sm:$0xf]
  %v31 = vld [vmem:[%s1 + $0x18] sm:$0xf]
  %v32 = vld [vmem:[%s1 + $0x1c] sm:$0xf]
  %v33 = vld [vmem:[%s1 + $0x20] sm:$0xf]
  %v34 = vld [vmem:[%s1 + $0x24] sm:$0xf]
  %v35 = vld [vmem:[%s1 + $0x28] sm:$0xf]
  %v36 = vld [vmem:[%s1 + $0x2c] sm:$0xf]
  %v37 = vld [vmem:[%s1 + $0x30] sm:$0xf]
  %v38 = vld [vmem:[%s1 + $0x34] sm:$0xf]
  %v39 = vld [vmem:[%s1 + $0x38] sm:$0xf]
  %v40 = vld [vmem:[%s1 + $0x3c] sm:$0xf]
  %v43 = vunpack.c.l.b16 %v23
  %v44 = vunpack.c.l.b16 %v24
  %v45 = vpack.c.b16 %v44, %v43
  %v63 = vunpack.c.l.b16 %v25
  %v64 = vunpack.c.l.b16 %v26
  %v65 = vunpack.c.l.b16 %v27
  %v66 = vunpack.c.l.b16 %v28
  %v67 = vunpack.c.l.b16 %v29
  %v68 = vunpack.c.l.b16 %v30
  %v69 = vunpack.c.l.b16 %v31
  %v70 = vunpack.c.l.b16 %v32
  %v71 = vunpack.c.l.b16 %v33
  %v72 = vunpack.c.l.b16 %v34
  %v73 = vunpack.c.l.b16 %v35
  %v74 = vunpack.c.l.b16 %v36
  %v75 = vunpack.c.l.b16 %v37
  %v76 = vunpack.c.l.b16 %v38
  %v77 = vunpack.c.l.b16 %v39
  %v78 = vunpack.c.l.b16 %v40
  %v79 = vpack.c.b16 %v64, %v63
  %v80 = vpack.c.b16 %v66, %v65
  %v81 = vpack.c.b16 %v68, %v67
  %v82 = vpack.c.b16 %v70, %v69
  %v83 = vpack.c.b16 %v72, %v71
  %v84 = vpack.c.b16 %v74, %v73
  %v85 = vpack.c.b16 %v76, %v75
  %v86 = vpack.c.b16 %v78, %v77
  %95 = vmatprep.subr.bf16.mxu0 0
  %96 = vmatpush1.bf16.msra.mxu0 %v86
  %97 = vmatprep.subr.bf16.mxu0 0
  %98 = vmatpush1.bf16.msra.mxu0 %v85
  %99 = vmatprep.subr.bf16.mxu0 0
  %100 = vmatpush1.bf16.msra.mxu0 %v84
  %101 = vmatprep.subr.bf16.mxu0 0
  %102 = vmatpush1.bf16.msra.mxu0 %v83
  %103 = vmatprep.subr.bf16.mxu0 0
  %104 = vmatpush1.bf16.msra.mxu0 %v82
  %105 = vmatprep.subr.bf16.mxu0 0
  %106 = vmatpush1.bf16.msra.mxu0 %v81
  %107 = vmatprep.subr.bf16.mxu0 0
  %108 = vmatpush1.bf16.msra.mxu0 %v80
  %109 = vmatprep.subr.bf16.mxu0 0
  %110 = vmatpush1.bf16.msra.mxu0 %v79
  %111 = vmatprep.subr.bf16.mxu0 0
  %112 = vmatpush2.bf16.msra.mxu0 0
  %113 = vmatprep.subr.bf16.mxu0 0
  %114 = vmatpush2.bf16.msra.mxu0 0
  %115 = vmatprep.subr.bf16.mxu0 0
  %116 = vmatpush2.bf16.msra.mxu0 0
  %117 = vmatprep.subr.bf16.mxu0 0
  %118 = vmatpush2.bf16.msra.mxu0 0
  %119 = vmatprep.subr.bf16.mxu0 0
  %120 = vmatpush2.bf16.msra.mxu0 0
  %121 = vmatprep.subr.bf16.mxu0 0
  %122 = vmatpush2.bf16.msra.mxu0 0
  %123 = vmatprep.subr.bf16.mxu0 0
  %124 = vmatpush2.bf16.msra.mxu0 0
  %125 = vmatprep.subr.bf16.mxu0 0
  %126 = vmatpush2.bf16.msra.mxu0 0
  %127 = vmatprep.mubr.bf16.mxu0 0
  %128 = vmatmul.mubr.bf16.gmra.mxu0 %v45
  %v129 = vpop.f32.mrf.mxu0
  %v130 = vadd.f32 0.0, %v129
  %v131 = vpop.f32.mrf.mxu0
  %v132 = vpop.f32.mrf.mxu0
  %v133 = vadd.f32 0.0, %v132
  %v134 = vpop.f32.mrf.mxu0
  %135 = vdwg.mxu0
  %v136 = vadd.f32 %v21, %v130
  %v137 = vadd.f32 %v22, %v133
  %138 = vst [vmem:[#allocation2] sm:$0xff] %v136
  %139 = vst [vmem:[#allocation2 + $0x8] sm:$0xff] %v137
  // Predicated region
  $region18: #{dekm_ae_forward.12} parent=0 // pred_check
    %p140 = pneg %p15
  $region19: #{dekm_ae_forward.12} parent=0 // pred_check_branch
    %142 = sbr.rel (%p140) target = $region21
  $region20: #{dekm_ae_forward.12} parent=0 // pred_region
    %v143 = vld [vmem:[#allocation2] sm:$0xff]
    %v144 = vld [vmem:[#allocation2 + $0x8] sm:$0xff]
    %v145 = vld [vmem:[%s2] sm:$0x1]
    %v147 = vlaneseq
    %v148 = vshrl.u32 %v147, 7
    %v149 = vsub.s32 0, %v148
    %v150 = vrot.slane %v145, %v149
    %v152 = vadd.f32 %v143, %v150
    %v153 = vadd.f32 %v144, %v150
    %v154 = vmax.f32 %v152, 0.0
    %v155 = vmax.f32 %v153, 0.0
    %v156 = vpack.c.bf16 %v155, %v154
    %v158 = vunpack.c.l.b16 %v156
    %v159 = vunpack.c.h.b16 %v156
    %v160 = vpack.c.b16 %v158, %v158
    %v161 = vpack.c.b16 %v159, %v159
    %164 = vst [vmem:[%s3] sm:$0xf] %v160
    %165 = vst [vmem:[%s3 + $0x4] sm:$0xf] %v161
  $region21: #{dekm_ae_forward.12} parent=0 // pred_fallthru
    _
  // Predicated region
  $region22: #{dekm_ae_forward.12} parent=0 // pred_check
    _
  $region23: #{dekm_ae_forward.12} parent=0 // pred_check_branch
    %167 = sbr.rel (0) target = $region25
  $region24: #{dekm_ae_forward.12} parent=0 // pred_region
    _
  $region25: #{dekm_ae_forward.12} parent=0 // pred_fallthru
    _
  // Predicated region
  $region26: #{dekm_ae_forward.12} parent=0 // pred_check
    _
  $region27: #{dekm_ae_forward.12} parent=0 // pred_check_branch
    %169 = sbr.rel (0) target = $region29
  $region28: #{dekm_ae_forward.12} parent=0 // pred_region
    _
  $region29: #{dekm_ae_forward.12} parent=0 // pred_fallthru
    _

// kernel: dekm_ae_forward.13
$region0: #{dekm_ae_forward.13}
  #allocation0 [shape = 'u32[]', space=smem, size = 0x4, offset = 0x4, fixed_abs, tag = 'smem constant byte address 0x4 - core index']
  #allocation1 [shape = 'u32[144,128]{1,0:T(1,128)}', space=vmem, size = 0x12000, scoped, tag = 'internal scratch']
  #allocation2 [shape = 'f32[16,640]{1,0:T(8,128)}', space=vmem, size = 0xa000, scoped, tag = 'scratch operand']
  %s0 = inlined_call_operand.vmem [shape: bf16[16,128], index: 0, kind: input, shape index: {}]
  %s1 = inlined_call_operand.vmem [shape: bf16[128,640], index: 1, kind: input, shape index: {}]
  %s2 = inlined_call_operand.vmem [shape: f32[1,640], index: 2, kind: input, shape index: {}]
  %s3 = inlined_call_operand.vmem [shape: f32[16,640], index: 3, kind: output, shape index: {}]
  %s4 = sld [smem:[#allocation0]]
  $region30: #{dekm_ae_forward.13} parent=0
    _
  %s6 = ssub.s32 1, %s4
  %s7 = scalar_select 0, %s6, %s4
  // Predicated region
  $region2: #{dekm_ae_forward.13} parent=0 // pred_check
    _
  $region3: #{dekm_ae_forward.13} parent=0 // pred_check_branch
    %9 = sbr.rel (0) target = $region5
  $region4: #{dekm_ae_forward.13} parent=0 // pred_region
    _
  $region5: #{dekm_ae_forward.13} parent=0 // pred_fallthru
    _
  // Predicated region
  $region6: #{dekm_ae_forward.13} parent=0 // pred_check
    _
  $region7: #{dekm_ae_forward.13} parent=0 // pred_check_branch
    %11 = sbr.rel (0) target = $region9
  $region8: #{dekm_ae_forward.13} parent=0 // pred_region
    _
  $region9: #{dekm_ae_forward.13} parent=0 // pred_fallthru
    _
  // Predicated region
  $region10: #{dekm_ae_forward.13} parent=0 // pred_check
    _
  $region11: #{dekm_ae_forward.13} parent=0 // pred_check_branch
    %13 = sbr.rel (0) target = $region13
  $region12: #{dekm_ae_forward.13} parent=0 // pred_region
    _
  $region13: #{dekm_ae_forward.13} parent=0 // pred_fallthru
    _
  %p15 = scmp.eq.s32.totalorder 0, 0
  // Predicated region
  $region14: #{dekm_ae_forward.13} parent=0 // pred_check
    %p16 = pneg %p15
  $region15: #{dekm_ae_forward.13} parent=0 // pred_check_branch
    %18 = sbr.rel (%p16) target = $region17
  $region16: #{dekm_ae_forward.13} parent=0 // pred_region
    %19 = vst [vmem:[#allocation2] sm:$0xff] 0.0
    %20 = vst [vmem:[#allocation2 + $0x8] sm:$0xff] 0.0
    %21 = vst [vmem:[#allocation2 + $0x10] sm:$0xff] 0.0
    %22 = vst [vmem:[#allocation2 + $0x18] sm:$0xff] 0.0
    %23 = vst [vmem:[#allocation2 + $0x20] sm:$0xff] 0.0
    %24 = vst [vmem:[#allocation2 + $0x28] sm:$0xff] 0.0
    %25 = vst [vmem:[#allocation2 + $0x30] sm:$0xff] 0.0
    %26 = vst [vmem:[#allocation2 + $0x38] sm:$0xff] 0.0
    %27 = vst [vmem:[#allocation2 + $0x40] sm:$0xff] 0.0
    %28 = vst [vmem:[#allocation2 + $0x48] sm:$0xff] 0.0
  $region17: #{dekm_ae_forward.13} parent=0 // pred_fallthru
    _
  %v29 = vld [vmem:[#allocation2] sm:$0xff]
  %v30 = vld [vmem:[#allocation2 + $0x8] sm:$0xff]
  %v31 = vld [vmem:[#allocation2 + $0x10] sm:$0xff]
  %v32 = vld [vmem:[#allocation2 + $0x18] sm:$0xff]
  %v33 = vld [vmem:[#allocation2 + $0x20] sm:$0xff]
  %v34 = vld [vmem:[#allocation2 + $0x28] sm:$0xff]
  %v35 = vld [vmem:[#allocation2 + $0x30] sm:$0xff]
  %v36 = vld [vmem:[#allocation2 + $0x38] sm:$0xff]
  %v37 = vld [vmem:[#allocation2 + $0x40] sm:$0xff]
  %v38 = vld [vmem:[#allocation2 + $0x48] sm:$0xff]
  %v39 = vld [vmem:[%s0] sm:$0xf]
  %v40 = vld [vmem:[%s0 + $0x4] sm:$0xf]
  %v41 = vld [vmem:[%s1] sm:$0xff]
  %v42 = vld [vmem:[%s1 + $0x8] sm:$0xff]
  %v43 = vld [vmem:[%s1 + $0x10] sm:$0xf]
  %v44 = vld [vmem:[%s1 + $0x14] sm:$0xff]
  %v45 = vld [vmem:[%s1 + $0x1c] sm:$0xff]
  %v46 = vld [vmem:[%s1 + $0x24] sm:$0xf]
  %v47 = vld [vmem:[%s1 + $0x28] sm:$0xff]
  %v48 = vld [vmem:[%s1 + $0x30] sm:$0xff]
  %v49 = vld [vmem:[%s1 + $0x38] sm:$0xf]
  %v50 = vld [vmem:[%s1 + $0x3c] sm:$0xff]
  %v51 = vld [vmem:[%s1 + $0x44] sm:$0xff]
  %v52 = vld [vmem:[%s1 + $0x4c] sm:$0xf]
  %v53 = vld [vmem:[%s1 + $0x50] sm:$0xff]
  %v54 = vld [vmem:[%s1 + $0x58] sm:$0xff]
  %v55 = vld [vmem:[%s1 + $0x60] sm:$0xf]
  %v56 = vld [vmem:[%s1 + $0x64] sm:$0xff]
  %v57 = vld [vmem:[%s1 + $0x6c] sm:$0xff]
  %v58 = vld [vmem:[%s1 + $0x74] sm:$0xf]
  %v59 = vld [vmem:[%s1 + $0x78] sm:$0xff]
  %v60 = vld [vmem:[%s1 + $0x80] sm:$0xff]
  %v61 = vld [vmem:[%s1 + $0x88] sm:$0xf]
  %v62 = vld [vmem:[%s1 + $0x8c] sm:$0xff]
  %v63 = vld [vmem:[%s1 + $0x94] sm:$0xff]
  %v64 = vld [vmem:[%s1 + $0x9c] sm:$0xf]
  %v65 = vld [vmem:[%s1 + $0xa0] sm:$0xff]
  %v66 = vld [vmem:[%s1 + $0xa8] sm:$0xff]
  %v67 = vld [vmem:[%s1 + $0xb0] sm:$0xf]
  %v68 = vld [vmem:[%s1 + $0xb4] sm:$0xff]
  %v69 = vld [vmem:[%s1 + $0xbc] sm:$0xff]
  %v70 = vld [vmem:[%s1 + $0xc4] sm:$0xf]
  %v71 = vld [vmem:[%s1 + $0xc8] sm:$0xff]
  %v72 = vld [vmem:[%s1 + $0xd0] sm:$0xff]
  %v73 = vld [vmem:[%s1 + $0xd8] sm:$0xf]
  %v74 = vld [vmem:[%s1 + $0xdc] sm:$0xff]
  %v75 = vld [vmem:[%s1 + $0xe4] sm:$0xff]
  %v76 = vld [vmem:[%s1 + $0xec] sm:$0xf]
  %v77 = vld [vmem:[%s1 + $0xf0] sm:$0xff]
  %v78 = vld [vmem:[%s1 + $0xf8] sm:$0xff]
  %v79 = vld [vmem:[%s1 + $0x100] sm:$0xf]
  %v80 = vld [vmem:[%s1 + $0x104] sm:$0xff]
  %v81 = vld [vmem:[%s1 + $0x10c] sm:$0xff]
  %v82 = vld [vmem:[%s1 + $0x114] sm:$0xf]
  %v83 = vld [vmem:[%s1 + $0x118] sm:$0xff]
  %v84 = vld [vmem:[%s1 + $0x120] sm:$0xff]
  %v85 = vld [vmem:[%s1 + $0x128] sm:$0xf]
  %v86 = vld [vmem:[%s1 + $0x12c] sm:$0xff]
  %v87 = vld [vmem:[%s1 + $0x134] sm:$0xff]
  %v88 = vld [vmem:[%s1 + $0x13c] sm:$0xf]
  %v91 = vunpack.c.l.b16 %v39
  %v92 = vunpack.c.l.b16 %v40
  %v93 = vpack.c.b16 %v92, %v91
  %v143 = vunpack.c.l.b16 %v41
  %v144 = vunpack.c.h.b16 %v41
  %v145 = vunpack.c.l.b16 %v42
  %v146 = vunpack.c.h.b16 %v42
  %v147 = vunpack.c.l.b16 %v43
  %v148 = vunpack.c.l.b16 %v44
  %v149 = vunpack.c.h.b16 %v44
  %v150 = vunpack.c.l.b16 %v45
  %v151 = vunpack.c.h.b16 %v45
  %v152 = vunpack.c.l.b16 %v46
  %v153 = vunpack.c.l.b16 %v47
  %v154 = vunpack.c.h.b16 %v47
  %v155 = vunpack.c.l.b16 %v48
  %v156 = vunpack.c.h.b16 %v48
  %v157 = vunpack.c.l.b16 %v49
  %v158 = vunpack.c.l.b16 %v50
  %v159 = vunpack.c.h.b16 %v50
  %v160 = vunpack.c.l.b16 %v51
  %v161 = vunpack.c.h.b16 %v51
  %v162 = vunpack.c.l.b16 %v52
  %v163 = vunpack.c.l.b16 %v53
  %v164 = vunpack.c.h.b16 %v53
  %v165 = vunpack.c.l.b16 %v54
  %v166 = vunpack.c.h.b16 %v54
  %v167 = vunpack.c.l.b16 %v55
  %v168 = vunpack.c.l.b16 %v56
  %v169 = vunpack.c.h.b16 %v56
  %v170 = vunpack.c.l.b16 %v57
  %v171 = vunpack.c.h.b16 %v57
  %v172 = vunpack.c.l.b16 %v58
  %v173 = vunpack.c.l.b16 %v59
  %v174 = vunpack.c.h.b16 %v59
  %v175 = vunpack.c.l.b16 %v60
  %v176 = vunpack.c.h.b16 %v60
  %v177 = vunpack.c.l.b16 %v61
  %v178 = vunpack.c.l.b16 %v62
  %v179 = vunpack.c.h.b16 %v62
  %v180 = vunpack.c.l.b16 %v63
  %v181 = vunpack.c.h.b16 %v63
  %v182 = vunpack.c.l.b16 %v64
  %v183 = vunpack.c.l.b16 %v65
  %v184 = vunpack.c.h.b16 %v65
  %v185 = vunpack.c.l.b16 %v66
  %v186 = vunpack.c.h.b16 %v66
  %v187 = vunpack.c.l.b16 %v67
  %v188 = vunpack.c.l.b16 %v68
  %v189 = vunpack.c.h.b16 %v68
  %v190 = vunpack.c.l.b16 %v69
  %v191 = vunpack.c.h.b16 %v69
  %v192 = vunpack.c.l.b16 %v70
  %v193 = vunpack.c.l.b16 %v71
  %v194 = vunpack.c.h.b16 %v71
  %v195 = vunpack.c.l.b16 %v72
  %v196 = vunpack.c.h.b16 %v72
  %v197 = vunpack.c.l.b16 %v73
  %v198 = vunpack.c.l.b16 %v74
  %v199 = vunpack.c.h.b16 %v74
  %v200 = vunpack.c.l.b16 %v75
  %v201 = vunpack.c.h.b16 %v75
  %v202 = vunpack.c.l.b16 %v76
  %v203 = vunpack.c.l.b16 %v77
  %v204 = vunpack.c.h.b16 %v77
  %v205 = vunpack.c.l.b16 %v78
  %v206 = vunpack.c.h.b16 %v78
  %v207 = vunpack.c.l.b16 %v79
  %v208 = vunpack.c.l.b16 %v80
  %v209 = vunpack.c.h.b16 %v80
  %v210 = vunpack.c.l.b16 %v81
  %v211 = vunpack.c.h.b16 %v81
  %v212 = vunpack.c.l.b16 %v82
  %v213 = vunpack.c.l.b16 %v83
  %v214 = vunpack.c.h.b16 %v83
  %v215 = vunpack.c.l.b16 %v84
  %v216 = vunpack.c.h.b16 %v84
  %v217 = vunpack.c.l.b16 %v85
  %v218 = vunpack.c.l.b16 %v86
  %v219 = vunpack.c.h.b16 %v86
  %v220 = vunpack.c.l.b16 %v87
  %v221 = vunpack.c.h.b16 %v87
  %v222 = vunpack.c.l.b16 %v88
  %v223 = vpack.c.b16 %v148, %v143
  %v224 = vpack.c.b16 %v149, %v144
  %v225 = vpack.c.b16 %v150, %v145
  %v226 = vpack.c.b16 %v151, %v146
  %v227 = vpack.c.b16 %v152, %v147
  %v228 = vpack.c.b16 %v158, %v153
  %v229 = vpack.c.b16 %v159, %v154
  %v230 = vpack.c.b16 %v160, %v155
  %v231 = vpack.c.b16 %v161, %v156
  %v232 = vpack.c.b16 %v162, %v157
  %v233 = vpack.c.b16 %v168, %v163
  %v234 = vpack.c.b16 %v169, %v164
  %v235 = vpack.c.b16 %v170, %v165
  %v236 = vpack.c.b16 %v171, %v166
  %v237 = vpack.c.b16 %v172, %v167
  %v238 = vpack.c.b16 %v178, %v173
  %v239 = vpack.c.b16 %v179, %v174
  %v240 = vpack.c.b16 %v180, %v175
  %v241 = vpack.c.b16 %v181, %v176
  %v242 = vpack.c.b16 %v182, %v177
  %v243 = vpack.c.b16 %v188, %v183
  %v244 = vpack.c.b16 %v189, %v184
  %v245 = vpack.c.b16 %v190, %v185
  %v246 = vpack.c.b16 %v191, %v186
  %v247 = vpack.c.b16 %v192, %v187
  %v248 = vpack.c.b16 %v198, %v193
  %v249 = vpack.c.b16 %v199, %v194
  %v250 = vpack.c.b16 %v200, %v195
  %v251 = vpack.c.b16 %v201, %v196
  %v252 = vpack.c.b16 %v202, %v197
  %v253 = vpack.c.b16 %v208, %v203
  %v254 = vpack.c.b16 %v209, %v204
  %v255 = vpack.c.b16 %v210, %v205
  %v256 = vpack.c.b16 %v211, %v206
  %v257 = vpack.c.b16 %v212, %v207
  %v258 = vpack.c.b16 %v218, %v213
  %v259 = vpack.c.b16 %v219, %v214
  %v260 = vpack.c.b16 %v220, %v215
  %v261 = vpack.c.b16 %v221, %v216
  %v262 = vpack.c.b16 %v222, %v217
  %303 = vmatprep.subr.bf16.mxu0 %v259
  %304 = vmatpush1.bf16.msra.mxu0 %v258
  %305 = vmatprep.subr.bf16.mxu0 %v254
  %306 = vmatpush1.bf16.msra.mxu0 %v253
  %307 = vmatprep.subr.bf16.mxu0 %v249
  %308 = vmatpush1.bf16.msra.mxu0 %v248
  %309 = vmatprep.subr.bf16.mxu0 %v244
  %310 = vmatpush1.bf16.msra.mxu0 %v243
  %311 = vmatprep.subr.bf16.mxu0 %v239
  %312 = vmatpush1.bf16.msra.mxu0 %v238
  %313 = vmatprep.subr.bf16.mxu0 %v234
  %314 = vmatpush1.bf16.msra.mxu0 %v233
  %315 = vmatprep.subr.bf16.mxu0 %v229
  %316 = vmatpush1.bf16.msra.mxu0 %v228
  %317 = vmatprep.subr.bf16.mxu0 %v224
  %318 = vmatpush1.bf16.msra.mxu0 %v223
  %319 = vmatprep.subr.bf16.mxu0 0
  %320 = vmatpush2.bf16.msra.mxu0 0
  %321 = vmatprep.subr.bf16.mxu0 0
  %322 = vmatpush2.bf16.msra.mxu0 0
  %323 = vmatprep.subr.bf16.mxu0 0
  %324 = vmatpush2.bf16.msra.mxu0 0
  %325 = vmatprep.subr.bf16.mxu0 0
  %326 = vmatpush2.bf16.msra.mxu0 0
  %327 = vmatprep.subr.bf16.mxu0 0
  %328 = vmatpush2.bf16.msra.mxu0 0
  %329 = vmatprep.subr.bf16.mxu0 0
  %330 = vmatpush2.bf16.msra.mxu0 0
  %331 = vmatprep.subr.bf16.mxu0 0
  %332 = vmatpush2.bf16.msra.mxu0 0
  %333 = vmatprep.subr.bf16.mxu0 0
  %334 = vmatpush2.bf16.msra.mxu0 0
  %335 = vmatprep.mubr.bf16.mxu0 0
  %336 = vmatmul.mubr.bf16.gmra.mxu0 %v93
  %v337 = vpop.f32.mrf.mxu0
  %v338 = vadd.f32 0.0, %v337
  %v339 = vpop.f32.mrf.mxu0
  %v340 = vadd.f32 0.0, %v339
  %v341 = vpop.f32.mrf.mxu0
  %v342 = vadd.f32 0.0, %v341
  %v343 = vpop.f32.mrf.mxu0
  %v344 = vadd.f32 0.0, %v343
  %345 = vdwg.mxu0
  %346 = vmatprep.subr.bf16.mxu0 %v261
  %347 = vmatpush1.bf16.msra.mxu0 %v260
  %348 = vmatprep.subr.bf16.mxu0 %v256
  %349 = vmatpush1.bf16.msra.mxu0 %v255
  %350 = vmatprep.subr.bf16.mxu0 %v251
  %351 = vmatpush1.bf16.msra.mxu0 %v250
  %352 = vmatprep.subr.bf16.mxu0 %v246
  %353 = vmatpush1.bf16.msra.mxu0 %v245
  %354 = vmatprep.subr.bf16.mxu0 %v241
  %355 = vmatpush1.bf16.msra.mxu0 %v240
  %356 = vmatprep.subr.bf16.mxu0 %v236
  %357 = vmatpush1.bf16.msra.mxu0 %v235
  %358 = vmatprep.subr.bf16.mxu0 %v231
  %359 = vmatpush1.bf16.msra.mxu0 %v230
  %360 = vmatprep.subr.bf16.mxu0 %v226
  %361 = vmatpush1.bf16.msra.mxu0 %v225
  %362 = vmatprep.subr.bf16.mxu0 0
  %363 = vmatpush2.bf16.msra.mxu0 0
  %364 = vmatprep.subr.bf16.mxu0 0
  %365 = vmatpush2.bf16.msra.mxu0 0
  %366 = vmatprep.subr.bf16.mxu0 0
  %367 = vmatpush2.bf16.msra.mxu0 0
  %368 = vmatprep.subr.bf16.mxu0 0
  %369 = vmatpush2.bf16.msra.mxu0 0
  %370 = vmatprep.subr.bf16.mxu0 0
  %371 = vmatpush2.bf16.msra.mxu0 0
  %372 = vmatprep.subr.bf16.mxu0 0
  %373 = vmatpush2.bf16.msra.mxu0 0
  %374 = vmatprep.subr.bf16.mxu0 0
  %375 = vmatpush2.bf16.msra.mxu0 0
  %376 = vmatprep.subr.bf16.mxu0 0
  %377 = vmatpush2.bf16.msra.mxu0 0
  %378 = vmatprep.mubr.bf16.mxu0 0
  %379 = vmatmul.mubr.bf16.gmra.mxu0 %v93
  %v380 = vpop.f32.mrf.mxu0
  %v381 = vadd.f32 0.0, %v380
  %v382 = vpop.f32.mrf.mxu0
  %v383 = vadd.f32 0.0, %v382
  %v384 = vpop.f32.mrf.mxu0
  %v385 = vadd.f32 0.0, %v384
  %v386 = vpop.f32.mrf.mxu0
  %v387 = vadd.f32 0.0, %v386
  %388 = vdwg.mxu0
  %389 = vmatprep.subr.bf16.mxu0 0
  %390 = vmatpush1.bf16.msra.mxu0 %v262
  %391 = vmatprep.subr.bf16.mxu0 0
  %392 = vmatpush1.bf16.msra.mxu0 %v257
  %393 = vmatprep.subr.bf16.mxu0 0
  %394 = vmatpush1.bf16.msra.mxu0 %v252
  %395 = vmatprep.subr.bf16.mxu0 0
  %396 = vmatpush1.bf16.msra.mxu0 %v247
  %397 = vmatprep.subr.bf16.mxu0 0
  %398 = vmatpush1.bf16.msra.mxu0 %v242
  %399 = vmatprep.subr.bf16.mxu0 0
  %400 = vmatpush1.bf16.msra.mxu0 %v237
  %401 = vmatprep.subr.bf16.mxu0 0
  %402 = vmatpush1.bf16.msra.mxu0 %v232
  %403 = vmatprep.subr.bf16.mxu0 0
  %404 = vmatpush1.bf16.msra.mxu0 %v227
  %405 = vmatprep.subr.bf16.mxu0 0
  %406 = vmatpush2.bf16.msra.mxu0 0
  %407 = vmatprep.subr.bf16.mxu0 0
  %408 = vmatpush2.bf16.msra.mxu0 0
  %409 = vmatprep.subr.bf16.mxu0 0
  %410 = vmatpush2.bf16.msra.mxu0 0
  %411 = vmatprep.subr.bf16.mxu0 0
  %412 = vmatpush2.bf16.msra.mxu0 0
  %413 = vmatprep.subr.bf16.mxu0 0
  %414 = vmatpush2.bf16.msra.mxu0 0
  %415 = vmatprep.subr.bf16.mxu0 0
  %416 = vmatpush2.bf16.msra.mxu0 0
  %417 = vmatprep.subr.bf16.mxu0 0
  %418 = vmatpush2.bf16.msra.mxu0 0
  %419 = vmatprep.subr.bf16.mxu0 0
  %420 = vmatpush2.bf16.msra.mxu0 0
  %421 = vmatprep.mubr.bf16.mxu0 0
  %422 = vmatmul.mubr.bf16.gmra.mxu0 %v93
  %v423 = vpop.f32.mrf.mxu0
  %v424 = vadd.f32 0.0, %v423
  %v425 = vpop.f32.mrf.mxu0
  %v426 = vpop.f32.mrf.mxu0
  %v427 = vadd.f32 0.0, %v426
  %v428 = vpop.f32.mrf.mxu0
  %429 = vdwg.mxu0
  %v430 = vadd.f32 %v29, %v338
  %v431 = vadd.f32 %v30, %v340
  %v432 = vadd.f32 %v31, %v381
  %v433 = vadd.f32 %v32, %v383
  %v434 = vadd.f32 %v33, %v424
  %v435 = vadd.f32 %v34, %v342
  %v436 = vadd.f32 %v35, %v344
  %v437 = vadd.f32 %v36, %v385
  %v438 = vadd.f32 %v37, %v387
  %v439 = vadd.f32 %v38, %v427
  %440 = vst [vmem:[#allocation2] sm:$0xff] %v430
  %441 = vst [vmem:[#allocation2 + $0x8] sm:$0xff] %v431
  %442 = vst [vmem:[#allocation2 + $0x10] sm:$0xff] %v432
  %443 = vst [vmem:[#allocation2 + $0x18] sm:$0xff] %v433
  %444 = vst [vmem:[#allocation2 + $0x20] sm:$0xff] %v434
  %445 = vst [vmem:[#allocation2 + $0x28] sm:$0xff] %v435
  %446 = vst [vmem:[#allocation2 + $0x30] sm:$0xff] %v436
  %447 = vst [vmem:[#allocation2 + $0x38] sm:$0xff] %v437
  %448 = vst [vmem:[#allocation2 + $0x40] sm:$0xff] %v438
  %449 = vst [vmem:[#allocation2 + $0x48] sm:$0xff] %v439
  // Predicated region
  $region18: #{dekm_ae_forward.13} parent=0 // pred_check
    %p450 = pneg %p15
  $region19: #{dekm_ae_forward.13} parent=0 // pred_check_branch
    %452 = sbr.rel (%p450) target = $region21
  $region20: #{dekm_ae_forward.13} parent=0 // pred_region
    %v453 = vld [vmem:[#allocation2] sm:$0xff]
    %v454 = vld [vmem:[#allocation2 + $0x8] sm:$0xff]
    %v455 = vld [vmem:[#allocation2 + $0x10] sm:$0xff]
    %v456 = vld [vmem:[#allocation2 + $0x18] sm:$0xff]
    %v457 = vld [vmem:[#allocation2 + $0x20] sm:$0xff]
    %v458 = vld [vmem:[#allocation2 + $0x28] sm:$0xff]
    %v459 = vld [vmem:[#allocation2 + $0x30] sm:$0xff]
    %v460 = vld [vmem:[#allocation2 + $0x38] sm:$0xff]
    %v461 = vld [vmem:[#allocation2 + $0x40] sm:$0xff]
    %v462 = vld [vmem:[#allocation2 + $0x48] sm:$0xff]
    %v463 = vld [vmem:[%s2] sm:$0x1f]
    %v465 = vlaneseq
    %v466 = vshrl.u32 %v465, 7
    %v467 = vsub.s32 0, %v466
    %v468 = vrot.slane %v463, %v467
    %v469 = vlaneseq
    %v470 = vshrl.u32 %v469, 7
    %v471 = vsub.s32 1, %v470
    %v472 = vrot.slane %v463, %v471
    %v473 = vlaneseq
    %v474 = vshrl.u32 %v473, 7
    %v475 = vsub.s32 2, %v474
    %v476 = vrot.slane %v463, %v475
    %v477 = vlaneseq
    %v478 = vshrl.u32 %v477, 7
    %v479 = vsub.s32 3, %v478
    %v480 = vrot.slane %v463, %v479
    %v481 = vlaneseq
    %v482 = vshrl.u32 %v481, 7
    %v483 = vsub.s32 4, %v482
    %v484 = vrot.slane %v463, %v483
    %v490 = vadd.f32 %v453, %v468
    %v491 = vadd.f32 %v454, %v472
    %v492 = vadd.f32 %v455, %v476
    %v493 = vadd.f32 %v456, %v480
    %v494 = vadd.f32 %v457, %v484
    %v495 = vadd.f32 %v458, %v468
    %v496 = vadd.f32 %v459, %v472
    %v497 = vadd.f32 %v460, %v476
    %v498 = vadd.f32 %v461, %v480
    %v499 = vadd.f32 %v462, %v484
    %500 = vst [vmem:[%s3] sm:$0xff] %v490
    %501 = vst [vmem:[%s3 + $0x8] sm:$0xff] %v491
    %502 = vst [vmem:[%s3 + $0x10] sm:$0xff] %v492
    %503 = vst [vmem:[%s3 + $0x18] sm:$0xff] %v493
    %504 = vst [vmem:[%s3 + $0x20] sm:$0xff] %v494
    %505 = vst [vmem:[%s3 + $0x28] sm:$0xff] %v495
    %506 = vst [vmem:[%s3 + $0x30] sm:$0xff] %v496
    %507 = vst [vmem:[%s3 + $0x38] sm:$0xff] %v497
    %508 = vst [vmem:[%s3 + $0x40] sm:$0xff] %v498
    %509 = vst [vmem:[%s3 + $0x48] sm:$0xff] %v499
  $region21: #{dekm_ae_forward.13} parent=0 // pred_fallthru
    _
  // Predicated region
  $region22: #{dekm_ae_forward.13} parent=0 // pred_check
    _
  $region23: #{dekm_ae_forward.13} parent=0 // pred_check_branch
    %511 = sbr.rel (0) target = $region25
  $region24: #{dekm_ae_forward.13} parent=0 // pred_region
    _
  $region25: #{dekm_ae_forward.13} parent=0 // pred_fallthru
    _
  // Predicated region
  $region26: #{dekm_ae_forward.13} parent=0 // pred_check
    _
  $region27: #{dekm_ae_forward.13} parent=0 // pred_check_branch
    %513 = sbr.rel (0) target = $region29
  $region28: #{dekm_ae_forward.13} parent=0 // pred_region
    _
  $region29: #{dekm_ae_forward.13} parent=0 // pred_fallthru
    _

// kernel: dekm_ae_forward.14
$region0: #{dekm_ae_forward.14}
  #allocation0 [shape = 'u32[]', space=smem, size = 0x4, offset = 0x4, fixed_abs, tag = 'smem constant byte address 0x4 - core index']
  #allocation1 [shape = 'u32[144,128]{1,0:T(1,128)}', space=vmem, size = 0x12000, scoped, tag = 'internal scratch']
  #allocation2 [shape = 'f32[32,896]{1,0:T(8,128)}', space=vmem, size = 0x1c000, scoped, tag = 'scratch operand']
  %s0 = inlined_call_operand.vmem [shape: bf16[32,128], index: 0, kind: input, shape index: {}]
  %s1 = inlined_call_operand.vmem [shape: bf16[128,896], index: 1, kind: input, shape index: {}]
  %s2 = inlined_call_operand.vmem [shape: f32[1,896], index: 2, kind: input, shape index: {}]
  %s3 = inlined_call_operand.vmem [shape: f32[32,896], index: 3, kind: output, shape index: {}]
  %s4 = sld [smem:[#allocation0]]
  $region30: #{dekm_ae_forward.14} parent=0
    _
  %s6 = ssub.s32 1, %s4
  %s7 = scalar_select 0, %s6, %s4
  // Predicated region
  $region2: #{dekm_ae_forward.14} parent=0 // pred_check
    _
  $region3: #{dekm_ae_forward.14} parent=0 // pred_check_branch
    %9 = sbr.rel (0) target = $region5
  $region4: #{dekm_ae_forward.14} parent=0 // pred_region
    _
  $region5: #{dekm_ae_forward.14} parent=0 // pred_fallthru
    _
  // Predicated region
  $region6: #{dekm_ae_forward.14} parent=0 // pred_check
    _
  $region7: #{dekm_ae_forward.14} parent=0 // pred_check_branch
    %11 = sbr.rel (0) target = $region9
  $region8: #{dekm_ae_forward.14} parent=0 // pred_region
    _
  $region9: #{dekm_ae_forward.14} parent=0 // pred_fallthru
    _
  // Predicated region
  $region10: #{dekm_ae_forward.14} parent=0 // pred_check
    _
  $region11: #{dekm_ae_forward.14} parent=0 // pred_check_branch
    %13 = sbr.rel (0) target = $region13
  $region12: #{dekm_ae_forward.14} parent=0 // pred_region
    _
  $region13: #{dekm_ae_forward.14} parent=0 // pred_fallthru
    _
  %p15 = scmp.eq.s32.totalorder 0, 0
  // Predicated region
  $region14: #{dekm_ae_forward.14} parent=0 // pred_check
    %p16 = pneg %p15
  $region15: #{dekm_ae_forward.14} parent=0 // pred_check_branch
    %18 = sbr.rel (%p16) target = $region17
  $region16: #{dekm_ae_forward.14} parent=0 // pred_region
    %19 = vst [vmem:[#allocation2] sm:$0xff] 0.0
    %20 = vst [vmem:[#allocation2 + $0x8] sm:$0xff] 0.0
    %21 = vst [vmem:[#allocation2 + $0x10] sm:$0xff] 0.0
    %22 = vst [vmem:[#allocation2 + $0x18] sm:$0xff] 0.0
    %23 = vst [vmem:[#allocation2 + $0x20] sm:$0xff] 0.0
    %24 = vst [vmem:[#allocation2 + $0x28] sm:$0xff] 0.0
    %25 = vst [vmem:[#allocation2 + $0x30] sm:$0xff] 0.0
    %26 = vst [vmem:[#allocation2 + $0x38] sm:$0xff] 0.0
    %27 = vst [vmem:[#allocation2 + $0x40] sm:$0xff] 0.0
    %28 = vst [vmem:[#allocation2 + $0x48] sm:$0xff] 0.0
    %29 = vst [vmem:[#allocation2 + $0x50] sm:$0xff] 0.0
    %30 = vst [vmem:[#allocation2 + $0x58] sm:$0xff] 0.0
    %31 = vst [vmem:[#allocation2 + $0x60] sm:$0xff] 0.0
    %32 = vst [vmem:[#allocation2 + $0x68] sm:$0xff] 0.0
    %33 = vst [vmem:[#allocation2 + $0x70] sm:$0xff] 0.0
    %34 = vst [vmem:[#allocation2 + $0x78] sm:$0xff] 0.0
    %35 = vst [vmem:[#allocation2 + $0x80] sm:$0xff] 0.0
    %36 = vst [vmem:[#allocation2 + $0x88] sm:$0xff] 0.0
    %37 = vst [vmem:[#allocation2 + $0x90] sm:$0xff] 0.0
    %38 = vst [vmem:[#allocation2 + $0x98] sm:$0xff] 0.0
    %39 = vst [vmem:[#allocation2 + $0xa0] sm:$0xff] 0.0
    %40 = vst [vmem:[#allocation2 + $0xa8] sm:$0xff] 0.0
    %41 = vst [vmem:[#allocation2 + $0xb0] sm:$0xff] 0.0
    %42 = vst [vmem:[#allocation2 + $0xb8] sm:$0xff] 0.0
    %43 = vst [vmem:[#allocation2 + $0xc0] sm:$0xff] 0.0
    %44 = vst [vmem:[#allocation2 + $0xc8] sm:$0xff] 0.0
    %45 = vst [vmem:[#allocation2 + $0xd0] sm:$0xff] 0.0
    %46 = vst [vmem:[#allocation2 + $0xd8] sm:$0xff] 0.0
  $region17: #{dekm_ae_forward.14} parent=0 // pred_fallthru
    _
  %v47 = vld [vmem:[#allocation2] sm:$0xff]
  %v48 = vld [vmem:[#allocation2 + $0x8] sm:$0xff]
  %v49 = vld [vmem:[#allocation2 + $0x10] sm:$0xff]
  %v50 = vld [vmem:[#allocation2 + $0x18] sm:$0xff]
  %v51 = vld [vmem:[#allocation2 + $0x20] sm:$0xff]
  %v52 = vld [vmem:[#allocation2 + $0x28] sm:$0xff]
  %v53 = vld [vmem:[#allocation2 + $0x30] sm:$0xff]
  %v54 = vld [vmem:[#allocation2 + $0x38] sm:$0xff]
  %v55 = vld [vmem:[#allocation2 + $0x40] sm:$0xff]
  %v56 = vld [vmem:[#allocation2 + $0x48] sm:$0xff]
  %v57 = vld [vmem:[#allocation2 + $0x50] sm:$0xff]
  %v58 = vld [vmem:[#allocation2 + $0x58] sm:$0xff]
  %v59 = vld [vmem:[#allocation2 + $0x60] sm:$0xff]
  %v60 = vld [vmem:[#allocation2 + $0x68] sm:$0xff]
  %v61 = vld [vmem:[#allocation2 + $0x70] sm:$0xff]
  %v62 = vld [vmem:[#allocation2 + $0x78] sm:$0xff]
  %v63 = vld [vmem:[#allocation2 + $0x80] sm:$0xff]
  %v64 = vld [vmem:[#allocation2 + $0x88] sm:$0xff]
  %v65 = vld [vmem:[#allocation2 + $0x90] sm:$0xff]
  %v66 = vld [vmem:[#allocation2 + $0x98] sm:$0xff]
  %v67 = vld [vmem:[#allocation2 + $0xa0] sm:$0xff]
  %v68 = vld [vmem:[#allocation2 + $0xa8] sm:$0xff]
  %v69 = vld [vmem:[#allocation2 + $0xb0] sm:$0xff]
  %v70 = vld [vmem:[#allocation2 + $0xb8] sm:$0xff]
  %v71 = vld [vmem:[#allocation2 + $0xc0] sm:$0xff]
  %v72 = vld [vmem:[#allocation2 + $0xc8] sm:$0xff]
  %v73 = vld [vmem:[#allocation2 + $0xd0] sm:$0xff]
  %v74 = vld [vmem:[#allocation2 + $0xd8] sm:$0xff]
  %v75 = vld [vmem:[%s0] sm:$0xf]
  %v76 = vld [vmem:[%s0 + $0x4] sm:$0xf]
  %v77 = vld [vmem:[%s0 + $0x8] sm:$0xf]
  %v78 = vld [vmem:[%s0 + $0xc] sm:$0xf]
  %v79 = vld [vmem:[%s1] sm:$0xff]
  %v80 = vld [vmem:[%s1 + $0x8] sm:$0xff]
  %v81 = vld [vmem:[%s1 + $0x10] sm:$0xff]
  %v82 = vld [vmem:[%s1 + $0x18] sm:$0xf]
  %v83 = vld [vmem:[%s1 + $0x1c] sm:$0xff]
  %v84 = vld [vmem:[%s1 + $0x24] sm:$0xff]
  %v85 = vld [vmem:[%s1 + $0x2c] sm:$0xff]
  %v86 = vld [vmem:[%s1 + $0x34] sm:$0xf]
  %v87 = vld [vmem:[%s1 + $0x38] sm:$0xff]
  %v88 = vld [vmem:[%s1 + $0x40] sm:$0xff]
  %v89 = vld [vmem:[%s1 + $0x48] sm:$0xff]
  %v90 = vld [vmem:[%s1 + $0x50] sm:$0xf]
  %v91 = vld [vmem:[%s1 + $0x54] sm:$0xff]
  %v92 = vld [vmem:[%s1 + $0x5c] sm:$0xff]
  %v93 = vld [vmem:[%s1 + $0x64] sm:$0xff]
  %v94 = vld [vmem:[%s1 + $0x6c] sm:$0xf]
  %v95 = vld [vmem:[%s1 + $0x70] sm:$0xff]
  %v96 = vld [vmem:[%s1 + $0x78] sm:$0xff]
  %v97 = vld [vmem:[%s1 + $0x80] sm:$0xff]
  %v98 = vld [vmem:[%s1 + $0x88] sm:$0xf]
  %v99 = vld [vmem:[%s1 + $0x8c] sm:$0xff]
  %v100 = vld [vmem:[%s1 + $0x94] sm:$0xff]
  %v101 = vld [vmem:[%s1 + $0x9c] sm:$0xff]
  %v102 = vld [vmem:[%s1 + $0xa4] sm:$0xf]
  %v103 = vld [vmem:[%s1 + $0xa8] sm:$0xff]
  %v104 = vld [vmem:[%s1 + $0xb0] sm:$0xff]
  %v105 = vld [vmem:[%s1 + $0xb8] sm:$0xff]
  %v106 = vld [vmem:[%s1 + $0xc0] sm:$0xf]
  %v107 = vld [vmem:[%s1 + $0xc4] sm:$0xff]
  %v108 = vld [vmem:[%s1 + $0xcc] sm:$0xff]
  %v109 = vld [vmem:[%s1 + $0xd4] sm:$0xff]
  %v110 = vld [vmem:[%s1 + $0xdc] sm:$0xf]
  %v111 = vld [vmem:[%s1 + $0xe0] sm:$0xff]
  %v112 = vld [vmem:[%s1 + $0xe8] sm:$0xff]
  %v113 = vld [vmem:[%s1 + $0xf0] sm:$0xff]
  %v114 = vld [vmem:[%s1 + $0xf8] sm:$0xf]
  %v115 = vld [vmem:[%s1 + $0xfc] sm:$0xff]
  %v116 = vld [vmem:[%s1 + $0x104] sm:$0xff]
  %v117 = vld [vmem:[%s1 + $0x10c] sm:$0xff]
  %v118 = vld [vmem:[%s1 + $0x114] sm:$0xf]
  %v119 = vld [vmem:[%s1 + $0x118] sm:$0xff]
  %v120 = vld [vmem:[%s1 + $0x120] sm:$0xff]
  %v121 = vld [vmem:[%s1 + $0x128] sm:$0xff]
  %v122 = vld [vmem:[%s1 + $0x130] sm:$0xf]
  %v123 = vld [vmem:[%s1 + $0x134] sm:$0xff]
  %v124 = vld [vmem:[%s1 + $0x13c] sm:$0xff]
  %v125 = vld [vmem:[%s1 + $0x144] sm:$0xff]
  %v126 = vld [vmem:[%s1 + $0x14c] sm:$0xf]
  %v127 = vld [vmem:[%s1 + $0x150] sm:$0xff]
  %v128 = vld [vmem:[%s1 + $0x158] sm:$0xff]
  %v129 = vld [vmem:[%s1 + $0x160] sm:$0xff]
  %v130 = vld [vmem:[%s1 + $0x168] sm:$0xf]
  %v131 = vld [vmem:[%s1 + $0x16c] sm:$0xff]
  %v132 = vld [vmem:[%s1 + $0x174] sm:$0xff]
  %v133 = vld [vmem:[%s1 + $0x17c] sm:$0xff]
  %v134 = vld [vmem:[%s1 + $0x184] sm:$0xf]
  %v135 = vld [vmem:[%s1 + $0x188] sm:$0xff]
  %v136 = vld [vmem:[%s1 + $0x190] sm:$0xff]
  %v137 = vld [vmem:[%s1 + $0x198] sm:$0xff]
  %v138 = vld [vmem:[%s1 + $0x1a0] sm:$0xf]
  %v139 = vld [vmem:[%s1 + $0x1a4] sm:$0xff]
  %v140 = vld [vmem:[%s1 + $0x1ac] sm:$0xff]
  %v141 = vld [vmem:[%s1 + $0x1b4] sm:$0xff]
  %v142 = vld [vmem:[%s1 + $0x1bc] sm:$0xf]
  %v147 = vunpack.c.l.b16 %v75
  %v148 = vunpack.c.l.b16 %v76
  %v149 = vunpack.c.l.b16 %v77
  %v150 = vunpack.c.l.b16 %v78
  %v151 = vpack.c.b16 %v148, %v147
  %v152 = vpack.c.b16 %v150, %v149
  %v219 = vunpack.c.l.b16 %v79
  %v220 = vunpack.c.h.b16 %v79
  %v221 = vunpack.c.l.b16 %v80
  %v222 = vunpack.c.h.b16 %v80
  %v223 = vunpack.c.l.b16 %v81
  %v224 = vunpack.c.h.b16 %v81
  %v225 = vunpack.c.l.b16 %v82
  %v226 = vunpack.c.l.b16 %v83
  %v227 = vunpack.c.h.b16 %v83
  %v228 = vunpack.c.l.b16 %v84
  %v229 = vunpack.c.h.b16 %v84
  %v230 = vunpack.c.l.b16 %v85
  %v231 = vunpack.c.h.b16 %v85
  %v232 = vunpack.c.l.b16 %v86
  %v233 = vunpack.c.l.b16 %v87
  %v234 = vunpack.c.h.b16 %v87
  %v235 = vunpack.c.l.b16 %v88
  %v236 = vunpack.c.h.b16 %v88
  %v237 = vunpack.c.l.b16 %v89
  %v238 = vunpack.c.h.b16 %v89
  %v239 = vunpack.c.l.b16 %v90
  %v240 = vunpack.c.l.b16 %v91
  %v241 = vunpack.c.h.b16 %v91
  %v242 = vunpack.c.l.b16 %v92
  %v243 = vunpack.c.h.b16 %v92
  %v244 = vunpack.c.l.b16 %v93
  %v245 = vunpack.c.h.b16 %v93
  %v246 = vunpack.c.l.b16 %v94
  %v247 = vunpack.c.l.b16 %v95
  %v248 = vunpack.c.h.b16 %v95
  %v249 = vunpack.c.l.b16 %v96
  %v250 = vunpack.c.h.b16 %v96
  %v251 = vunpack.c.l.b16 %v97
  %v252 = vunpack.c.h.b16 %v97
  %v253 = vunpack.c.l.b16 %v98
  %v254 = vunpack.c.l.b16 %v99
  %v255 = vunpack.c.h.b16 %v99
  %v256 = vunpack.c.l.b16 %v100
  %v257 = vunpack.c.h.b16 %v100
  %v258 = vunpack.c.l.b16 %v101
  %v259 = vunpack.c.h.b16 %v101
  %v260 = vunpack.c.l.b16 %v102
  %v261 = vunpack.c.l.b16 %v103
  %v262 = vunpack.c.h.b16 %v103
  %v263 = vunpack.c.l.b16 %v104
  %v264 = vunpack.c.h.b16 %v104
  %v265 = vunpack.c.l.b16 %v105
  %v266 = vunpack.c.h.b16 %v105
  %v267 = vunpack.c.l.b16 %v106
  %v268 = vunpack.c.l.b16 %v107
  %v269 = vunpack.c.h.b16 %v107
  %v270 = vunpack.c.l.b16 %v108
  %v271 = vunpack.c.h.b16 %v108
  %v272 = vunpack.c.l.b16 %v109
  %v273 = vunpack.c.h.b16 %v109
  %v274 = vunpack.c.l.b16 %v110
  %v275 = vunpack.c.l.b16 %v111
  %v276 = vunpack.c.h.b16 %v111
  %v277 = vunpack.c.l.b16 %v112
  %v278 = vunpack.c.h.b16 %v112
  %v279 = vunpack.c.l.b16 %v113
  %v280 = vunpack.c.h.b16 %v113
  %v281 = vunpack.c.l.b16 %v114
  %v282 = vunpack.c.l.b16 %v115
  %v283 = vunpack.c.h.b16 %v115
  %v284 = vunpack.c.l.b16 %v116
  %v285 = vunpack.c.h.b16 %v116
  %v286 = vunpack.c.l.b16 %v117
  %v287 = vunpack.c.h.b16 %v117
  %v288 = vunpack.c.l.b16 %v118
  %v289 = vunpack.c.l.b16 %v119
  %v290 = vunpack.c.h.b16 %v119
  %v291 = vunpack.c.l.b16 %v120
  %v292 = vunpack.c.h.b16 %v120
  %v293 = vunpack.c.l.b16 %v121
  %v294 = vunpack.c.h.b16 %v121
  %v295 = vunpack.c.l.b16 %v122
  %v296 = vunpack.c.l.b16 %v123
  %v297 = vunpack.c.h.b16 %v123
  %v298 = vunpack.c.l.b16 %v124
  %v299 = vunpack.c.h.b16 %v124
  %v300 = vunpack.c.l.b16 %v125
  %v301 = vunpack.c.h.b16 %v125
  %v302 = vunpack.c.l.b16 %v126
  %v303 = vunpack.c.l.b16 %v127
  %v304 = vunpack.c.h.b16 %v127
  %v305 = vunpack.c.l.b16 %v128
  %v306 = vunpack.c.h.b16 %v128
  %v307 = vunpack.c.l.b16 %v129
  %v308 = vunpack.c.h.b16 %v129
  %v309 = vunpack.c.l.b16 %v130
  %v310 = vunpack.c.l.b16 %v131
  %v311 = vunpack.c.h.b16 %v131
  %v312 = vunpack.c.l.b16 %v132
  %v313 = vunpack.c.h.b16 %v132
  %v314 = vunpack.c.l.b16 %v133
  %v315 = vunpack.c.h.b16 %v133
  %v316 = vunpack.c.l.b16 %v134
  %v317 = vunpack.c.l.b16 %v135
  %v318 = vunpack.c.h.b16 %v135
  %v319 = vunpack.c.l.b16 %v136
  %v320 = vunpack.c.h.b16 %v136
  %v321 = vunpack.c.l.b16 %v137
  %v322 = vunpack.c.h.b16 %v137
  %v323 = vunpack.c.l.b16 %v138
  %v324 = vunpack.c.l.b16 %v139
  %v325 = vunpack.c.h.b16 %v139
  %v326 = vunpack.c.l.b16 %v140
  %v327 = vunpack.c.h.b16 %v140
  %v328 = vunpack.c.l.b16 %v141
  %v329 = vunpack.c.h.b16 %v141
  %v330 = vunpack.c.l.b16 %v142
  %v331 = vpack.c.b16 %v226, %v219
  %v332 = vpack.c.b16 %v227, %v220
  %v333 = vpack.c.b16 %v228, %v221
  %v334 = vpack.c.b16 %v229, %v222
  %v335 = vpack.c.b16 %v230, %v223
  %v336 = vpack.c.b16 %v231, %v224
  %v337 = vpack.c.b16 %v232, %v225
  %v338 = vpack.c.b16 %v240, %v233
  %v339 = vpack.c.b16 %v241, %v234
  %v340 = vpack.c.b16 %v242, %v235
  %v341 = vpack.c.b16 %v243, %v236
  %v342 = vpack.c.b16 %v244, %v237
  %v343 = vpack.c.b16 %v245, %v238
  %v344 = vpack.c.b16 %v246, %v239
  %v345 = vpack.c.b16 %v254, %v247
  %v346 = vpack.c.b16 %v255, %v248
  %v347 = vpack.c.b16 %v256, %v249
  %v348 = vpack.c.b16 %v257, %v250
  %v349 = vpack.c.b16 %v258, %v251
  %v350 = vpack.c.b16 %v259, %v252
  %v351 = vpack.c.b16 %v260, %v253
  %v352 = vpack.c.b16 %v268, %v261
  %v353 = vpack.c.b16 %v269, %v262
  %v354 = vpack.c.b16 %v270, %v263
  %v355 = vpack.c.b16 %v271, %v264
  %v356 = vpack.c.b16 %v272, %v265
  %v357 = vpack.c.b16 %v273, %v266
  %v358 = vpack.c.b16 %v274, %v267
  %v359 = vpack.c.b16 %v282, %v275
  %v360 = vpack.c.b16 %v283, %v276
  %v361 = vpack.c.b16 %v284, %v277
  %v362 = vpack.c.b16 %v285, %v278
  %v363 = vpack.c.b16 %v286, %v279
  %v364 = vpack.c.b16 %v287, %v280
  %v365 = vpack.c.b16 %v288, %v281
  %v366 = vpack.c.b16 %v296, %v289
  %v367 = vpack.c.b16 %v297, %v290
  %v368 = vpack.c.b16 %v298, %v291
  %v369 = vpack.c.b16 %v299, %v292
  %v370 = vpack.c.b16 %v300, %v293
  %v371 = vpack.c.b16 %v301, %v294
  %v372 = vpack.c.b16 %v302, %v295
  %v373 = vpack.c.b16 %v310, %v303
  %v374 = vpack.c.b16 %v311, %v304
  %v375 = vpack.c.b16 %v312, %v305
  %v376 = vpack.c.b16 %v313, %v306
  %v377 = vpack.c.b16 %v314, %v307
  %v378 = vpack.c.b16 %v315, %v308
  %v379 = vpack.c.b16 %v316, %v309
  %v380 = vpack.c.b16 %v324, %v317
  %v381 = vpack.c.b16 %v325, %v318
  %v382 = vpack.c.b16 %v326, %v319
  %v383 = vpack.c.b16 %v327, %v320
  %v384 = vpack.c.b16 %v328, %v321
  %v385 = vpack.c.b16 %v329, %v322
  %v386 = vpack.c.b16 %v330, %v323
  %443 = vmatprep.subr.bf16.mxu0 %v381
  %444 = vmatpush1.bf16.msra.mxu0 %v380
  %445 = vmatprep.subr.bf16.mxu0 %v374
  %446 = vmatpush1.bf16.msra.mxu0 %v373
  %447 = vmatprep.subr.bf16.mxu0 %v367
  %448 = vmatpush1.bf16.msra.mxu0 %v366
  %449 = vmatprep.subr.bf16.mxu0 %v360
  %450 = vmatpush1.bf16.msra.mxu0 %v359
  %451 = vmatprep.subr.bf16.mxu0 %v353
  %452 = vmatpush1.bf16.msra.mxu0 %v352
  %453 = vmatprep.subr.bf16.mxu0 %v346
  %454 = vmatpush1.bf16.msra.mxu0 %v345
  %455 = vmatprep.subr.bf16.mxu0 %v339
  %456 = vmatpush1.bf16.msra.mxu0 %v338
  %457 = vmatprep.subr.bf16.mxu0 %v332
  %458 = vmatpush1.bf16.msra.mxu0 %v331
  %459 = vmatprep.subr.bf16.mxu0 0
  %460 = vmatpush2.bf16.msra.mxu0 0
  %461 = vmatprep.subr.bf16.mxu0 0
  %462 = vmatpush2.bf16.msra.mxu0 0
  %463 = vmatprep.subr.bf16.mxu0 0
  %464 = vmatpush2.bf16.msra.mxu0 0
  %465 = vmatprep.subr.bf16.mxu0 0
  %466 = vmatpush2.bf16.msra.mxu0 0
  %467 = vmatprep.subr.bf16.mxu0 0
  %468 = vmatpush2.bf16.msra.mxu0 0
  %469 = vmatprep.subr.bf16.mxu0 0
  %470 = vmatpush2.bf16.msra.mxu0 0
  %471 = vmatprep.subr.bf16.mxu0 0
  %472 = vmatpush2.bf16.msra.mxu0 0
  %473 = vmatprep.subr.bf16.mxu0 0
  %474 = vmatpush2.bf16.msra.mxu0 0
  %475 = vmatprep.mubr.bf16.mxu0 0
  %476 = vmatmul.mubr.bf16.gmra.mxu0 %v151
  %v477 = vpop.f32.mrf.mxu0
  %v478 = vadd.f32 0.0, %v477
  %v479 = vpop.f32.mrf.mxu0
  %v480 = vadd.f32 0.0, %v479
  %v481 = vpop.f32.mrf.mxu0
  %v482 = vadd.f32 0.0, %v481
  %v483 = vpop.f32.mrf.mxu0
  %v484 = vadd.f32 0.0, %v483
  %485 = vmatprep.mubr.bf16.mxu0 0
  %486 = vmatmul.mubr.bf16.gmra.mxu0 %v152
  %v487 = vpop.f32.mrf.mxu0
  %v488 = vadd.f32 0.0, %v487
  %v489 = vpop.f32.mrf.mxu0
  %v490 = vadd.f32 0.0, %v489
  %v491 = vpop.f32.mrf.mxu0
  %v492 = vadd.f32 0.0, %v491
  %v493 = vpop.f32.mrf.mxu0
  %v494 = vadd.f32 0.0, %v493
  %495 = vdwg.mxu0
  %496 = vmatprep.subr.bf16.mxu0 %v383
  %497 = vmatpush1.bf16.msra.mxu0 %v382
  %498 = vmatprep.subr.bf16.mxu0 %v376
  %499 = vmatpush1.bf16.msra.mxu0 %v375
  %500 = vmatprep.subr.bf16.mxu0 %v369
  %501 = vmatpush1.bf16.msra.mxu0 %v368
  %502 = vmatprep.subr.bf16.mxu0 %v362
  %503 = vmatpush1.bf16.msra.mxu0 %v361
  %504 = vmatprep.subr.bf16.mxu0 %v355
  %505 = vmatpush1.bf16.msra.mxu0 %v354
  %506 = vmatprep.subr.bf16.mxu0 %v348
  %507 = vmatpush1.bf16.msra.mxu0 %v347
  %508 = vmatprep.subr.bf16.mxu0 %v341
  %509 = vmatpush1.bf16.msra.mxu0 %v340
  %510 = vmatprep.subr.bf16.mxu0 %v334
  %511 = vmatpush1.bf16.msra.mxu0 %v333
  %512 = vmatprep.subr.bf16.mxu0 0
  %513 = vmatpush2.bf16.msra.mxu0 0
  %514 = vmatprep.subr.bf16.mxu0 0
  %515 = vmatpush2.bf16.msra.mxu0 0
  %516 = vmatprep.subr.bf16.mxu0 0
  %517 = vmatpush2.bf16.msra.mxu0 0
  %518 = vmatprep.subr.bf16.mxu0 0
  %519 = vmatpush2.bf16.msra.mxu0 0
  %520 = vmatprep.subr.bf16.mxu0 0
  %521 = vmatpush2.bf16.msra.mxu0 0
  %522 = vmatprep.subr.bf16.mxu0 0
  %523 = vmatpush2.bf16.msra.mxu0 0
  %524 = vmatprep.subr.bf16.mxu0 0
  %525 = vmatpush2.bf16.msra.mxu0 0
  %526 = vmatprep.subr.bf16.mxu0 0
  %527 = vmatpush2.bf16.msra.mxu0 0
  %528 = vmatprep.mubr.bf16.mxu0 0
  %529 = vmatmul.mubr.bf16.gmra.mxu0 %v151
  %v530 = vpop.f32.mrf.mxu0
  %v531 = vadd.f32 0.0, %v530
  %v532 = vpop.f32.mrf.mxu0
  %v533 = vadd.f32 0.0, %v532
  %v534 = vpop.f32.mrf.mxu0
  %v535 = vadd.f32 0.0, %v534
  %v536 = vpop.f32.mrf.mxu0
  %v537 = vadd.f32 0.0, %v536
  %538 = vmatprep.mubr.bf16.mxu0 0
  %539 = vmatmul.mubr.bf16.gmra.mxu0 %v152
  %v540 = vpop.f32.mrf.mxu0
  %v541 = vadd.f32 0.0, %v540
  %v542 = vpop.f32.mrf.mxu0
  %v543 = vadd.f32 0.0, %v542
  %v544 = vpop.f32.mrf.mxu0
  %v545 = vadd.f32 0.0, %v544
  %v546 = vpop.f32.mrf.mxu0
  %v547 = vadd.f32 0.0, %v546
  %548 = vdwg.mxu0
  %549 = vmatprep.subr.bf16.mxu0 %v385
  %550 = vmatpush1.bf16.msra.mxu0 %v384
  %551 = vmatprep.subr.bf16.mxu0 %v378
  %552 = vmatpush1.bf16.msra.mxu0 %v377
  %553 = vmatprep.subr.bf16.mxu0 %v371
  %554 = vmatpush1.bf16.msra.mxu0 %v370
  %555 = vmatprep.subr.bf16.mxu0 %v364
  %556 = vmatpush1.bf16.msra.mxu0 %v363
  %557 = vmatprep.subr.bf16.mxu0 %v357
  %558 = vmatpush1.bf16.msra.mxu0 %v356
  %559 = vmatprep.subr.bf16.mxu0 %v350
  %560 = vmatpush1.bf16.msra.mxu0 %v349
  %561 = vmatprep.subr.bf16.mxu0 %v343
  %562 = vmatpush1.bf16.msra.mxu0 %v342
  %563 = vmatprep.subr.bf16.mxu0 %v336
  %564 = vmatpush1.bf16.msra.mxu0 %v335
  %565 = vmatprep.subr.bf16.mxu0 0
  %566 = vmatpush2.bf16.msra.mxu0 0
  %567 = vmatprep.subr.bf16.mxu0 0
  %568 = vmatpush2.bf16.msra.mxu0 0
  %569 = vmatprep.subr.bf16.mxu0 0
  %570 = vmatpush2.bf16.msra.mxu0 0
  %571 = vmatprep.subr.bf16.mxu0 0
  %572 = vmatpush2.bf16.msra.mxu0 0
  %573 = vmatprep.subr.bf16.mxu0 0
  %574 = vmatpush2.bf16.msra.mxu0 0
  %575 = vmatprep.subr.bf16.mxu0 0
  %576 = vmatpush2.bf16.msra.mxu0 0
  %577 = vmatprep.subr.bf16.mxu0 0
  %578 = vmatpush2.bf16.msra.mxu0 0
  %579 = vmatprep.subr.bf16.mxu0 0
  %580 = vmatpush2.bf16.msra.mxu0 0
  %581 = vmatprep.mubr.bf16.mxu0 0
  %582 = vmatmul.mubr.bf16.gmra.mxu0 %v151
  %v583 = vpop.f32.mrf.mxu0
  %v584 = vadd.f32 0.0, %v583
  %v585 = vpop.f32.mrf.mxu0
  %v586 = vadd.f32 0.0, %v585
  %v587 = vpop.f32.mrf.mxu0
  %v588 = vadd.f32 0.0, %v587
  %v589 = vpop.f32.mrf.mxu0
  %v590 = vadd.f32 0.0, %v589
  %591 = vmatprep.mubr.bf16.mxu0 0
  %592 = vmatmul.mubr.bf16.gmra.mxu0 %v152
  %v593 = vpop.f32.mrf.mxu0
  %v594 = vadd.f32 0.0, %v593
  %v595 = vpop.f32.mrf.mxu0
  %v596 = vadd.f32 0.0, %v595
  %v597 = vpop.f32.mrf.mxu0
  %v598 = vadd.f32 0.0, %v597
  %v599 = vpop.f32.mrf.mxu0
  %v600 = vadd.f32 0.0, %v599
  %601 = vdwg.mxu0
  %602 = vmatprep.subr.bf16.mxu0 0
  %603 = vmatpush1.bf16.msra.mxu0 %v386
  %604 = vmatprep.subr.bf16.mxu0 0
  %605 = vmatpush1.bf16.msra.mxu0 %v379
  %606 = vmatprep.subr.bf16.mxu0 0
  %607 = vmatpush1.bf16.msra.mxu0 %v372
  %608 = vmatprep.subr.bf16.mxu0 0
  %609 = vmatpush1.bf16.msra.mxu0 %v365
  %610 = vmatprep.subr.bf16.mxu0 0
  %611 = vmatpush1.bf16.msra.mxu0 %v358
  %612 = vmatprep.subr.bf16.mxu0 0
  %613 = vmatpush1.bf16.msra.mxu0 %v351
  %614 = vmatprep.subr.bf16.mxu0 0
  %615 = vmatpush1.bf16.msra.mxu0 %v344
  %616 = vmatprep.subr.bf16.mxu0 0
  %617 = vmatpush1.bf16.msra.mxu0 %v337
  %618 = vmatprep.subr.bf16.mxu0 0
  %619 = vmatpush2.bf16.msra.mxu0 0
  %620 = vmatprep.subr.bf16.mxu0 0
  %621 = vmatpush2.bf16.msra.mxu0 0
  %622 = vmatprep.subr.bf16.mxu0 0
  %623 = vmatpush2.bf16.msra.mxu0 0
  %624 = vmatprep.subr.bf16.mxu0 0
  %625 = vmatpush2.bf16.msra.mxu0 0
  %626 = vmatprep.subr.bf16.mxu0 0
  %627 = vmatpush2.bf16.msra.mxu0 0
  %628 = vmatprep.subr.bf16.mxu0 0
  %629 = vmatpush2.bf16.msra.mxu0 0
  %630 = vmatprep.subr.bf16.mxu0 0
  %631 = vmatpush2.bf16.msra.mxu0 0
  %632 = vmatprep.subr.bf16.mxu0 0
  %633 = vmatpush2.bf16.msra.mxu0 0
  %634 = vmatprep.mubr.bf16.mxu0 0
  %635 = vmatmul.mubr.bf16.gmra.mxu0 %v151
  %v636 = vpop.f32.mrf.mxu0
  %v637 = vadd.f32 0.0, %v636
  %v638 = vpop.f32.mrf.mxu0
  %v639 = vpop.f32.mrf.mxu0
  %v640 = vadd.f32 0.0, %v639
  %v641 = vpop.f32.mrf.mxu0
  %642 = vmatprep.mubr.bf16.mxu0 0
  %643 = vmatmul.mubr.bf16.gmra.mxu0 %v152
  %v644 = vpop.f32.mrf.mxu0
  %v645 = vadd.f32 0.0, %v644
  %v646 = vpop.f32.mrf.mxu0
  %v647 = vpop.f32.mrf.mxu0
  %v648 = vadd.f32 0.0, %v647
  %v649 = vpop.f32.mrf.mxu0
  %650 = vdwg.mxu0
  %v651 = vadd.f32 %v47, %v478
  %v652 = vadd.f32 %v48, %v480
  %v653 = vadd.f32 %v49, %v531
  %v654 = vadd.f32 %v50, %v533
  %v655 = vadd.f32 %v51, %v584
  %v656 = vadd.f32 %v52, %v586
  %v657 = vadd.f32 %v53, %v637
  %v658 = vadd.f32 %v54, %v482
  %v659 = vadd.f32 %v55, %v484
  %v660 = vadd.f32 %v56, %v535
  %v661 = vadd.f32 %v57, %v537
  %v662 = vadd.f32 %v58, %v588
  %v663 = vadd.f32 %v59, %v590
  %v664 = vadd.f32 %v60, %v640
  %v665 = vadd.f32 %v61, %v488
  %v666 = vadd.f32 %v62, %v490
  %v667 = vadd.f32 %v63, %v541
  %v668 = vadd.f32 %v64, %v543
  %v669 = vadd.f32 %v65, %v594
  %v670 = vadd.f32 %v66, %v596
  %v671 = vadd.f32 %v67, %v645
  %v672 = vadd.f32 %v68, %v492
  %v673 = vadd.f32 %v69, %v494
  %v674 = vadd.f32 %v70, %v545
  %v675 = vadd.f32 %v71, %v547
  %v676 = vadd.f32 %v72, %v598
  %v677 = vadd.f32 %v73, %v600
  %v678 = vadd.f32 %v74, %v648
  %679 = vst [vmem:[#allocation2] sm:$0xff] %v651
  %680 = vst [vmem:[#allocation2 + $0x8] sm:$0xff] %v652
  %681 = vst [vmem:[#allocation2 + $0x10] sm:$0xff] %v653
  %682 = vst [vmem:[#allocation2 + $0x18] sm:$0xff] %v654
  %683 = vst [vmem:[#allocation2 + $0x20] sm:$0xff] %v655
  %684 = vst [vmem:[#allocation2 + $0x28] sm:$0xff] %v656
  %685 = vst [vmem:[#allocation2 + $0x30] sm:$0xff] %v657
  %686 = vst [vmem:[#allocation2 + $0x38] sm:$0xff] %v658
  %687 = vst [vmem:[#allocation2 + $0x40] sm:$0xff] %v659
  %688 = vst [vmem:[#allocation2 + $0x48] sm:$0xff] %v660
  %689 = vst [vmem:[#allocation2 + $0x50] sm:$0xff] %v661
  %690 = vst [vmem:[#allocation2 + $0x58] sm:$0xff] %v662
  %691 = vst [vmem:[#allocation2 + $0x60] sm:$0xff] %v663
  %692 = vst [vmem:[#allocation2 + $0x68] sm:$0xff] %v664
  %693 = vst [vmem:[#allocation2 + $0x70] sm:$0xff] %v665
  %694 = vst [vmem:[#allocation2 + $0x78] sm:$0xff] %v666
  %695 = vst [vmem:[#allocation2 + $0x80] sm:$0xff] %v667
  %696 = vst [vmem:[#allocation2 + $0x88] sm:$0xff] %v668
  %697 = vst [vmem:[#allocation2 + $0x90] sm:$0xff] %v669
  %698 = vst [vmem:[#allocation2 + $0x98] sm:$0xff] %v670
  %699 = vst [vmem:[#allocation2 + $0xa0] sm:$0xff] %v671
  %700 = vst [vmem:[#allocation2 + $0xa8] sm:$0xff] %v672
  %701 = vst [vmem:[#allocation2 + $0xb0] sm:$0xff] %v673
  %702 = vst [vmem:[#allocation2 + $0xb8] sm:$0xff] %v674
  %703 = vst [vmem:[#allocation2 + $0xc0] sm:$0xff] %v675
  %704 = vst [vmem:[#allocation2 + $0xc8] sm:$0xff] %v676
  %705 = vst [vmem:[#allocation2 + $0xd0] sm:$0xff] %v677
  %706 = vst [vmem:[#allocation2 + $0xd8] sm:$0xff] %v678
  // Predicated region
  $region18: #{dekm_ae_forward.14} parent=0 // pred_check
    %p707 = pneg %p15
  $region19: #{dekm_ae_forward.14} parent=0 // pred_check_branch
    %709 = sbr.rel (%p707) target = $region21
  $region20: #{dekm_ae_forward.14} parent=0 // pred_region
    %v710 = vld [vmem:[#allocation2] sm:$0xff]
    %v711 = vld [vmem:[#allocation2 + $0x8] sm:$0xff]
    %v712 = vld [vmem:[#allocation2 + $0x10] sm:$0xff]
    %v713 = vld [vmem:[#allocation2 + $0x18] sm:$0xff]
    %v714 = vld [vmem:[#allocation2 + $0x20] sm:$0xff]
    %v715 = vld [vmem:[#allocation2 + $0x28] sm:$0xff]
    %v716 = vld [vmem:[#allocation2 + $0x30] sm:$0xff]
    %v717 = vld [vmem:[#allocation2 + $0x38] sm:$0xff]
    %v718 = vld [vmem:[#allocation2 + $0x40] sm:$0xff]
    %v719 = vld [vmem:[#allocation2 + $0x48] sm:$0xff]
    %v720 = vld [vmem:[#allocation2 + $0x50] sm:$0xff]
    %v721 = vld [vmem:[#allocation2 + $0x58] sm:$0xff]
    %v722 = vld [vmem:[#allocation2 + $0x60] sm:$0xff]
    %v723 = vld [vmem:[#allocation2 + $0x68] sm:$0xff]
    %v724 = vld [vmem:[#allocation2 + $0x70] sm:$0xff]
    %v725 = vld [vmem:[#allocation2 + $0x78] sm:$0xff]
    %v726 = vld [vmem:[#allocation2 + $0x80] sm:$0xff]
    %v727 = vld [vmem:[#allocation2 + $0x88] sm:$0xff]
    %v728 = vld [vmem:[#allocation2 + $0x90] sm:$0xff]
    %v729 = vld [vmem:[#allocation2 + $0x98] sm:$0xff]
    %v730 = vld [vmem:[#allocation2 + $0xa0] sm:$0xff]
    %v731 = vld [vmem:[#allocation2 + $0xa8] sm:$0xff]
    %v732 = vld [vmem:[#allocation2 + $0xb0] sm:$0xff]
    %v733 = vld [vmem:[#allocation2 + $0xb8] sm:$0xff]
    %v734 = vld [vmem:[#allocation2 + $0xc0] sm:$0xff]
    %v735 = vld [vmem:[#allocation2 + $0xc8] sm:$0xff]
    %v736 = vld [vmem:[#allocation2 + $0xd0] sm:$0xff]
    %v737 = vld [vmem:[#allocation2 + $0xd8] sm:$0xff]
    %v738 = vld [vmem:[%s2] sm:$0xff]
    %v740 = vlaneseq
    %v741 = vshrl.u32 %v740, 7
    %v742 = vsub.s32 0, %v741
    %v743 = vrot.slane %v738, %v742
    %v744 = vlaneseq
    %v745 = vshrl.u32 %v744, 7
    %v746 = vsub.s32 1, %v745
    %v747 = vrot.slane %v738, %v746
    %v748 = vlaneseq
    %v749 = vshrl.u32 %v748, 7
    %v750 = vsub.s32 2, %v749
    %v751 = vrot.slane %v738, %v750
    %v752 = vlaneseq
    %v753 = vshrl.u32 %v752, 7
    %v754 = vsub.s32 3, %v753
    %v755 = vrot.slane %v738, %v754
    %v756 = vlaneseq
    %v757 = vshrl.u32 %v756, 7
    %v758 = vsub.s32 4, %v757
    %v759 = vrot.slane %v738, %v758
    %v760 = vlaneseq
    %v761 = vshrl.u32 %v760, 7
    %v762 = vsub.s32 5, %v761
    %v763 = vrot.slane %v738, %v762
    %v764 = vlaneseq
    %v765 = vshrl.u32 %v764, 7
    %v766 = vsub.s32 6, %v765
    %v767 = vrot.slane %v738, %v766
    %v775 = vadd.f32 %v710, %v743
    %v776 = vadd.f32 %v711, %v747
    %v777 = vadd.f32 %v712, %v751
    %v778 = vadd.f32 %v713, %v755
    %v779 = vadd.f32 %v714, %v759
    %v780 = vadd.f32 %v715, %v763
    %v781 = vadd.f32 %v716, %v767
    %v782 = vadd.f32 %v717, %v743
    %v783 = vadd.f32 %v718, %v747
    %v784 = vadd.f32 %v719, %v751
    %v785 = vadd.f32 %v720, %v755
    %v786 = vadd.f32 %v721, %v759
    %v787 = vadd.f32 %v722, %v763
    %v788 = vadd.f32 %v723, %v767
    %v789 = vadd.f32 %v724, %v743
    %v790 = vadd.f32 %v725, %v747
    %v791 = vadd.f32 %v726, %v751
    %v792 = vadd.f32 %v727, %v755
    %v793 = vadd.f32 %v728, %v759
    %v794 = vadd.f32 %v729, %v763
    %v795 = vadd.f32 %v730, %v767
    %v796 = vadd.f32 %v731, %v743
    %v797 = vadd.f32 %v732, %v747
    %v798 = vadd.f32 %v733, %v751
    %v799 = vadd.f32 %v734, %v755
    %v800 = vadd.f32 %v735, %v759
    %v801 = vadd.f32 %v736, %v763
    %v802 = vadd.f32 %v737, %v767
    %803 = vst [vmem:[%s3] sm:$0xff] %v775
    %804 = vst [vmem:[%s3 + $0x8] sm:$0xff] %v776
    %805 = vst [vmem:[%s3 + $0x10] sm:$0xff] %v777
    %806 = vst [vmem:[%s3 + $0x18] sm:$0xff] %v778
    %807 = vst [vmem:[%s3 + $0x20] sm:$0xff] %v779
    %808 = vst [vmem:[%s3 + $0x28] sm:$0xff] %v780
    %809 = vst [vmem:[%s3 + $0x30] sm:$0xff] %v781
    %810 = vst [vmem:[%s3 + $0x38] sm:$0xff] %v782
    %811 = vst [vmem:[%s3 + $0x40] sm:$0xff] %v783
    %812 = vst [vmem:[%s3 + $0x48] sm:$0xff] %v784
    %813 = vst [vmem:[%s3 + $0x50] sm:$0xff] %v785
    %814 = vst [vmem:[%s3 + $0x58] sm:$0xff] %v786
    %815 = vst [vmem:[%s3 + $0x60] sm:$0xff] %v787
    %816 = vst [vmem:[%s3 + $0x68] sm:$0xff] %v788
    %817 = vst [vmem:[%s3 + $0x70] sm:$0xff] %v789
    %818 = vst [vmem:[%s3 + $0x78] sm:$0xff] %v790
    %819 = vst [vmem:[%s3 + $0x80] sm:$0xff] %v791
    %820 = vst [vmem:[%s3 + $0x88] sm:$0xff] %v792
    %821 = vst [vmem:[%s3 + $0x90] sm:$0xff] %v793
    %822 = vst [vmem:[%s3 + $0x98] sm:$0xff] %v794
    %823 = vst [vmem:[%s3 + $0xa0] sm:$0xff] %v795
    %824 = vst [vmem:[%s3 + $0xa8] sm:$0xff] %v796
    %825 = vst [vmem:[%s3 + $0xb0] sm:$0xff] %v797
    %826 = vst [vmem:[%s3 + $0xb8] sm:$0xff] %v798
    %827 = vst [vmem:[%s3 + $0xc0] sm:$0xff] %v799
    %828 = vst [vmem:[%s3 + $0xc8] sm:$0xff] %v800
    %829 = vst [vmem:[%s3 + $0xd0] sm:$0xff] %v801
    %830 = vst [vmem:[%s3 + $0xd8] sm:$0xff] %v802
  $region21: #{dekm_ae_forward.14} parent=0 // pred_fallthru
    _
  // Predicated region
  $region22: #{dekm_ae_forward.14} parent=0 // pred_check
    _
  $region23: #{dekm_ae_forward.14} parent=0 // pred_check_branch
    %832 = sbr.rel (0) target = $region25
  $region24: #{dekm_ae_forward.14} parent=0 // pred_region
    _
  $region25: #{dekm_ae_forward.14} parent=0 // pred_fallthru
    _
  // Predicated region
  $region26: #{dekm_ae_forward.14} parent=0 // pred_check
    _
  $region27: #{dekm_ae_forward.14} parent=0 // pred_check_branch
    %834 = sbr.rel (0) target = $region29
  $region28: #{dekm_ae_forward.14} parent=0 // pred_region
    _
  $region29: #{dekm_ae_forward.14} parent=0 // pred_fallthru
    _

// kernel: dekm_ae_forward.15
$region0: #{dekm_ae_forward.15}
  #allocation0 [shape = 'u32[]', space=smem, size = 0x4, offset = 0x4, fixed_abs, tag = 'smem constant byte address 0x4 - core index']
  #allocation1 [shape = 'u32[144,128]{1,0:T(1,128)}', space=vmem, size = 0x12000, scoped, tag = 'internal scratch']
  #allocation2 [shape = 'f32[128,128]{1,0:T(8,128)}', space=vmem, size = 0x10000, scoped, tag = 'scratch operand']
  %s0 = inlined_call_operand.vmem [shape: bf16[128,128], index: 0, kind: input, shape index: {}]
  %s1 = inlined_call_operand.vmem [shape: bf16[128,128], index: 1, kind: input, shape index: {}]
  %s2 = inlined_call_operand.vmem [shape: f32[1,128], index: 2, kind: input, shape index: {}]
  %s3 = inlined_call_operand.vmem [shape: f32[128,128], index: 3, kind: output, shape index: {}]
  %s4 = sld [smem:[#allocation0]]
  $region30: #{dekm_ae_forward.15} parent=0
    _
  %s6 = ssub.s32 1, %s4
  %s7 = scalar_select 0, %s6, %s4
  // Predicated region
  $region2: #{dekm_ae_forward.15} parent=0 // pred_check
    _
  $region3: #{dekm_ae_forward.15} parent=0 // pred_check_branch
    %9 = sbr.rel (0) target = $region5
  $region4: #{dekm_ae_forward.15} parent=0 // pred_region
    _
  $region5: #{dekm_ae_forward.15} parent=0 // pred_fallthru
    _
  // Predicated region
  $region6: #{dekm_ae_forward.15} parent=0 // pred_check
    _
  $region7: #{dekm_ae_forward.15} parent=0 // pred_check_branch
    %11 = sbr.rel (0) target = $region9
  $region8: #{dekm_ae_forward.15} parent=0 // pred_region
    _
  $region9: #{dekm_ae_forward.15} parent=0 // pred_fallthru
    _
  // Predicated region
  $region10: #{dekm_ae_forward.15} parent=0 // pred_check
    _
  $region11: #{dekm_ae_forward.15} parent=0 // pred_check_branch
    %13 = sbr.rel (0) target = $region13
  $region12: #{dekm_ae_forward.15} parent=0 // pred_region
    _
  $region13: #{dekm_ae_forward.15} parent=0 // pred_fallthru
    _
  %p15 = scmp.eq.s32.totalorder 0, 0
  // Predicated region
  $region14: #{dekm_ae_forward.15} parent=0 // pred_check
    %p16 = pneg %p15
  $region15: #{dekm_ae_forward.15} parent=0 // pred_check_branch
    %18 = sbr.rel (%p16) target = $region17
  $region16: #{dekm_ae_forward.15} parent=0 // pred_region
    %19 = vst [vmem:[#allocation2] sm:$0xff] 0.0
    %20 = vst [vmem:[#allocation2 + $0x8] sm:$0xff] 0.0
    %21 = vst [vmem:[#allocation2 + $0x10] sm:$0xff] 0.0
    %22 = vst [vmem:[#allocation2 + $0x18] sm:$0xff] 0.0
    %23 = vst [vmem:[#allocation2 + $0x20] sm:$0xff] 0.0
    %24 = vst [vmem:[#allocation2 + $0x28] sm:$0xff] 0.0
    %25 = vst [vmem:[#allocation2 + $0x30] sm:$0xff] 0.0
    %26 = vst [vmem:[#allocation2 + $0x38] sm:$0xff] 0.0
    %27 = vst [vmem:[#allocation2 + $0x40] sm:$0xff] 0.0
    %28 = vst [vmem:[#allocation2 + $0x48] sm:$0xff] 0.0
    %29 = vst [vmem:[#allocation2 + $0x50] sm:$0xff] 0.0
    %30 = vst [vmem:[#allocation2 + $0x58] sm:$0xff] 0.0
    %31 = vst [vmem:[#allocation2 + $0x60] sm:$0xff] 0.0
    %32 = vst [vmem:[#allocation2 + $0x68] sm:$0xff] 0.0
    %33 = vst [vmem:[#allocation2 + $0x70] sm:$0xff] 0.0
    %34 = vst [vmem:[#allocation2 + $0x78] sm:$0xff] 0.0
  $region17: #{dekm_ae_forward.15} parent=0 // pred_fallthru
    _
  %v35 = vld [vmem:[#allocation2] sm:$0xff]
  %v36 = vld [vmem:[#allocation2 + $0x8] sm:$0xff]
  %v37 = vld [vmem:[#allocation2 + $0x10] sm:$0xff]
  %v38 = vld [vmem:[#allocation2 + $0x18] sm:$0xff]
  %v39 = vld [vmem:[#allocation2 + $0x20] sm:$0xff]
  %v40 = vld [vmem:[#allocation2 + $0x28] sm:$0xff]
  %v41 = vld [vmem:[#allocation2 + $0x30] sm:$0xff]
  %v42 = vld [vmem:[#allocation2 + $0x38] sm:$0xff]
  %v43 = vld [vmem:[#allocation2 + $0x40] sm:$0xff]
  %v44 = vld [vmem:[#allocation2 + $0x48] sm:$0xff]
  %v45 = vld [vmem:[#allocation2 + $0x50] sm:$0xff]
  %v46 = vld [vmem:[#allocation2 + $0x58] sm:$0xff]
  %v47 = vld [vmem:[#allocation2 + $0x60] sm:$0xff]
  %v48 = vld [vmem:[#allocation2 + $0x68] sm:$0xff]
  %v49 = vld [vmem:[#allocation2 + $0x70] sm:$0xff]
  %v50 = vld [vmem:[#allocation2 + $0x78] sm:$0xff]
  %v51 = vld [vmem:[%s0] sm:$0xf]
  %v52 = vld [vmem:[%s0 + $0x4] sm:$0xf]
  %v53 = vld [vmem:[%s0 + $0x8] sm:$0xf]
  %v54 = vld [vmem:[%s0 + $0xc] sm:$0xf]
  %v55 = vld [vmem:[%s0 + $0x10] sm:$0xf]
  %v56 = vld [vmem:[%s0 + $0x14] sm:$0xf]
  %v57 = vld [vmem:[%s0 + $0x18] sm:$0xf]
  %v58 = vld [vmem:[%s0 + $0x1c] sm:$0xf]
  %v59 = vld [vmem:[%s0 + $0x20] sm:$0xf]
  %v60 = vld [vmem:[%s0 + $0x24] sm:$0xf]
  %v61 = vld [vmem:[%s0 + $0x28] sm:$0xf]
  %v62 = vld [vmem:[%s0 + $0x2c] sm:$0xf]
  %v63 = vld [vmem:[%s0 + $0x30] sm:$0xf]
  %v64 = vld [vmem:[%s0 + $0x34] sm:$0xf]
  %v65 = vld [vmem:[%s0 + $0x38] sm:$0xf]
  %v66 = vld [vmem:[%s0 + $0x3c] sm:$0xf]
  %v67 = vld [vmem:[%s1] sm:$0xf]
  %v68 = vld [vmem:[%s1 + $0x4] sm:$0xf]
  %v69 = vld [vmem:[%s1 + $0x8] sm:$0xf]
  %v70 = vld [vmem:[%s1 + $0xc] sm:$0xf]
  %v71 = vld [vmem:[%s1 + $0x10] sm:$0xf]
  %v72 = vld [vmem:[%s1 + $0x14] sm:$0xf]
  %v73 = vld [vmem:[%s1 + $0x18] sm:$0xf]
  %v74 = vld [vmem:[%s1 + $0x1c] sm:$0xf]
  %v75 = vld [vmem:[%s1 + $0x20] sm:$0xf]
  %v76 = vld [vmem:[%s1 + $0x24] sm:$0xf]
  %v77 = vld [vmem:[%s1 + $0x28] sm:$0xf]
  %v78 = vld [vmem:[%s1 + $0x2c] sm:$0xf]
  %v79 = vld [vmem:[%s1 + $0x30] sm:$0xf]
  %v80 = vld [vmem:[%s1 + $0x34] sm:$0xf]
  %v81 = vld [vmem:[%s1 + $0x38] sm:$0xf]
  %v82 = vld [vmem:[%s1 + $0x3c] sm:$0xf]
  %v99 = vunpack.c.l.b16 %v51
  %v100 = vunpack.c.l.b16 %v52
  %v101 = vunpack.c.l.b16 %v53
  %v102 = vunpack.c.l.b16 %v54
  %v103 = vunpack.c.l.b16 %v55
  %v104 = vunpack.c.l.b16 %v56
  %v105 = vunpack.c.l.b16 %v57
  %v106 = vunpack.c.l.b16 %v58
  %v107 = vunpack.c.l.b16 %v59
  %v108 = vunpack.c.l.b16 %v60
  %v109 = vunpack.c.l.b16 %v61
  %v110 = vunpack.c.l.b16 %v62
  %v111 = vunpack.c.l.b16 %v63
  %v112 = vunpack.c.l.b16 %v64
  %v113 = vunpack.c.l.b16 %v65
  %v114 = vunpack.c.l.b16 %v66
  %v115 = vpack.c.b16 %v100, %v99
  %v116 = vpack.c.b16 %v102, %v101
  %v117 = vpack.c.b16 %v104, %v103
  %v118 = vpack.c.b16 %v106, %v105
  %v119 = vpack.c.b16 %v108, %v107
  %v120 = vpack.c.b16 %v110, %v109
  %v121 = vpack.c.b16 %v112, %v111
  %v122 = vpack.c.b16 %v114, %v113
  %v147 = vunpack.c.l.b16 %v67
  %v148 = vunpack.c.l.b16 %v68
  %v149 = vunpack.c.l.b16 %v69
  %v150 = vunpack.c.l.b16 %v70
  %v151 = vunpack.c.l.b16 %v71
  %v152 = vunpack.c.l.b16 %v72
  %v153 = vunpack.c.l.b16 %v73
  %v154 = vunpack.c.l.b16 %v74
  %v155 = vunpack.c.l.b16 %v75
  %v156 = vunpack.c.l.b16 %v76
  %v157 = vunpack.c.l.b16 %v77
  %v158 = vunpack.c.l.b16 %v78
  %v159 = vunpack.c.l.b16 %v79
  %v160 = vunpack.c.l.b16 %v80
  %v161 = vunpack.c.l.b16 %v81
  %v162 = vunpack.c.l.b16 %v82
  %v163 = vpack.c.b16 %v148, %v147
  %v164 = vpack.c.b16 %v150, %v149
  %v165 = vpack.c.b16 %v152, %v151
  %v166 = vpack.c.b16 %v154, %v153
  %v167 = vpack.c.b16 %v156, %v155
  %v168 = vpack.c.b16 %v158, %v157
  %v169 = vpack.c.b16 %v160, %v159
  %v170 = vpack.c.b16 %v162, %v161
  %179 = vmatprep.subr.bf16.mxu0 0
  %180 = vmatpush1.bf16.msra.mxu0 %v170
  %181 = vmatprep.subr.bf16.mxu0 0
  %182 = vmatpush1.bf16.msra.mxu0 %v169
  %183 = vmatprep.subr.bf16.mxu0 0
  %184 = vmatpush1.bf16.msra.mxu0 %v168
  %185 = vmatprep.subr.bf16.mxu0 0
  %186 = vmatpush1.bf16.msra.mxu0 %v167
  %187 = vmatprep.subr.bf16.mxu0 0
  %188 = vmatpush1.bf16.msra.mxu0 %v166
  %189 = vmatprep.subr.bf16.mxu0 0
  %190 = vmatpush1.bf16.msra.mxu0 %v165
  %191 = vmatprep.subr.bf16.mxu0 0
  %192 = vmatpush1.bf16.msra.mxu0 %v164
  %193 = vmatprep.subr.bf16.mxu0 0
  %194 = vmatpush1.bf16.msra.mxu0 %v163
  %195 = vmatprep.subr.bf16.mxu0 0
  %196 = vmatpush2.bf16.msra.mxu0 0
  %197 = vmatprep.subr.bf16.mxu0 0
  %198 = vmatpush2.bf16.msra.mxu0 0
  %199 = vmatprep.subr.bf16.mxu0 0
  %200 = vmatpush2.bf16.msra.mxu0 0
  %201 = vmatprep.subr.bf16.mxu0 0
  %202 = vmatpush2.bf16.msra.mxu0 0
  %203 = vmatprep.subr.bf16.mxu0 0
  %204 = vmatpush2.bf16.msra.mxu0 0
  %205 = vmatprep.subr.bf16.mxu0 0
  %206 = vmatpush2.bf16.msra.mxu0 0
  %207 = vmatprep.subr.bf16.mxu0 0
  %208 = vmatpush2.bf16.msra.mxu0 0
  %209 = vmatprep.subr.bf16.mxu0 0
  %210 = vmatpush2.bf16.msra.mxu0 0
  %211 = vmatprep.mubr.bf16.mxu0 0
  %212 = vmatmul.mubr.bf16.gmra.mxu0 %v115
  %v213 = vpop.f32.mrf.mxu0
  %v214 = vadd.f32 0.0, %v213
  %v215 = vpop.f32.mrf.mxu0
  %v216 = vpop.f32.mrf.mxu0
  %v217 = vadd.f32 0.0, %v216
  %v218 = vpop.f32.mrf.mxu0
  %219 = vmatprep.mubr.bf16.mxu0 0
  %220 = vmatmul.mubr.bf16.gmra.mxu0 %v116
  %v221 = vpop.f32.mrf.mxu0
  %v222 = vadd.f32 0.0, %v221
  %v223 = vpop.f32.mrf.mxu0
  %v224 = vpop.f32.mrf.mxu0
  %v225 = vadd.f32 0.0, %v224
  %v226 = vpop.f32.mrf.mxu0
  %227 = vmatprep.mubr.bf16.mxu0 0
  %228 = vmatmul.mubr.bf16.gmra.mxu0 %v117
  %v229 = vpop.f32.mrf.mxu0
  %v230 = vadd.f32 0.0, %v229
  %v231 = vpop.f32.mrf.mxu0
  %v232 = vpop.f32.mrf.mxu0
  %v233 = vadd.f32 0.0, %v232
  %v234 = vpop.f32.mrf.mxu0
  %235 = vmatprep.mubr.bf16.mxu0 0
  %236 = vmatmul.mubr.bf16.gmra.mxu0 %v118
  %v237 = vpop.f32.mrf.mxu0
  %v238 = vadd.f32 0.0, %v237
  %v239 = vpop.f32.mrf.mxu0
  %v240 = vpop.f32.mrf.mxu0
  %v241 = vadd.f32 0.0, %v240
  %v242 = vpop.f32.mrf.mxu0
  %243 = vmatprep.mubr.bf16.mxu0 0
  %244 = vmatmul.mubr.bf16.gmra.mxu0 %v119
  %v245 = vpop.f32.mrf.mxu0
  %v246 = vadd.f32 0.0, %v245
  %v247 = vpop.f32.mrf.mxu0
  %v248 = vpop.f32.mrf.mxu0
  %v249 = vadd.f32 0.0, %v248
  %v250 = vpop.f32.mrf.mxu0
  %251 = vmatprep.mubr.bf16.mxu0 0
  %252 = vmatmul.mubr.bf16.gmra.mxu0 %v120
  %v253 = vpop.f32.mrf.mxu0
  %v254 = vadd.f32 0.0, %v253
  %v255 = vpop.f32.mrf.mxu0
  %v256 = vpop.f32.mrf.mxu0
  %v257 = vadd.f32 0.0, %v256
  %v258 = vpop.f32.mrf.mxu0
  %259 = vmatprep.mubr.bf16.mxu0 0
  %260 = vmatmul.mubr.bf16.gmra.mxu0 %v121
  %v261 = vpop.f32.mrf.mxu0
  %v262 = vadd.f32 0.0, %v261
  %v263 = vpop.f32.mrf.mxu0
  %v264 = vpop.f32.mrf.mxu0
  %v265 = vadd.f32 0.0, %v264
  %v266 = vpop.f32.mrf.mxu0
  %267 = vmatprep.mubr.bf16.mxu0 0
  %268 = vmatmul.mubr.bf16.gmra.mxu0 %v122
  %v269 = vpop.f32.mrf.mxu0
  %v270 = vadd.f32 0.0, %v269
  %v271 = vpop.f32.mrf.mxu0
  %v272 = vpop.f32.mrf.mxu0
  %v273 = vadd.f32 0.0, %v272
  %v274 = vpop.f32.mrf.mxu0
  %275 = vdwg.mxu0
  %v276 = vadd.f32 %v35, %v214
  %v277 = vadd.f32 %v36, %v217
  %v278 = vadd.f32 %v37, %v222
  %v279 = vadd.f32 %v38, %v225
  %v280 = vadd.f32 %v39, %v230
  %v281 = vadd.f32 %v40, %v233
  %v282 = vadd.f32 %v41, %v238
  %v283 = vadd.f32 %v42, %v241
  %v284 = vadd.f32 %v43, %v246
  %v285 = vadd.f32 %v44, %v249
  %v286 = vadd.f32 %v45, %v254
  %v287 = vadd.f32 %v46, %v257
  %v288 = vadd.f32 %v47, %v262
  %v289 = vadd.f32 %v48, %v265
  %v290 = vadd.f32 %v49, %v270
  %v291 = vadd.f32 %v50, %v273
  %292 = vst [vmem:[#allocation2] sm:$0xff] %v276
  %293 = vst [vmem:[#allocation2 + $0x8] sm:$0xff] %v277
  %294 = vst [vmem:[#allocation2 + $0x10] sm:$0xff] %v278
  %295 = vst [vmem:[#allocation2 + $0x18] sm:$0xff] %v279
  %296 = vst [vmem:[#allocation2 + $0x20] sm:$0xff] %v280
  %297 = vst [vmem:[#allocation2 + $0x28] sm:$0xff] %v281
  %298 = vst [vmem:[#allocation2 + $0x30] sm:$0xff] %v282
  %299 = vst [vmem:[#allocation2 + $0x38] sm:$0xff] %v283
  %300 = vst [vmem:[#allocation2 + $0x40] sm:$0xff] %v284
  %301 = vst [vmem:[#allocation2 + $0x48] sm:$0xff] %v285
  %302 = vst [vmem:[#allocation2 + $0x50] sm:$0xff] %v286
  %303 = vst [vmem:[#allocation2 + $0x58] sm:$0xff] %v287
  %304 = vst [vmem:[#allocation2 + $0x60] sm:$0xff] %v288
  %305 = vst [vmem:[#allocation2 + $0x68] sm:$0xff] %v289
  %306 = vst [vmem:[#allocation2 + $0x70] sm:$0xff] %v290
  %307 = vst [vmem:[#allocation2 + $0x78] sm:$0xff] %v291
  // Predicated region
  $region18: #{dekm_ae_forward.15} parent=0 // pred_check
    %p308 = pneg %p15
  $region19: #{dekm_ae_forward.15} parent=0 // pred_check_branch
    %310 = sbr.rel (%p308) target = $region21
  $region20: #{dekm_ae_forward.15} parent=0 // pred_region
    %v311 = vld [vmem:[#allocation2] sm:$0xff]
    %v312 = vld [vmem:[#allocation2 + $0x8] sm:$0xff]
    %v313 = vld [vmem:[#allocation2 + $0x10] sm:$0xff]
    %v314 = vld [vmem:[#allocation2 + $0x18] sm:$0xff]
    %v315 = vld [vmem:[#allocation2 + $0x20] sm:$0xff]
    %v316 = vld [vmem:[#allocation2 + $0x28] sm:$0xff]
    %v317 = vld [vmem:[#allocation2 + $0x30] sm:$0xff]
    %v318 = vld [vmem:[#allocation2 + $0x38] sm:$0xff]
    %v319 = vld [vmem:[#allocation2 + $0x40] sm:$0xff]
    %v320 = vld [vmem:[#allocation2 + $0x48] sm:$0xff]
    %v321 = vld [vmem:[#allocation2 + $0x50] sm:$0xff]
    %v322 = vld [vmem:[#allocation2 + $0x58] sm:$0xff]
    %v323 = vld [vmem:[#allocation2 + $0x60] sm:$0xff]
    %v324 = vld [vmem:[#allocation2 + $0x68] sm:$0xff]
    %v325 = vld [vmem:[#allocation2 + $0x70] sm:$0xff]
    %v326 = vld [vmem:[#allocation2 + $0x78] sm:$0xff]
    %v327 = vld [vmem:[%s2] sm:$0x1]
    %v329 = vlaneseq
    %v330 = vshrl.u32 %v329, 7
    %v331 = vsub.s32 0, %v330
    %v332 = vrot.slane %v327, %v331
    %v334 = vadd.f32 %v311, %v332
    %v335 = vadd.f32 %v312, %v332
    %v336 = vadd.f32 %v313, %v332
    %v337 = vadd.f32 %v314, %v332
    %v338 = vadd.f32 %v315, %v332
    %v339 = vadd.f32 %v316, %v332
    %v340 = vadd.f32 %v317, %v332
    %v341 = vadd.f32 %v318, %v332
    %v342 = vadd.f32 %v319, %v332
    %v343 = vadd.f32 %v320, %v332
    %v344 = vadd.f32 %v321, %v332
    %v345 = vadd.f32 %v322, %v332
    %v346 = vadd.f32 %v323, %v332
    %v347 = vadd.f32 %v324, %v332
    %v348 = vadd.f32 %v325, %v332
    %v349 = vadd.f32 %v326, %v332
    %350 = vst [vmem:[%s3] sm:$0xff] %v334
    %351 = vst [vmem:[%s3 + $0x8] sm:$0xff] %v335
    %352 = vst [vmem:[%s3 + $0x10] sm:$0xff] %v336
    %353 = vst [vmem:[%s3 + $0x18] sm:$0xff] %v337
    %354 = vst [vmem:[%s3 + $0x20] sm:$0xff] %v338
    %355 = vst [vmem:[%s3 + $0x28] sm:$0xff] %v339
    %356 = vst [vmem:[%s3 + $0x30] sm:$0xff] %v340
    %357 = vst [vmem:[%s3 + $0x38] sm:$0xff] %v341
    %358 = vst [vmem:[%s3 + $0x40] sm:$0xff] %v342
    %359 = vst [vmem:[%s3 + $0x48] sm:$0xff] %v343
    %360 = vst [vmem:[%s3 + $0x50] sm:$0xff] %v344
    %361 = vst [vmem:[%s3 + $0x58] sm:$0xff] %v345
    %362 = vst [vmem:[%s3 + $0x60] sm:$0xff] %v346
    %363 = vst [vmem:[%s3 + $0x68] sm:$0xff] %v347
    %364 = vst [vmem:[%s3 + $0x70] sm:$0xff] %v348
    %365 = vst [vmem:[%s3 + $0x78] sm:$0xff] %v349
  $region21: #{dekm_ae_forward.15} parent=0 // pred_fallthru
    _
  // Predicated region
  $region22: #{dekm_ae_forward.15} parent=0 // pred_check
    _
  $region23: #{dekm_ae_forward.15} parent=0 // pred_check_branch
    %367 = sbr.rel (0) target = $region25
  $region24: #{dekm_ae_forward.15} parent=0 // pred_region
    _
  $region25: #{dekm_ae_forward.15} parent=0 // pred_fallthru
    _
  // Predicated region
  $region26: #{dekm_ae_forward.15} parent=0 // pred_check
    _
  $region27: #{dekm_ae_forward.15} parent=0 // pred_check_branch
    %369 = sbr.rel (0) target = $region29
  $region28: #{dekm_ae_forward.15} parent=0 // pred_region
    _
  $region29: #{dekm_ae_forward.15} parent=0 // pred_fallthru
    _

</llo_original>
